<compile_context>
chip_gen: v7x
topology: tpu7x:2x2x1
jax: 0.10.0
libtpu: 0.0.40
codegen_flags: <defaults>
</compile_context>

<pallas_src>
import functools

import jax
import jax.numpy as jnp
from jax.experimental import pallas as pl
from jax.experimental.pallas import tpu as pltpu

_LANE = 128
_SUBLANE = 8
_M_TILE = 512                      # cap on rows per grid step
_VMEM_LIMIT = 32 * 1024 * 1024     # explicit scoped-VMEM request (safe on v5e/v6e/v7x)


def _round_up(x, m):
    return (x + m - 1) // m * m


def _apply_act(y, act):
    if act == "leaky_relu":        # PyTorch default negative slope 0.01
        return jnp.where(y > 0, y, 0.01 * y)
    if act == "relu":
        return jnp.maximum(y, 0.0)
    if act == "sigmoid":
        return 1.0 / (1.0 + jnp.exp(-y))
    return y


# ----------------------------------------------------------------------------
# Kernel 1: tiled fused  Y = act(X @ W + b)   (the four conv / conv-T matmuls)
# ----------------------------------------------------------------------------
def _mm_bias_act_kernel(x_ref, w_ref, b_ref, o_ref, *, act):
    y = jnp.dot(x_ref[...], w_ref[...], preferred_element_type=jnp.float32)
    y = y + b_ref[...]
    o_ref[...] = _apply_act(y, act)


def matmul_bias_act(x, w, b, act="none"):
    """x: (M, K) float; w: (K, Np) bf16 with Np % 128 == 0; b: (1, Np) f32.

    Returns act(x @ w + b) as (M, Np) f32 (caller slices the real N columns).
    M is tiled over a 'parallel' grid axis; the output block is lane-dense.
    """
    M, K = x.shape
    K2, Np = w.shape
    assert K == K2 and Np % _LANE == 0
    Mp = _round_up(M, _SUBLANE)
    tm = min(_M_TILE, Mp)
    Mp = _round_up(Mp, tm)
    if Mp != M:
        x = jnp.pad(x, ((0, Mp - M), (0, 0)))
    x = x.astype(jnp.bfloat16)

    out = pl.pallas_call(
        functools.partial(_mm_bias_act_kernel, act=act),
        out_shape=jax.ShapeDtypeStruct((Mp, Np), jnp.float32),
        grid=(Mp // tm,),
        in_specs=[
            pl.BlockSpec((tm, K), lambda i: (i, 0)),
            pl.BlockSpec((K, Np), lambda i: (0, 0)),
            pl.BlockSpec((1, Np), lambda i: (0, 0)),
        ],
        out_specs=pl.BlockSpec((tm, Np), lambda i: (i, 0)),
        compiler_params=pltpu.CompilerParams(
            dimension_semantics=("parallel",),
            vmem_limit_bytes=_VMEM_LIMIT,
        ),
    )(x, w, b)
    return out[:M]


# ----------------------------------------------------------------------------
# Kernel 2: the entire FC stack fused into one pallas_call
#   h --LeakyReLU(Linear)--> 1024 --Linear--> z --ReLU(Linear)--> 1024
#     --ReLU(Linear)--> decoder feature map.   Activations stay in VMEM.
# ----------------------------------------------------------------------------
def _fc_chain_kernel(h_ref, w1_ref, b1_ref, w2_ref, b2_ref,
                     w3_ref, b3_ref, w4_ref, b4_ref, z_ref, d_ref):
    bf16, f32 = jnp.bfloat16, jnp.float32
    h = h_ref[...]
    a = jnp.dot(h, w1_ref[...], preferred_element_type=f32) + b1_ref[...]
    a = jnp.where(a > 0, a, 0.01 * a)                                  # LeakyReLU
    z = jnp.dot(a.astype(bf16), w2_ref[...], preferred_element_type=f32) + b2_ref[...]
    z_ref[...] = z                                                     # latent (lane-padded)
    d = jnp.dot(z.astype(bf16), w3_ref[...], preferred_element_type=f32) + b3_ref[...]
    d = jnp.maximum(d, 0.0)
    d = jnp.dot(d.astype(bf16), w4_ref[...], preferred_element_type=f32) + b4_ref[...]
    d_ref[...] = jnp.maximum(d, 0.0)


def fc_chain(h, w1, b1, w2, b2, w3, b3, w4, b4):
    B, _ = h.shape
    Nz, Nd = w2.shape[1], w4.shape[1]
    h = h.astype(jnp.bfloat16)

    def full(a):
        return pl.BlockSpec(a.shape, lambda: tuple(0 for _ in a.shape))

    z, d = pl.pallas_call(
        _fc_chain_kernel,
        out_shape=(jax.ShapeDtypeStruct((B, Nz), jnp.float32),
                   jax.ShapeDtypeStruct((B, Nd), jnp.float32)),
        in_specs=[full(h), full(w1), full(b1), full(w2), full(b2),
                  full(w3), full(b3), full(w4), full(b4)],
        out_specs=(pl.BlockSpec((B, Nz), lambda: (0, 0)),
                   pl.BlockSpec((B, Nd), lambda: (0, 0))),
        compiler_params=pltpu.CompilerParams(vmem_limit_bytes=_VMEM_LIMIT),
    )(h, w1, b1, w2, b2, w3, b3, w4, b4)
    return z, d


# ----------------------------------------------------------------------------
# Layout glue (XLA): NHWC im2col + 4-phase transposed-conv interleave.
# TODO(synk): im2col / pixel-shuffle stay as XLA layout ops; expressing them as
# in-kernel gathers is possible but not worthwhile at these sizes.
# ----------------------------------------------------------------------------
def _im2col_nhwc(x, k, stride, pad):
    """x: (B, H, W, C) -> (B*Ho*Wo, k*k*C); patch features ordered (ki, kj, ci)."""
    B, H, W, C = x.shape
    Ho = (H + 2 * pad - k) // stride + 1
    Wo = (W + 2 * pad - k) // stride + 1
    xp = jnp.pad(x, ((0, 0), (pad, pad), (pad, pad), (0, 0)))
    patches = []
    for ki in range(k):
        for kj in range(k):
            patches.append(
                xp[:, ki: ki + stride * (Ho - 1) + 1: stride,
                      kj: kj + stride * (Wo - 1) + 1: stride, :])
    cols = jnp.stack(patches, axis=3)                  # (B, Ho, Wo, k*k, C)
    return cols.reshape(B * Ho * Wo, k * k * C), (B, Ho, Wo)


def conv2d_nhwc(x, w_mat, b_row, cout, act):
    """PyTorch Conv2d(k=4, s=2, p=1) on NHWC input via im2col + Pallas matmul."""
    cols, (B, Ho, Wo) = _im2col_nhwc(x, 4, 2, 1)
    y = matmul_bias_act(cols, w_mat, b_row, act)[:, :cout]
    return y.reshape(B, Ho, Wo, cout)


def conv_transpose2d_nhwc(x, w_mat, b_row, cout, act):
    """PyTorch ConvTranspose2d(k=4, s=2, p=1) on NHWC input, direct 4-phase form.

    One 2x2-patch im2col over the 1-padded input (no zero dilation) feeds a
    single matmul whose N axis holds the 4 output phases; the phases are then
    interleaved (pixel-shuffle) into the (2H, 2W) output.
    """
    B, H, W, _ = x.shape
    cols, (_, Hp, Wp) = _im2col_nhwc(x, 2, 1, 1)       # Hp = H + 1, Wp = W + 1
    y = matmul_bias_act(cols, w_mat, b_row, act)[:, :4 * cout]
    z = y.reshape(B, Hp, Wp, 2, 2, cout)               # [..., r, c, cout]
    out = jnp.stack([z[:, :H, :W, 0, 0, :], z[:, :H, 1:, 0, 1, :],
                     z[:, 1:, :W, 1, 0, :], z[:, 1:, 1:, 1, 1, :]], axis=3)
    out = out.reshape(B, H, W, 2, 2, cout)
    return out.transpose(0, 1, 3, 2, 4, 5).reshape(B, 2 * H, 2 * W, cout)


# ----------------------------------------------------------------------------
# Parameters: PyTorch-layout init + one-time device-friendly preparation.
# ----------------------------------------------------------------------------
def init_params(key, z_dim, nc, n_filters, after_conv):
    """PyTorch layouts: Conv (Cout,Cin,k,k); ConvT (Cin,Cout,k,k); Linear (in,out)."""
    def uni(key, shape, fan_in):
        bound = 1.0 / jnp.sqrt(fan_in)
        return jax.random.uniform(key, shape, jnp.float32, -bound, bound)

    ks = jax.random.split(key, 16)
    nf, ac = n_filters, after_conv
    p = {}
    p["ec1_w"] = uni(ks[0], (nf, nc, 4, 4), nc * 16)
    p["ec1_b"] = uni(ks[1], (nf,), nc * 16)
    p["ec2_w"] = uni(ks[2], (2 * nf, nf, 4, 4), nf * 16)
    p["ec2_b"] = uni(ks[3], (2 * nf,), nf * 16)
    p["ef1_w"] = uni(ks[4], (2 * nf * ac * ac, 1024), 2 * nf * ac * ac)
    p["ef1_b"] = uni(ks[5], (1024,), 2 * nf * ac * ac)
    p["ef2_w"] = uni(ks[6], (1024, z_dim), 1024)
    p["ef2_b"] = uni(ks[7], (z_dim,), 1024)
    p["df1_w"] = uni(ks[8], (z_dim, 1024), z_dim)
    p["df1_b"] = uni(ks[9], (1024,), z_dim)
    p["df2_w"] = uni(ks[10], (1024, ac * ac * 2 * nf), 1024)
    p["df2_b"] = uni(ks[11], (ac * ac * 2 * nf,), 1024)
    p["dc1_w"] = uni(ks[12], (2 * nf, nf, 4, 4), 2 * nf * 16)
    p["dc1_b"] = uni(ks[13], (nf,), 2 * nf * 16)
    p["dc2_w"] = uni(ks[14], (nf, nc, 4, 4), nf * 16)
    p["dc2_b"] = uni(ks[15], (nc,), nf * 16)
    return p


def prepare_params(p, *, z_dim, nc, n_filters, after_conv):
    """One-time: PyTorch layouts -> bf16 matmul matrices, NHWC feature order,
    N padded to a multiple of 128 for lane-dense kernel outputs."""
    nf, ac = n_filters, after_conv
    bf16, f32 = jnp.bfloat16, jnp.float32

    def pad_nb(w2d, b1d):
        _, N = w2d.shape
        Np = _round_up(max(N, _LANE), _LANE)
        w_p = jnp.pad(w2d, ((0, 0), (0, Np - N))).astype(bf16)
        b_p = jnp.pad(b1d, (0, Np - N)).reshape(1, Np).astype(f32)
        return w_p, b_p

    def conv_w(w):                                     # (Cout,Cin,k,k) -> [(ki,kj,ci), co]
        cout, cin, k, _ = w.shape
        return w.transpose(2, 3, 1, 0).reshape(k * k * cin, cout)

    def convt_phase_w(w, b):                           # (Cin,Cout,4,4) -> 4-phase matrix
        cin, cout = w.shape[0], w.shape[1]
        wf = w[:, :, ::-1, ::-1].reshape(cin, cout, 2, 2, 2, 2)        # [ci,co,di,r,dj,c]
        wt = wf.transpose(2, 4, 0, 3, 5, 1).reshape(4 * cin, 4 * cout)  # [(di,dj,ci),(r,c,co)]
        return pad_nb(wt, jnp.tile(b, 4))

    q = {}
    q["ec1_w"], q["ec1_b"] = pad_nb(conv_w(p["ec1_w"]), p["ec1_b"])
    q["ec2_w"], q["ec2_b"] = pad_nb(conv_w(p["ec2_w"]), p["ec2_b"])

    # Encoder fc1: rows follow the NCHW Flatten order (c,h,w); re-order to (h,w,c).
    w = p["ef1_w"].reshape(2 * nf, ac, ac, 1024).transpose(1, 2, 0, 3)
    q["ef1_w"] = w.reshape(2 * nf * ac * ac, 1024).astype(bf16)
    q["ef1_b"] = p["ef1_b"].reshape(1, 1024).astype(f32)

    # Encoder fc2 (-> z): pad z_dim to 128 output lanes (padded columns are 0).
    q["ef2_w"], q["ef2_b"] = pad_nb(p["ef2_w"], p["ef2_b"])
    zp = q["ef2_w"].shape[1]

    # Decoder fc1 consumes the lane-padded z, so pad its input rows with zeros.
    q["df1_w"] = jnp.pad(p["df1_w"], ((0, zp - z_dim), (0, 0))).astype(bf16)
    q["df1_b"] = p["df1_b"].reshape(1, 1024).astype(f32)

    # Decoder fc2: columns follow the NCHW Reshape order (c,h,w); re-order to (h,w,c).
    w = p["df2_w"].reshape(1024, 2 * nf, ac, ac).transpose(0, 2, 3, 1)
    b = p["df2_b"].reshape(2 * nf, ac, ac).transpose(1, 2, 0).reshape(-1)
    q["df2_w"] = w.reshape(1024, ac * ac * 2 * nf).astype(bf16)
    q["df2_b"] = b.reshape(1, -1).astype(f32)

    q["dc1_w"], q["dc1_b"] = convt_phase_w(p["dc1_w"], p["dc1_b"])
    q["dc2_w"], q["dc2_b"] = convt_phase_w(p["dc2_w"], p["dc2_b"])
    return q


# ----------------------------------------------------------------------------
# Model forward (Encoder + Decoder), PyTorch I/O semantics (NCHW in/out).
# ----------------------------------------------------------------------------
def model_forward(x, q, *, z_dim, nc, n_filters, after_conv):
    nf, ac = n_filters, after_conv
    B = x.shape[0]
    h = x.transpose(0, 2, 3, 1)                              # NCHW -> NHWC (once)

    # ---- Encoder convs ----
    h = conv2d_nhwc(h, q["ec1_w"], q["ec1_b"], nf, "leaky_relu")
    h = conv2d_nhwc(h, q["ec2_w"], q["ec2_b"], 2 * nf, "leaky_relu")
    h = h.reshape(B, -1)            # Flatten in NHWC order (fc1 rows pre-permuted)

    # ---- Fused FC chain: enc fc1 -> z -> dec fc1 -> dec fc2 (one pallas_call) ----
    z_pad, d = fc_chain(h, q["ef1_w"], q["ef1_b"], q["ef2_w"], q["ef2_b"],
                        q["df1_w"], q["df1_b"], q["df2_w"], q["df2_b"])
    z = z_pad[:, :z_dim]

    # ---- Decoder transposed convs ----
    d = d.reshape(B, ac, ac, 2 * nf)  # Reshape in NHWC order (fc2 cols pre-permuted)
    d = conv_transpose2d_nhwc(d, q["dc1_w"], q["dc1_b"], nf, "relu")
    xr = conv_transpose2d_nhwc(d, q["dc2_w"], q["dc2_b"], nc, "sigmoid")
    return z, xr.transpose(0, 3, 1, 2)                       # NHWC -> NCHW (once)


# ----------------------------------------------------------------------------
# Pure-JAX reference (mirrors the PyTorch module op-by-op; NCHW, f32).
# ----------------------------------------------------------------------------
def _ref_model_forward(x, p, *, z_dim, nc, n_filters, after_conv):
    def act(y, kind):
        if kind == "leaky_relu":
            return jnp.where(y > 0, y, 0.01 * y)
        if kind == "relu":
            return jnp.maximum(y, 0.0)
        if kind == "sigmoid":
            return 1.0 / (1.0 + jnp.exp(-y))
        return y

    def im2col(xx, k, stride, pad):
        B, C, H, W = xx.shape
        Ho = (H + 2 * pad - k) // stride + 1
        Wo = (W + 2 * pad - k) // stride + 1
        xp = jnp.pad(xx, ((0, 0), (0, 0), (pad, pad), (pad, pad)))
        cols = []
        for ki in range(k):
            for kj in range(k):
                cols.append(xp[:, :, ki: ki + stride * (Ho - 1) + 1: stride,
                               kj: kj + stride * (Wo - 1) + 1: stride])
        cols = jnp.stack(cols, 0).reshape(k, k, B, C, Ho, Wo)
        cols = cols.transpose(2, 4, 5, 3, 0, 1).reshape(B * Ho * Wo, C * k * k)
        return cols, (B, Ho, Wo)

    def conv2d(xx, w, b, stride, pad, kind):
        Cout = w.shape[0]
        cols, (B, Ho, Wo) = im2col(xx, w.shape[2], stride, pad)
        y = act(cols @ w.reshape(Cout, -1).T + b, kind)
        return y.reshape(B, Ho, Wo, Cout).transpose(0, 3, 1, 2)

    def convT2d(xx, w, b, stride, pad, kind):
        Cin, _, k, _ = w.shape
        B, _, H, W = xx.shape
        xd = jnp.zeros((B, Cin, (H - 1) * stride + 1, (W - 1) * stride + 1), xx.dtype)
        xd = xd.at[:, :, ::stride, ::stride].set(xx)
        wc = jnp.flip(w, (2, 3)).transpose(1, 0, 2, 3)
        return conv2d(xd, wc, b, 1, k - 1 - pad, kind)

    B = x.shape[0]
    h = conv2d(x, p["ec1_w"], p["ec1_b"], 2, 1, "leaky_relu")
    h = conv2d(h, p["ec2_w"], p["ec2_b"], 2, 1, "leaky_relu")
    h = h.reshape(B, -1)
    h = act(h @ p["ef1_w"] + p["ef1_b"], "leaky_relu")
    z = h @ p["ef2_w"] + p["ef2_b"]
    d = act(z @ p["df1_w"] + p["df1_b"], "relu")
    d = act(d @ p["df2_w"] + p["df2_b"], "relu")
    d = d.reshape(B, 2 * n_filters, after_conv, after_conv)
    d = convT2d(d, p["dc1_w"], p["dc1_b"], 2, 1, "relu")
    xr = convT2d(d, p["dc2_w"], p["dc2_b"], 2, 1, "sigmoid")
    return z, xr


if __name__ == "__main__":
    # 16x16 images, two stride-2 convs -> after_conv = 4.
    B, nc, n_filters, z_dim, after_conv, H = 2, 3, 8, 8, 4, 16

    key = jax.random.PRNGKey(0)
    kx, kp = jax.random.split(key)
    x = jax.random.normal(kx, (B, nc, H, H), jnp.float32)
    params = init_params(kp, z_dim, nc, n_filters, after_conv)
    prepped = prepare_params(params, z_dim=z_dim, nc=nc,
                             n_filters=n_filters, after_conv=after_conv)

    fwd = jax.jit(functools.partial(
        model_forward, z_dim=z_dim, nc=nc, n_filters=n_filters, after_conv=after_conv))
    z, x_rec = fwd(x, prepped)
    jax.block_until_ready((z, x_rec))

    assert z.shape == (B, z_dim)
    assert x_rec.shape == (B, nc, H, H)
    assert bool(jnp.all(jnp.isfinite(z))) and bool(jnp.all(jnp.isfinite(x_rec)))
    assert bool(jnp.all(x_rec >= 0.0)) and bool(jnp.all(x_rec <= 1.0))

    # Numerical check against a pure-JAX reference of the PyTorch module
    # (bf16 MXU operands in the kernels -> modest tolerance).
    z_ref, xr_ref = _ref_model_forward(
        x, params, z_dim=z_dim, nc=nc, n_filters=n_filters, after_conv=after_conv)
    assert bool(jnp.allclose(z, z_ref, rtol=5e-2, atol=5e-2)), \
        float(jnp.max(jnp.abs(z - z_ref)))
    assert bool(jnp.allclose(x_rec, xr_ref, rtol=5e-2, atol=5e-2)), \
        float(jnp.max(jnp.abs(x_rec - xr_ref)))

    print("KERNEL_OK")
</pallas_src>

<mosaic_0001>
module attributes {stable_mosaic.version = 11 : i64} {
  func.func @_mm_bias_act_kernel(%arg0: i32, %arg1: memref<128x48xbf16, #tpu.memory_space<vmem>>, %arg2: memref<48x128xbf16, #tpu.memory_space<vmem>>, %arg3: memref<1x128xf32, #tpu.memory_space<vmem>>, %arg4: memref<128x128xf32, #tpu.memory_space<vmem>>) attributes {dimension_semantics = [#tpu.dimension_semantics<parallel>], iteration_bounds = array<i64: 1>, scalar_prefetch = 0 : i64, scratch_operands = 0 : i64, tpu.core_type = #tpu.core_type<tc>, window_params = [{transform_indices = @transform_0, window_bounds = array<i64: 128, 48>}, {pipeline_mode = #tpu.pipeline_mode<synchronous>, transform_indices = @transform_1, window_bounds = array<i64: 48, 128>}, {pipeline_mode = #tpu.pipeline_mode<synchronous>, transform_indices = @transform_2, window_bounds = array<i64: 1, 128>}, {transform_indices = @transform_3, window_bounds = array<i64: 128, 128>}]} {
    %c0 = arith.constant 0 : index
    %c0_0 = arith.constant 0 : index
    %0 = vector.load %arg1[%c0, %c0_0] : memref<128x48xbf16, #tpu.memory_space<vmem>>, vector<128x48xbf16>
    %c0_1 = arith.constant 0 : index
    %c0_2 = arith.constant 0 : index
    %1 = vector.load %arg2[%c0_1, %c0_2] : memref<48x128xbf16, #tpu.memory_space<vmem>>, vector<48x128xbf16>
    %cst = arith.constant dense<0.000000e+00> : vector<128x128xf32>
    %2 = tpu.matmul %0, %1, %cst {dimension_numbers = #tpu.dot_dimension_numbers<[1], [0], [0], [1], [0, 0, 1, 1], [], []>} : vector<128x48xbf16>, vector<48x128xbf16>, vector<128x128xf32> -> vector<128x128xf32>
    %c0_3 = arith.constant 0 : index
    %c0_4 = arith.constant 0 : index
    %3 = vector.load %arg3[%c0_3, %c0_4] : memref<1x128xf32, #tpu.memory_space<vmem>>, vector<1x128xf32>
    %4 = vector.broadcast %3 : vector<1x128xf32> to vector<128x128xf32>
    %5 = arith.addf %2, %4 : vector<128x128xf32>
    %cst_5 = arith.constant 0.000000e+00 : f32
    %6 = vector.broadcast %cst_5 : f32 to vector<128x128xf32>
    %7 = arith.cmpf ogt, %5, %6 : vector<128x128xf32>
    %cst_6 = arith.constant 0.00999999977 : f32
    %8 = vector.broadcast %cst_6 : f32 to vector<128x128xf32>
    %9 = arith.mulf %8, %5 : vector<128x128xf32>
    %10 = arith.select %7, %5, %9 : vector<128x128xi1>, vector<128x128xf32>
    %c0_7 = arith.constant 0 : index
    %c0_8 = arith.constant 0 : index
    %11 = vector.load %arg4[%c0_7, %c0_8] : memref<128x128xf32, #tpu.memory_space<vmem>>, vector<128x128xf32>
    tpu.vector_store %arg4[%c0_7, %c0_8], %10 {strides = array<i32>} : memref<128x128xf32, #tpu.memory_space<vmem>>, vector<128x128xf32>,
    return
  }
  func.func @transform_0(%arg0: i32) -> (i32, i32) {
    %c0_i32 = arith.constant 0 : i32
    %c0_i32_0 = arith.constant 0 : i32
    return %arg0, %c0_i32 : i32, i32
  }
  func.func @transform_1(%arg0: i32) -> (i32, i32) {
    %c0_i32 = arith.constant 0 : i32
    %c0_i32_0 = arith.constant 0 : i32
    %c0_i32_1 = arith.constant 0 : i32
    return %c0_i32, %c0_i32_0 : i32, i32
  }
  func.func @transform_2(%arg0: i32) -> (i32, i32) {
    %c0_i32 = arith.constant 0 : i32
    %c0_i32_0 = arith.constant 0 : i32
    %c0_i32_1 = arith.constant 0 : i32
    return %c0_i32, %c0_i32_0 : i32, i32
  }
  func.func @transform_3(%arg0: i32) -> (i32, i32) {
    %c0_i32 = arith.constant 0 : i32
    %c0_i32_0 = arith.constant 0 : i32
    return %arg0, %c0_i32 : i32, i32
  }
}

module attributes {stable_mosaic.version = 11 : i64} {
  func.func @_mm_bias_act_kernel(%arg0: i32, %arg1: memref<32x128xbf16, #tpu.memory_space<vmem>>, %arg2: memref<128x128xbf16, #tpu.memory_space<vmem>>, %arg3: memref<1x128xf32, #tpu.memory_space<vmem>>, %arg4: memref<32x128xf32, #tpu.memory_space<vmem>>) attributes {dimension_semantics = [#tpu.dimension_semantics<parallel>], iteration_bounds = array<i64: 1>, scalar_prefetch = 0 : i64, scratch_operands = 0 : i64, tpu.core_type = #tpu.core_type<tc>, window_params = [{transform_indices = @transform_0, window_bounds = array<i64: 32, 128>}, {pipeline_mode = #tpu.pipeline_mode<synchronous>, transform_indices = @transform_1, window_bounds = array<i64: 128, 128>}, {pipeline_mode = #tpu.pipeline_mode<synchronous>, transform_indices = @transform_2, window_bounds = array<i64: 1, 128>}, {transform_indices = @transform_3, window_bounds = array<i64: 32, 128>}]} {
    %c0 = arith.constant 0 : index
    %c0_0 = arith.constant 0 : index
    %0 = vector.load %arg1[%c0, %c0_0] : memref<32x128xbf16, #tpu.memory_space<vmem>>, vector<32x128xbf16>
    %c0_1 = arith.constant 0 : index
    %c0_2 = arith.constant 0 : index
    %1 = vector.load %arg2[%c0_1, %c0_2] : memref<128x128xbf16, #tpu.memory_space<vmem>>, vector<128x128xbf16>
    %cst = arith.constant dense<0.000000e+00> : vector<32x128xf32>
    %2 = tpu.matmul %0, %1, %cst {dimension_numbers = #tpu.dot_dimension_numbers<[1], [0], [0], [1], [0, 0, 1, 1], [], []>} : vector<32x128xbf16>, vector<128x128xbf16>, vector<32x128xf32> -> vector<32x128xf32>
    %c0_3 = arith.constant 0 : index
    %c0_4 = arith.constant 0 : index
    %3 = vector.load %arg3[%c0_3, %c0_4] : memref<1x128xf32, #tpu.memory_space<vmem>>, vector<1x128xf32>
    %4 = vector.broadcast %3 : vector<1x128xf32> to vector<32x128xf32>
    %5 = arith.addf %2, %4 : vector<32x128xf32>
    %cst_5 = arith.constant 0.000000e+00 : f32
    %6 = vector.broadcast %cst_5 : f32 to vector<32x128xf32>
    %7 = arith.cmpf ogt, %5, %6 : vector<32x128xf32>
    %cst_6 = arith.constant 0.00999999977 : f32
    %8 = vector.broadcast %cst_6 : f32 to vector<32x128xf32>
    %9 = arith.mulf %8, %5 : vector<32x128xf32>
    %10 = arith.select %7, %5, %9 : vector<32x128xi1>, vector<32x128xf32>
    %c0_7 = arith.constant 0 : index
    %c0_8 = arith.constant 0 : index
    %11 = vector.load %arg4[%c0_7, %c0_8] : memref<32x128xf32, #tpu.memory_space<vmem>>, vector<32x128xf32>
    tpu.vector_store %arg4[%c0_7, %c0_8], %10 {strides = array<i32>} : memref<32x128xf32, #tpu.memory_space<vmem>>, vector<32x128xf32>,
    return
  }
  func.func @transform_0(%arg0: i32) -> (i32, i32) {
    %c0_i32 = arith.constant 0 : i32
    %c0_i32_0 = arith.constant 0 : i32
    return %arg0, %c0_i32 : i32, i32
  }
  func.func @transform_1(%arg0: i32) -> (i32, i32) {
    %c0_i32 = arith.constant 0 : i32
    %c0_i32_0 = arith.constant 0 : i32
    %c0_i32_1 = arith.constant 0 : i32
    return %c0_i32, %c0_i32_0 : i32, i32
  }
  func.func @transform_2(%arg0: i32) -> (i32, i32) {
    %c0_i32 = arith.constant 0 : i32
    %c0_i32_0 = arith.constant 0 : i32
    %c0_i32_1 = arith.constant 0 : i32
    return %c0_i32, %c0_i32_0 : i32, i32
  }
  func.func @transform_3(%arg0: i32) -> (i32, i32) {
    %c0_i32 = arith.constant 0 : i32
    %c0_i32_0 = arith.constant 0 : i32
    return %arg0, %c0_i32 : i32, i32
  }
}

module attributes {stable_mosaic.version = 11 : i64} {
  func.func @_fc_chain_kernel(%arg0: memref<2x256xbf16, #tpu.memory_space<vmem>>, %arg1: memref<256x1024xbf16, #tpu.memory_space<vmem>>, %arg2: memref<1x1024xf32, #tpu.memory_space<vmem>>, %arg3: memref<1024x128xbf16, #tpu.memory_space<vmem>>, %arg4: memref<1x128xf32, #tpu.memory_space<vmem>>, %arg5: memref<128x1024xbf16, #tpu.memory_space<vmem>>, %arg6: memref<1x1024xf32, #tpu.memory_space<vmem>>, %arg7: memref<1024x256xbf16, #tpu.memory_space<vmem>>, %arg8: memref<1x256xf32, #tpu.memory_space<vmem>>, %arg9: memref<2x128xf32, #tpu.memory_space<vmem>>, %arg10: memref<2x256xf32, #tpu.memory_space<vmem>>) attributes {dimension_semantics = [], scalar_prefetch = 0 : i64, scratch_operands = 0 : i64, tpu.core_type = #tpu.core_type<tc>} {
    %c0 = arith.constant 0 : index
    %c0_0 = arith.constant 0 : index
    %0 = vector.load %arg0[%c0, %c0_0] : memref<2x256xbf16, #tpu.memory_space<vmem>>, vector<2x256xbf16>
    %c0_1 = arith.constant 0 : index
    %c0_2 = arith.constant 0 : index
    %1 = vector.load %arg1[%c0_1, %c0_2] : memref<256x1024xbf16, #tpu.memory_space<vmem>>, vector<256x1024xbf16>
    %cst = arith.constant dense<0.000000e+00> : vector<2x1024xf32>
    %2 = tpu.matmul %0, %1, %cst {dimension_numbers = #tpu.dot_dimension_numbers<[1], [0], [0], [1], [0, 0, 1, 1], [], []>} : vector<2x256xbf16>, vector<256x1024xbf16>, vector<2x1024xf32> -> vector<2x1024xf32>
    %c0_3 = arith.constant 0 : index
    %c0_4 = arith.constant 0 : index
    %3 = vector.load %arg2[%c0_3, %c0_4] : memref<1x1024xf32, #tpu.memory_space<vmem>>, vector<1x1024xf32>
    %4 = vector.broadcast %3 : vector<1x1024xf32> to vector<2x1024xf32>
    %5 = arith.addf %2, %4 : vector<2x1024xf32>
    %cst_5 = arith.constant 0.000000e+00 : f32
    %6 = vector.broadcast %cst_5 : f32 to vector<2x1024xf32>
    %7 = arith.cmpf ogt, %5, %6 : vector<2x1024xf32>
    %cst_6 = arith.constant 0.00999999977 : f32
    %8 = vector.broadcast %cst_6 : f32 to vector<2x1024xf32>
    %9 = arith.mulf %8, %5 : vector<2x1024xf32>
    %10 = arith.select %7, %5, %9 : vector<2x1024xi1>, vector<2x1024xf32>
    %11 = arith.truncf %10 : vector<2x1024xf32> to vector<2x1024xbf16>
    %c0_7 = arith.constant 0 : index
    %c0_8 = arith.constant 0 : index
    %12 = vector.load %arg3[%c0_7, %c0_8] : memref<1024x128xbf16, #tpu.memory_space<vmem>>, vector<1024x128xbf16>
    %cst_9 = arith.constant dense<0.000000e+00> : vector<2x128xf32>
    %13 = tpu.matmul %11, %12, %cst_9 {dimension_numbers = #tpu.dot_dimension_numbers<[1], [0], [0], [1], [0, 0, 1, 1], [], []>} : vector<2x1024xbf16>, vector<1024x128xbf16>, vector<2x128xf32> -> vector<2x128xf32>
    %c0_10 = arith.constant 0 : index
    %c0_11 = arith.constant 0 : index
    %14 = vector.load %arg4[%c0_10, %c0_11] : memref<1x128xf32, #tpu.memory_space<vmem>>, vector<1x128xf32>
    %15 = vector.broadcast %14 : vector<1x128xf32> to vector<2x128xf32>
    %16 = arith.addf %13, %15 : vector<2x128xf32>
    %c0_12 = arith.constant 0 : index
    %c0_13 = arith.constant 0 : index
    %17 = vector.load %arg9[%c0_12, %c0_13] : memref<2x128xf32, #tpu.memory_space<vmem>>, vector<2x128xf32>
    tpu.vector_store %arg9[%c0_12, %c0_13], %16 {strides = array<i32>} : memref<2x128xf32, #tpu.memory_space<vmem>>, vector<2x128xf32>,
    %18 = arith.truncf %16 : vector<2x128xf32> to vector<2x128xbf16>
    %c0_14 = arith.constant 0 : index
    %c0_15 = arith.constant 0 : index
    %19 = vector.load %arg5[%c0_14, %c0_15] : memref<128x1024xbf16, #tpu.memory_space<vmem>>, vector<128x1024xbf16>
    %cst_16 = arith.constant dense<0.000000e+00> : vector<2x1024xf32>
    %20 = tpu.matmul %18, %19, %cst_16 {dimension_numbers = #tpu.dot_dimension_numbers<[1], [0], [0], [1], [0, 0, 1, 1], [], []>} : vector<2x128xbf16>, vector<128x1024xbf16>, vector<2x1024xf32> -> vector<2x1024xf32>
    %c0_17 = arith.constant 0 : index
    %c0_18 = arith.constant 0 : index
    %21 = vector.load %arg6[%c0_17, %c0_18] : memref<1x1024xf32, #tpu.memory_space<vmem>>, vector<1x1024xf32>
    %22 = vector.broadcast %21 : vector<1x1024xf32> to vector<2x1024xf32>
    %23 = arith.addf %20, %22 : vector<2x1024xf32>
    %cst_19 = arith.constant 0.000000e+00 : f32
    %24 = vector.broadcast %cst_19 : f32 to vector<2x1024xf32>
    %25 = arith.maximumf %23, %24 : vector<2x1024xf32>
    %26 = arith.truncf %25 : vector<2x1024xf32> to vector<2x1024xbf16>
    %c0_20 = arith.constant 0 : index
    %c0_21 = arith.constant 0 : index
    %27 = vector.load %arg7[%c0_20, %c0_21] : memref<1024x256xbf16, #tpu.memory_space<vmem>>, vector<1024x256xbf16>
    %cst_22 = arith.constant dense<0.000000e+00> : vector<2x256xf32>
    %28 = tpu.matmul %26, %27, %cst_22 {dimension_numbers = #tpu.dot_dimension_numbers<[1], [0], [0], [1], [0, 0, 1, 1], [], []>} : vector<2x1024xbf16>, vector<1024x256xbf16>, vector<2x256xf32> -> vector<2x256xf32>
    %c0_23 = arith.constant 0 : index
    %c0_24 = arith.constant 0 : index
    %29 = vector.load %arg8[%c0_23, %c0_24] : memref<1x256xf32, #tpu.memory_space<vmem>>, vector<1x256xf32>
    %30 = vector.broadcast %29 : vector<1x256xf32> to vector<2x256xf32>
    %31 = arith.addf %28, %30 : vector<2x256xf32>
    %cst_25 = arith.constant 0.000000e+00 : f32
    %32 = vector.broadcast %cst_25 : f32 to vector<2x256xf32>
    %33 = arith.maximumf %31, %32 : vector<2x256xf32>
    %c0_26 = arith.constant 0 : index
    %c0_27 = arith.constant 0 : index
    %34 = vector.load %arg10[%c0_26, %c0_27] : memref<2x256xf32, #tpu.memory_space<vmem>>, vector<2x256xf32>
    tpu.vector_store %arg10[%c0_26, %c0_27], %33 {strides = array<i32>} : memref<2x256xf32, #tpu.memory_space<vmem>>, vector<2x256xf32>,
    return
  }
}

module attributes {stable_mosaic.version = 11 : i64} {
  func.func @_mm_bias_act_kernel(%arg0: i32, %arg1: memref<56x64xbf16, #tpu.memory_space<vmem>>, %arg2: memref<64x128xbf16, #tpu.memory_space<vmem>>, %arg3: memref<1x128xf32, #tpu.memory_space<vmem>>, %arg4: memref<56x128xf32, #tpu.memory_space<vmem>>) attributes {dimension_semantics = [#tpu.dimension_semantics<parallel>], iteration_bounds = array<i64: 1>, scalar_prefetch = 0 : i64, scratch_operands = 0 : i64, tpu.core_type = #tpu.core_type<tc>, window_params = [{transform_indices = @transform_0, window_bounds = array<i64: 56, 64>}, {pipeline_mode = #tpu.pipeline_mode<synchronous>, transform_indices = @transform_1, window_bounds = array<i64: 64, 128>}, {pipeline_mode = #tpu.pipeline_mode<synchronous>, transform_indices = @transform_2, window_bounds = array<i64: 1, 128>}, {transform_indices = @transform_3, window_bounds = array<i64: 56, 128>}]} {
    %c0 = arith.constant 0 : index
    %c0_0 = arith.constant 0 : index
    %0 = vector.load %arg1[%c0, %c0_0] : memref<56x64xbf16, #tpu.memory_space<vmem>>, vector<56x64xbf16>
    %c0_1 = arith.constant 0 : index
    %c0_2 = arith.constant 0 : index
    %1 = vector.load %arg2[%c0_1, %c0_2] : memref<64x128xbf16, #tpu.memory_space<vmem>>, vector<64x128xbf16>
    %cst = arith.constant dense<0.000000e+00> : vector<56x128xf32>
    %2 = tpu.matmul %0, %1, %cst {dimension_numbers = #tpu.dot_dimension_numbers<[1], [0], [0], [1], [0, 0, 1, 1], [], []>} : vector<56x64xbf16>, vector<64x128xbf16>, vector<56x128xf32> -> vector<56x128xf32>
    %c0_3 = arith.constant 0 : index
    %c0_4 = arith.constant 0 : index
    %3 = vector.load %arg3[%c0_3, %c0_4] : memref<1x128xf32, #tpu.memory_space<vmem>>, vector<1x128xf32>
    %4 = vector.broadcast %3 : vector<1x128xf32> to vector<56x128xf32>
    %5 = arith.addf %2, %4 : vector<56x128xf32>
    %cst_5 = arith.constant 0.000000e+00 : f32
    %6 = vector.broadcast %cst_5 : f32 to vector<56x128xf32>
    %7 = arith.maximumf %5, %6 : vector<56x128xf32>
    %c0_6 = arith.constant 0 : index
    %c0_7 = arith.constant 0 : index
    %8 = vector.load %arg4[%c0_6, %c0_7] : memref<56x128xf32, #tpu.memory_space<vmem>>, vector<56x128xf32>
    tpu.vector_store %arg4[%c0_6, %c0_7], %7 {strides = array<i32>} : memref<56x128xf32, #tpu.memory_space<vmem>>, vector<56x128xf32>,
    return
  }
  func.func @transform_0(%arg0: i32) -> (i32, i32) {
    %c0_i32 = arith.constant 0 : i32
    %c0_i32_0 = arith.constant 0 : i32
    return %arg0, %c0_i32 : i32, i32
  }
  func.func @transform_1(%arg0: i32) -> (i32, i32) {
    %c0_i32 = arith.constant 0 : i32
    %c0_i32_0 = arith.constant 0 : i32
    %c0_i32_1 = arith.constant 0 : i32
    return %c0_i32, %c0_i32_0 : i32, i32
  }
  func.func @transform_2(%arg0: i32) -> (i32, i32) {
    %c0_i32 = arith.constant 0 : i32
    %c0_i32_0 = arith.constant 0 : i32
    %c0_i32_1 = arith.constant 0 : i32
    return %c0_i32, %c0_i32_0 : i32, i32
  }
  func.func @transform_3(%arg0: i32) -> (i32, i32) {
    %c0_i32 = arith.constant 0 : i32
    %c0_i32_0 = arith.constant 0 : i32
    return %arg0, %c0_i32 : i32, i32
  }
}

module attributes {stable_mosaic.version = 11 : i64} {
  func.func @_mm_bias_act_kernel(%arg0: i32, %arg1: memref<168x32xbf16, #tpu.memory_space<vmem>>, %arg2: memref<32x128xbf16, #tpu.memory_space<vmem>>, %arg3: memref<1x128xf32, #tpu.memory_space<vmem>>, %arg4: memref<168x128xf32, #tpu.memory_space<vmem>>) attributes {dimension_semantics = [#tpu.dimension_semantics<parallel>], iteration_bounds = array<i64: 1>, scalar_prefetch = 0 : i64, scratch_operands = 0 : i64, tpu.core_type = #tpu.core_type<tc>, window_params = [{transform_indices = @transform_0, window_bounds = array<i64: 168, 32>}, {pipeline_mode = #tpu.pipeline_mode<synchronous>, transform_indices = @transform_1, window_bounds = array<i64: 32, 128>}, {pipeline_mode = #tpu.pipeline_mode<synchronous>, transform_indices = @transform_2, window_bounds = array<i64: 1, 128>}, {transform_indices = @transform_3, window_bounds = array<i64: 168, 128>}]} {
    %c0 = arith.constant 0 : index
    %c0_0 = arith.constant 0 : index
    %0 = vector.load %arg1[%c0, %c0_0] : memref<168x32xbf16, #tpu.memory_space<vmem>>, vector<168x32xbf16>
    %c0_1 = arith.constant 0 : index
    %c0_2 = arith.constant 0 : index
    %1 = vector.load %arg2[%c0_1, %c0_2] : memref<32x128xbf16, #tpu.memory_space<vmem>>, vector<32x128xbf16>
    %cst = arith.constant dense<0.000000e+00> : vector<168x128xf32>
    %2 = tpu.matmul %0, %1, %cst {dimension_numbers = #tpu.dot_dimension_numbers<[1], [0], [0], [1], [0, 0, 1, 1], [], []>} : vector<168x32xbf16>, vector<32x128xbf16>, vector<168x128xf32> -> vector<168x128xf32>
    %c0_3 = arith.constant 0 : index
    %c0_4 = arith.constant 0 : index
    %3 = vector.load %arg3[%c0_3, %c0_4] : memref<1x128xf32, #tpu.memory_space<vmem>>, vector<1x128xf32>
    %4 = vector.broadcast %3 : vector<1x128xf32> to vector<168x128xf32>
    %5 = arith.addf %2, %4 : vector<168x128xf32>
    %cst_5 = arith.constant 0.000000e+00 : f32
    %6 = vector.broadcast %cst_5 : f32 to vector<168x128xf32>
    %7 = arith.subf %6, %5 : vector<168x128xf32>
    %8 = math.exp %7 : vector<168x128xf32>
    %cst_6 = arith.constant 1.000000e+00 : f32
    %9 = vector.broadcast %cst_6 : f32 to vector<168x128xf32>
    %10 = arith.addf %9, %8 : vector<168x128xf32>
    %cst_7 = arith.constant 1.000000e+00 : f32
    %11 = vector.broadcast %cst_7 : f32 to vector<168x128xf32>
    %12 = arith.divf %11, %10 : vector<168x128xf32>
    %c0_8 = arith.constant 0 : index
    %c0_9 = arith.constant 0 : index
    %13 = vector.load %arg4[%c0_8, %c0_9] : memref<168x128xf32, #tpu.memory_space<vmem>>, vector<168x128xf32>
    tpu.vector_store %arg4[%c0_8, %c0_9], %12 {strides = array<i32>} : memref<168x128xf32, #tpu.memory_space<vmem>>, vector<168x128xf32>,
    return
  }
  func.func @transform_0(%arg0: i32) -> (i32, i32) {
    %c0_i32 = arith.constant 0 : i32
    %c0_i32_0 = arith.constant 0 : i32
    return %arg0, %c0_i32 : i32, i32
  }
  func.func @transform_1(%arg0: i32) -> (i32, i32) {
    %c0_i32 = arith.constant 0 : i32
    %c0_i32_0 = arith.constant 0 : i32
    %c0_i32_1 = arith.constant 0 : i32
    return %c0_i32, %c0_i32_0 : i32, i32
  }
  func.func @transform_2(%arg0: i32) -> (i32, i32) {
    %c0_i32 = arith.constant 0 : i32
    %c0_i32_0 = arith.constant 0 : i32
    %c0_i32_1 = arith.constant 0 : i32
    return %c0_i32, %c0_i32_0 : i32, i32
  }
  func.func @transform_3(%arg0: i32) -> (i32, i32) {
    %c0_i32 = arith.constant 0 : i32
    %c0_i32_0 = arith.constant 0 : i32
    return %arg0, %c0_i32 : i32, i32
  }
}

</mosaic_0001>

<llo_original>
// kernel: model_forward.5
$region0: #{model_forward.5}
  #allocation0 [shape = 'u32[]', space=smem, size = 0x4, offset = 0x4, fixed_abs, tag = 'smem constant byte address 0x4 - core index']
  #allocation1 [shape = 'u32[144,128]{1,0:T(1,128)}', space=vmem, size = 0x12000, scoped, tag = 'internal scratch']
  %s0 = inlined_call_operand.vmem [shape: bf16[128,48], index: 0, kind: input, shape index: {}]
  %s1 = inlined_call_operand.vmem [shape: bf16[48,128], index: 1, kind: input, shape index: {}]
  %s2 = inlined_call_operand.vmem [shape: f32[1,128], index: 2, kind: input, shape index: {}]
  %s3 = inlined_call_operand.vmem [shape: f32[128,128], index: 3, kind: output, shape index: {}]
  %s4 = sld [smem:[#allocation0]]
  $region22: #{model_forward.5} parent=0
    _
  %s6 = ssub.s32 1, %s4
  %s7 = scalar_select 0, %s6, %s4
  // Predicated region
  $region2: #{model_forward.5} parent=0 // pred_check
    _
  $region3: #{model_forward.5} parent=0 // pred_check_branch
    %9 = sbr.rel (0) target = $region5
  $region4: #{model_forward.5} parent=0 // pred_region
    _
  $region5: #{model_forward.5} parent=0 // pred_fallthru
    _
  // Predicated region
  $region6: #{model_forward.5} parent=0 // pred_check
    _
  $region7: #{model_forward.5} parent=0 // pred_check_branch
    %11 = sbr.rel (0) target = $region9
  $region8: #{model_forward.5} parent=0 // pred_region
    _
  $region9: #{model_forward.5} parent=0 // pred_fallthru
    _
  // Predicated region
  $region10: #{model_forward.5} parent=0 // pred_check
    _
  $region11: #{model_forward.5} parent=0 // pred_check_branch
    %13 = sbr.rel (0) target = $region13
  $region12: #{model_forward.5} parent=0 // pred_region
    _
  $region13: #{model_forward.5} parent=0 // pred_fallthru
    _
  %v15 = vld [vmem:[%s0] sm:$0xf]
  %v16 = vld [vmem:[%s0 + $0x4] sm:$0xf]
  %v17 = vld [vmem:[%s0 + $0x8] sm:$0xf]
  %v18 = vld [vmem:[%s0 + $0xc] sm:$0xf]
  %v19 = vld [vmem:[%s0 + $0x10] sm:$0xf]
  %v20 = vld [vmem:[%s0 + $0x14] sm:$0xf]
  %v21 = vld [vmem:[%s0 + $0x18] sm:$0xf]
  %v22 = vld [vmem:[%s0 + $0x1c] sm:$0xf]
  %v23 = vld [vmem:[%s0 + $0x20] sm:$0xf]
  %v24 = vld [vmem:[%s0 + $0x24] sm:$0xf]
  %v25 = vld [vmem:[%s0 + $0x28] sm:$0xf]
  %v26 = vld [vmem:[%s0 + $0x2c] sm:$0xf]
  %v27 = vld [vmem:[%s0 + $0x30] sm:$0xf]
  %v28 = vld [vmem:[%s0 + $0x34] sm:$0xf]
  %v29 = vld [vmem:[%s0 + $0x38] sm:$0xf]
  %v30 = vld [vmem:[%s0 + $0x3c] sm:$0xf]
  %v31 = vld [vmem:[%s1] sm:$0xf]
  %v32 = vld [vmem:[%s1 + $0x4] sm:$0xf]
  %v33 = vld [vmem:[%s1 + $0x8] sm:$0xf]
  %v34 = vld [vmem:[%s1 + $0xc] sm:$0xf]
  %v35 = vld [vmem:[%s1 + $0x10] sm:$0xf]
  %v36 = vld [vmem:[%s1 + $0x14] sm:$0xf]
  %v37 = vld [vmem:[%s2] sm:$0x1]
  %v39 = vlaneseq
  %v40 = vshrl.u32 %v39, 7
  %v41 = vsub.s32 0, %v40
  %v42 = vrot.slane %v37, %v41
  %v60 = vunpack.c.l.b16 %v15
  %v61 = vunpack.c.l.b16 %v16
  %v62 = vunpack.c.l.b16 %v17
  %v63 = vunpack.c.l.b16 %v18
  %v64 = vunpack.c.l.b16 %v19
  %v65 = vunpack.c.l.b16 %v20
  %v66 = vunpack.c.l.b16 %v21
  %v67 = vunpack.c.l.b16 %v22
  %v68 = vunpack.c.l.b16 %v23
  %v69 = vunpack.c.l.b16 %v24
  %v70 = vunpack.c.l.b16 %v25
  %v71 = vunpack.c.l.b16 %v26
  %v72 = vunpack.c.l.b16 %v27
  %v73 = vunpack.c.l.b16 %v28
  %v74 = vunpack.c.l.b16 %v29
  %v75 = vunpack.c.l.b16 %v30
  %v76 = vpack.c.b16 %v61, %v60
  %v77 = vpack.c.b16 %v63, %v62
  %v78 = vpack.c.b16 %v65, %v64
  %v79 = vpack.c.b16 %v67, %v66
  %v80 = vpack.c.b16 %v69, %v68
  %v81 = vpack.c.b16 %v71, %v70
  %v82 = vpack.c.b16 %v73, %v72
  %v83 = vpack.c.b16 %v75, %v74
  %v90 = vunpack.c.l.b16 %v31
  %v91 = vunpack.c.l.b16 %v32
  %v92 = vunpack.c.l.b16 %v33
  %v93 = vunpack.c.l.b16 %v34
  %v94 = vunpack.c.l.b16 %v35
  %v95 = vunpack.c.l.b16 %v36
  %v96 = vpack.c.b16 %v91, %v90
  %v97 = vpack.c.b16 %v93, %v92
  %v98 = vpack.c.b16 %v95, %v94
  %vm102 = vcmask 392192
  %v104 = vsel %vm102, %v76, 0
  %v107 = vsel %vm102, %v77, 0
  %v110 = vsel %vm102, %v78, 0
  %v113 = vsel %vm102, %v79, 0
  %v116 = vsel %vm102, %v80, 0
  %v119 = vsel %vm102, %v81, 0
  %v122 = vsel %vm102, %v82, 0
  %v125 = vsel %vm102, %v83, 0
  %127 = vmatprep.subr.bf16.mxu0 0
  %128 = vmatpush1.bf16.msra.mxu0 %v96
  %129 = vmatprep.subr.bf16.mxu0 0
  %130 = vmatpush1.bf16.msra.mxu0 %v97
  %131 = vmatprep.subr.bf16.mxu0 0
  %132 = vmatpush1.bf16.msra.mxu0 %v98
  %133 = vmatprep.subr.bf16.mxu0 0
  %134 = vmatpush1.bf16.msra.mxu0 0
  %135 = vmatprep.subr.bf16.mxu0 0
  %136 = vmatpush1.bf16.msra.mxu0 0
  %137 = vmatprep.subr.bf16.mxu0 0
  %138 = vmatpush1.bf16.msra.mxu0 0
  %139 = vmatprep.subr.bf16.mxu0 0
  %140 = vmatpush1.bf16.msra.mxu0 0
  %141 = vmatprep.subr.bf16.mxu0 0
  %142 = vmatpush1.bf16.msra.mxu0 0
  %143 = vmatprep.subr.bf16.mxu0 0
  %144 = vmatpush1.bf16.msra.mxu0 0
  %145 = vmatprep.subr.bf16.mxu0 0
  %146 = vmatpush1.bf16.msra.mxu0 0
  %147 = vmatprep.subr.bf16.mxu0 0
  %148 = vmatpush1.bf16.msra.mxu0 0
  %149 = vmatprep.subr.bf16.mxu0 0
  %150 = vmatpush1.bf16.msra.mxu0 0
  %151 = vmatprep.subr.bf16.mxu0 0
  %152 = vmatpush1.bf16.msra.mxu0 0
  %153 = vmatprep.subr.bf16.mxu0 0
  %154 = vmatpush1.bf16.msra.mxu0 0
  %155 = vmatprep.subr.bf16.mxu0 0
  %156 = vmatpush1.bf16.msra.mxu0 0
  %157 = vmatprep.subr.bf16.mxu0 0
  %158 = vmatpush1.bf16.msra.mxu0 0
  %159 = vmatprep.mubr.bf16.mxu0 0
  %160 = vmatmul.mubr.bf16.gmra.mrb[0].mxu0 %v104
  %v161 = vpop.f32.mrb[0].mxu0
  %v162 = vadd.f32 %v42, %v161
  %v163 = vpop.f32.mrb[0].mxu0
  %v164 = vpop.f32.mrb[0].mxu0
  %v165 = vadd.f32 %v42, %v164
  %v166 = vpop.f32.mrb[0].mxu0
  %167 = vmatprep.mubr.bf16.mxu0 0
  %168 = vmatmul.mubr.bf16.gmra.mrb[0].mxu0 %v107
  %v169 = vpop.f32.mrb[0].mxu0
  %v170 = vadd.f32 %v42, %v169
  %v171 = vpop.f32.mrb[0].mxu0
  %v172 = vpop.f32.mrb[0].mxu0
  %v173 = vadd.f32 %v42, %v172
  %v174 = vpop.f32.mrb[0].mxu0
  %175 = vmatprep.mubr.bf16.mxu0 0
  %176 = vmatmul.mubr.bf16.gmra.mrb[0].mxu0 %v110
  %v177 = vpop.f32.mrb[0].mxu0
  %v178 = vadd.f32 %v42, %v177
  %v179 = vpop.f32.mrb[0].mxu0
  %v180 = vpop.f32.mrb[0].mxu0
  %v181 = vadd.f32 %v42, %v180
  %v182 = vpop.f32.mrb[0].mxu0
  %183 = vmatprep.mubr.bf16.mxu0 0
  %184 = vmatmul.mubr.bf16.gmra.mrb[0].mxu0 %v113
  %v185 = vpop.f32.mrb[0].mxu0
  %v186 = vadd.f32 %v42, %v185
  %v187 = vpop.f32.mrb[0].mxu0
  %v188 = vpop.f32.mrb[0].mxu0
  %v189 = vadd.f32 %v42, %v188
  %v190 = vpop.f32.mrb[0].mxu0
  %191 = vmatprep.mubr.bf16.mxu0 0
  %192 = vmatmul.mubr.bf16.gmra.mrb[0].mxu0 %v116
  %v193 = vpop.f32.mrb[0].mxu0
  %v194 = vadd.f32 %v42, %v193
  %v195 = vpop.f32.mrb[0].mxu0
  %v196 = vpop.f32.mrb[0].mxu0
  %v197 = vadd.f32 %v42, %v196
  %v198 = vpop.f32.mrb[0].mxu0
  %199 = vmatprep.mubr.bf16.mxu0 0
  %200 = vmatmul.mubr.bf16.gmra.mrb[0].mxu0 %v119
  %v201 = vpop.f32.mrb[0].mxu0
  %v202 = vadd.f32 %v42, %v201
  %v203 = vpop.f32.mrb[0].mxu0
  %v204 = vpop.f32.mrb[0].mxu0
  %v205 = vadd.f32 %v42, %v204
  %v206 = vpop.f32.mrb[0].mxu0
  %207 = vmatprep.mubr.bf16.mxu0 0
  %208 = vmatmul.mubr.bf16.gmra.mrb[0].mxu0 %v122
  %v209 = vpop.f32.mrb[0].mxu0
  %v210 = vadd.f32 %v42, %v209
  %v211 = vpop.f32.mrb[0].mxu0
  %v212 = vpop.f32.mrb[0].mxu0
  %v213 = vadd.f32 %v42, %v212
  %v214 = vpop.f32.mrb[0].mxu0
  %215 = vmatprep.mubr.bf16.mxu0 0
  %216 = vmatmul.mubr.bf16.gmra.mrb[0].mxu0 %v125
  %v217 = vpop.f32.mrb[0].mxu0
  %v218 = vadd.f32 %v42, %v217
  %v219 = vpop.f32.mrb[0].mxu0
  %v220 = vpop.f32.mrb[0].mxu0
  %v221 = vadd.f32 %v42, %v220
  %v222 = vpop.f32.mrb[0].mxu0
  %223 = vdwg.mxu0
  %vm224 = vcmp.gt.f32.partialorder %v162, 0.0
  %vm225 = vcmp.gt.f32.partialorder %v165, 0.0
  %vm226 = vcmp.gt.f32.partialorder %v170, 0.0
  %vm227 = vcmp.gt.f32.partialorder %v173, 0.0
  %vm228 = vcmp.gt.f32.partialorder %v178, 0.0
  %vm229 = vcmp.gt.f32.partialorder %v181, 0.0
  %vm230 = vcmp.gt.f32.partialorder %v186, 0.0
  %vm231 = vcmp.gt.f32.partialorder %v189, 0.0
  %vm232 = vcmp.gt.f32.partialorder %v194, 0.0
  %vm233 = vcmp.gt.f32.partialorder %v197, 0.0
  %vm234 = vcmp.gt.f32.partialorder %v202, 0.0
  %vm235 = vcmp.gt.f32.partialorder %v205, 0.0
  %vm236 = vcmp.gt.f32.partialorder %v210, 0.0
  %vm237 = vcmp.gt.f32.partialorder %v213, 0.0
  %vm238 = vcmp.gt.f32.partialorder %v218, 0.0
  %vm239 = vcmp.gt.f32.partialorder %v221, 0.0
  %v240 = vmul.f32 %v162, 0.01
  %v241 = vmul.f32 %v165, 0.01
  %v242 = vmul.f32 %v170, 0.01
  %v243 = vmul.f32 %v173, 0.01
  %v244 = vmul.f32 %v178, 0.01
  %v245 = vmul.f32 %v181, 0.01
  %v246 = vmul.f32 %v186, 0.01
  %v247 = vmul.f32 %v189, 0.01
  %v248 = vmul.f32 %v194, 0.01
  %v249 = vmul.f32 %v197, 0.01
  %v250 = vmul.f32 %v202, 0.01
  %v251 = vmul.f32 %v205, 0.01
  %v252 = vmul.f32 %v210, 0.01
  %v253 = vmul.f32 %v213, 0.01
  %v254 = vmul.f32 %v218, 0.01
  %v255 = vmul.f32 %v221, 0.01
  %v256 = vsel %vm224, %v162, %v240
  %v257 = vsel %vm225, %v165, %v241
  %v258 = vsel %vm226, %v170, %v242
  %v259 = vsel %vm227, %v173, %v243
  %v260 = vsel %vm228, %v178, %v244
  %v261 = vsel %vm229, %v181, %v245
  %v262 = vsel %vm230, %v186, %v246
  %v263 = vsel %vm231, %v189, %v247
  %v264 = vsel %vm232, %v194, %v248
  %v265 = vsel %vm233, %v197, %v249
  %v266 = vsel %vm234, %v202, %v250
  %v267 = vsel %vm235, %v205, %v251
  %v268 = vsel %vm236, %v210, %v252
  %v269 = vsel %vm237, %v213, %v253
  %v270 = vsel %vm238, %v218, %v254
  %v271 = vsel %vm239, %v221, %v255
  %272 = vst [vmem:[%s3] sm:$0xff] %v256
  %273 = vst [vmem:[%s3 + $0x8] sm:$0xff] %v257
  %274 = vst [vmem:[%s3 + $0x10] sm:$0xff] %v258
  %275 = vst [vmem:[%s3 + $0x18] sm:$0xff] %v259
  %276 = vst [vmem:[%s3 + $0x20] sm:$0xff] %v260
  %277 = vst [vmem:[%s3 + $0x28] sm:$0xff] %v261
  %278 = vst [vmem:[%s3 + $0x30] sm:$0xff] %v262
  %279 = vst [vmem:[%s3 + $0x38] sm:$0xff] %v263
  %280 = vst [vmem:[%s3 + $0x40] sm:$0xff] %v264
  %281 = vst [vmem:[%s3 + $0x48] sm:$0xff] %v265
  %282 = vst [vmem:[%s3 + $0x50] sm:$0xff] %v266
  %283 = vst [vmem:[%s3 + $0x58] sm:$0xff] %v267
  %284 = vst [vmem:[%s3 + $0x60] sm:$0xff] %v268
  %285 = vst [vmem:[%s3 + $0x68] sm:$0xff] %v269
  %286 = vst [vmem:[%s3 + $0x70] sm:$0xff] %v270
  %287 = vst [vmem:[%s3 + $0x78] sm:$0xff] %v271
  // Predicated region
  $region14: #{model_forward.5} parent=0 // pred_check
    _
  $region15: #{model_forward.5} parent=0 // pred_check_branch
    %289 = sbr.rel (0) target = $region17
  $region16: #{model_forward.5} parent=0 // pred_region
    _
  $region17: #{model_forward.5} parent=0 // pred_fallthru
    _
  // Predicated region
  $region18: #{model_forward.5} parent=0 // pred_check
    _
  $region19: #{model_forward.5} parent=0 // pred_check_branch
    %291 = sbr.rel (0) target = $region21
  $region20: #{model_forward.5} parent=0 // pred_region
    _
  $region21: #{model_forward.5} parent=0 // pred_fallthru
    _

// kernel: model_forward.6
$region0: #{model_forward.6}
  #allocation0 [shape = 'u32[]', space=smem, size = 0x4, offset = 0x4, fixed_abs, tag = 'smem constant byte address 0x4 - core index']
  #allocation1 [shape = 'u32[144,128]{1,0:T(1,128)}', space=vmem, size = 0x12000, scoped, tag = 'internal scratch']
  %s0 = inlined_call_operand.vmem [shape: bf16[32,128], index: 0, kind: input, shape index: {}]
  %s1 = inlined_call_operand.vmem [shape: bf16[128,128], index: 1, kind: input, shape index: {}]
  %s2 = inlined_call_operand.vmem [shape: f32[1,128], index: 2, kind: input, shape index: {}]
  %s3 = inlined_call_operand.vmem [shape: f32[32,128], index: 3, kind: output, shape index: {}]
  %s4 = sld [smem:[#allocation0]]
  $region22: #{model_forward.6} parent=0
    _
  %s6 = ssub.s32 1, %s4
  %s7 = scalar_select 0, %s6, %s4
  // Predicated region
  $region2: #{model_forward.6} parent=0 // pred_check
    _
  $region3: #{model_forward.6} parent=0 // pred_check_branch
    %9 = sbr.rel (0) target = $region5
  $region4: #{model_forward.6} parent=0 // pred_region
    _
  $region5: #{model_forward.6} parent=0 // pred_fallthru
    _
  // Predicated region
  $region6: #{model_forward.6} parent=0 // pred_check
    _
  $region7: #{model_forward.6} parent=0 // pred_check_branch
    %11 = sbr.rel (0) target = $region9
  $region8: #{model_forward.6} parent=0 // pred_region
    _
  $region9: #{model_forward.6} parent=0 // pred_fallthru
    _
  // Predicated region
  $region10: #{model_forward.6} parent=0 // pred_check
    _
  $region11: #{model_forward.6} parent=0 // pred_check_branch
    %13 = sbr.rel (0) target = $region13
  $region12: #{model_forward.6} parent=0 // pred_region
    _
  $region13: #{model_forward.6} parent=0 // pred_fallthru
    _
  %v15 = vld [vmem:[%s0] sm:$0xf]
  %v16 = vld [vmem:[%s0 + $0x4] sm:$0xf]
  %v17 = vld [vmem:[%s0 + $0x8] sm:$0xf]
  %v18 = vld [vmem:[%s0 + $0xc] sm:$0xf]
  %v19 = vld [vmem:[%s1] sm:$0xf]
  %v20 = vld [vmem:[%s1 + $0x4] sm:$0xf]
  %v21 = vld [vmem:[%s1 + $0x8] sm:$0xf]
  %v22 = vld [vmem:[%s1 + $0xc] sm:$0xf]
  %v23 = vld [vmem:[%s1 + $0x10] sm:$0xf]
  %v24 = vld [vmem:[%s1 + $0x14] sm:$0xf]
  %v25 = vld [vmem:[%s1 + $0x18] sm:$0xf]
  %v26 = vld [vmem:[%s1 + $0x1c] sm:$0xf]
  %v27 = vld [vmem:[%s1 + $0x20] sm:$0xf]
  %v28 = vld [vmem:[%s1 + $0x24] sm:$0xf]
  %v29 = vld [vmem:[%s1 + $0x28] sm:$0xf]
  %v30 = vld [vmem:[%s1 + $0x2c] sm:$0xf]
  %v31 = vld [vmem:[%s1 + $0x30] sm:$0xf]
  %v32 = vld [vmem:[%s1 + $0x34] sm:$0xf]
  %v33 = vld [vmem:[%s1 + $0x38] sm:$0xf]
  %v34 = vld [vmem:[%s1 + $0x3c] sm:$0xf]
  %v35 = vld [vmem:[%s2] sm:$0x1]
  %v37 = vlaneseq
  %v38 = vshrl.u32 %v37, 7
  %v39 = vsub.s32 0, %v38
  %v40 = vrot.slane %v35, %v39
  %v46 = vunpack.c.l.b16 %v15
  %v47 = vunpack.c.l.b16 %v16
  %v48 = vunpack.c.l.b16 %v17
  %v49 = vunpack.c.l.b16 %v18
  %v50 = vpack.c.b16 %v47, %v46
  %v51 = vpack.c.b16 %v49, %v48
  %v70 = vunpack.c.l.b16 %v19
  %v71 = vunpack.c.l.b16 %v20
  %v72 = vunpack.c.l.b16 %v21
  %v73 = vunpack.c.l.b16 %v22
  %v74 = vunpack.c.l.b16 %v23
  %v75 = vunpack.c.l.b16 %v24
  %v76 = vunpack.c.l.b16 %v25
  %v77 = vunpack.c.l.b16 %v26
  %v78 = vunpack.c.l.b16 %v27
  %v79 = vunpack.c.l.b16 %v28
  %v80 = vunpack.c.l.b16 %v29
  %v81 = vunpack.c.l.b16 %v30
  %v82 = vunpack.c.l.b16 %v31
  %v83 = vunpack.c.l.b16 %v32
  %v84 = vunpack.c.l.b16 %v33
  %v85 = vunpack.c.l.b16 %v34
  %v86 = vpack.c.b16 %v71, %v70
  %v87 = vpack.c.b16 %v73, %v72
  %v88 = vpack.c.b16 %v75, %v74
  %v89 = vpack.c.b16 %v77, %v76
  %v90 = vpack.c.b16 %v79, %v78
  %v91 = vpack.c.b16 %v81, %v80
  %v92 = vpack.c.b16 %v83, %v82
  %v93 = vpack.c.b16 %v85, %v84
  %102 = vmatprep.subr.bf16.mxu0 0
  %103 = vmatpush1.bf16.msra.mxu0 %v86
  %104 = vmatprep.subr.bf16.mxu0 0
  %105 = vmatpush1.bf16.msra.mxu0 %v87
  %106 = vmatprep.subr.bf16.mxu0 0
  %107 = vmatpush1.bf16.msra.mxu0 %v88
  %108 = vmatprep.subr.bf16.mxu0 0
  %109 = vmatpush1.bf16.msra.mxu0 %v89
  %110 = vmatprep.subr.bf16.mxu0 0
  %111 = vmatpush1.bf16.msra.mxu0 %v90
  %112 = vmatprep.subr.bf16.mxu0 0
  %113 = vmatpush1.bf16.msra.mxu0 %v91
  %114 = vmatprep.subr.bf16.mxu0 0
  %115 = vmatpush1.bf16.msra.mxu0 %v92
  %116 = vmatprep.subr.bf16.mxu0 0
  %117 = vmatpush1.bf16.msra.mxu0 %v93
  %118 = vmatprep.subr.bf16.mxu0 0
  %119 = vmatpush1.bf16.msra.mxu0 0
  %120 = vmatprep.subr.bf16.mxu0 0
  %121 = vmatpush1.bf16.msra.mxu0 0
  %122 = vmatprep.subr.bf16.mxu0 0
  %123 = vmatpush1.bf16.msra.mxu0 0
  %124 = vmatprep.subr.bf16.mxu0 0
  %125 = vmatpush1.bf16.msra.mxu0 0
  %126 = vmatprep.subr.bf16.mxu0 0
  %127 = vmatpush1.bf16.msra.mxu0 0
  %128 = vmatprep.subr.bf16.mxu0 0
  %129 = vmatpush1.bf16.msra.mxu0 0
  %130 = vmatprep.subr.bf16.mxu0 0
  %131 = vmatpush1.bf16.msra.mxu0 0
  %132 = vmatprep.subr.bf16.mxu0 0
  %133 = vmatpush1.bf16.msra.mxu0 0
  %134 = vmatprep.mubr.bf16.mxu0 0
  %135 = vmatmul.mubr.bf16.gmra.mrb[0].mxu0 %v50
  %v136 = vpop.f32.mrb[0].mxu0
  %v137 = vadd.f32 %v40, %v136
  %v138 = vpop.f32.mrb[0].mxu0
  %v139 = vpop.f32.mrb[0].mxu0
  %v140 = vadd.f32 %v40, %v139
  %v141 = vpop.f32.mrb[0].mxu0
  %142 = vmatprep.mubr.bf16.mxu0 0
  %143 = vmatmul.mubr.bf16.gmra.mrb[0].mxu0 %v51
  %v144 = vpop.f32.mrb[0].mxu0
  %v145 = vadd.f32 %v40, %v144
  %v146 = vpop.f32.mrb[0].mxu0
  %v147 = vpop.f32.mrb[0].mxu0
  %v148 = vadd.f32 %v40, %v147
  %v149 = vpop.f32.mrb[0].mxu0
  %150 = vdwg.mxu0
  %vm151 = vcmp.gt.f32.partialorder %v137, 0.0
  %vm152 = vcmp.gt.f32.partialorder %v140, 0.0
  %vm153 = vcmp.gt.f32.partialorder %v145, 0.0
  %vm154 = vcmp.gt.f32.partialorder %v148, 0.0
  %v155 = vmul.f32 %v137, 0.01
  %v156 = vmul.f32 %v140, 0.01
  %v157 = vmul.f32 %v145, 0.01
  %v158 = vmul.f32 %v148, 0.01
  %v159 = vsel %vm151, %v137, %v155
  %v160 = vsel %vm152, %v140, %v156
  %v161 = vsel %vm153, %v145, %v157
  %v162 = vsel %vm154, %v148, %v158
  %163 = vst [vmem:[%s3] sm:$0xff] %v159
  %164 = vst [vmem:[%s3 + $0x8] sm:$0xff] %v160
  %165 = vst [vmem:[%s3 + $0x10] sm:$0xff] %v161
  %166 = vst [vmem:[%s3 + $0x18] sm:$0xff] %v162
  // Predicated region
  $region14: #{model_forward.6} parent=0 // pred_check
    _
  $region15: #{model_forward.6} parent=0 // pred_check_branch
    %168 = sbr.rel (0) target = $region17
  $region16: #{model_forward.6} parent=0 // pred_region
    _
  $region17: #{model_forward.6} parent=0 // pred_fallthru
    _
  // Predicated region
  $region18: #{model_forward.6} parent=0 // pred_check
    _
  $region19: #{model_forward.6} parent=0 // pred_check_branch
    %170 = sbr.rel (0) target = $region21
  $region20: #{model_forward.6} parent=0 // pred_region
    _
  $region21: #{model_forward.6} parent=0 // pred_fallthru
    _

// kernel: model_forward.8
$region0: #{model_forward.8}
  #allocation0 [shape = 'u32[]', space=smem, size = 0x4, offset = 0x4, fixed_abs, tag = 'smem constant byte address 0x4 - core index']
  #allocation1 [shape = 'u32[144,128]{1,0:T(1,128)}', space=vmem, size = 0x12000, scoped, tag = 'internal scratch']
  %s0 = inlined_call_operand.vmem [shape: bf16[56,64], index: 0, kind: input, shape index: {}]
  %s1 = inlined_call_operand.vmem [shape: bf16[64,128], index: 1, kind: input, shape index: {}]
  %s2 = inlined_call_operand.vmem [shape: f32[1,128], index: 2, kind: input, shape index: {}]
  %s3 = inlined_call_operand.vmem [shape: f32[56,128], index: 3, kind: output, shape index: {}]
  %s4 = sld [smem:[#allocation0]]
  $region22: #{model_forward.8} parent=0
    _
  %s6 = ssub.s32 1, %s4
  %s7 = scalar_select 0, %s6, %s4
  // Predicated region
  $region2: #{model_forward.8} parent=0 // pred_check
    _
  $region3: #{model_forward.8} parent=0 // pred_check_branch
    %9 = sbr.rel (0) target = $region5
  $region4: #{model_forward.8} parent=0 // pred_region
    _
  $region5: #{model_forward.8} parent=0 // pred_fallthru
    _
  // Predicated region
  $region6: #{model_forward.8} parent=0 // pred_check
    _
  $region7: #{model_forward.8} parent=0 // pred_check_branch
    %11 = sbr.rel (0) target = $region9
  $region8: #{model_forward.8} parent=0 // pred_region
    _
  $region9: #{model_forward.8} parent=0 // pred_fallthru
    _
  // Predicated region
  $region10: #{model_forward.8} parent=0 // pred_check
    _
  $region11: #{model_forward.8} parent=0 // pred_check_branch
    %13 = sbr.rel (0) target = $region13
  $region12: #{model_forward.8} parent=0 // pred_region
    _
  $region13: #{model_forward.8} parent=0 // pred_fallthru
    _
  %v15 = vld [vmem:[%s0] sm:$0xf]
  %v16 = vld [vmem:[%s0 + $0x4] sm:$0xf]
  %v17 = vld [vmem:[%s0 + $0x8] sm:$0xf]
  %v18 = vld [vmem:[%s0 + $0xc] sm:$0xf]
  %v19 = vld [vmem:[%s0 + $0x10] sm:$0xf]
  %v20 = vld [vmem:[%s0 + $0x14] sm:$0xf]
  %v21 = vld [vmem:[%s0 + $0x18] sm:$0xf]
  %v22 = vld [vmem:[%s1] sm:$0xf]
  %v23 = vld [vmem:[%s1 + $0x4] sm:$0xf]
  %v24 = vld [vmem:[%s1 + $0x8] sm:$0xf]
  %v25 = vld [vmem:[%s1 + $0xc] sm:$0xf]
  %v26 = vld [vmem:[%s1 + $0x10] sm:$0xf]
  %v27 = vld [vmem:[%s1 + $0x14] sm:$0xf]
  %v28 = vld [vmem:[%s1 + $0x18] sm:$0xf]
  %v29 = vld [vmem:[%s1 + $0x1c] sm:$0xf]
  %v30 = vld [vmem:[%s2] sm:$0x1]
  %v32 = vlaneseq
  %v33 = vshrl.u32 %v32, 7
  %v34 = vsub.s32 0, %v33
  %v35 = vrot.slane %v30, %v34
  %v44 = vunpack.c.l.b16 %v15
  %v45 = vunpack.c.l.b16 %v16
  %v46 = vunpack.c.l.b16 %v17
  %v47 = vunpack.c.l.b16 %v18
  %v48 = vunpack.c.l.b16 %v19
  %v49 = vunpack.c.l.b16 %v20
  %v50 = vunpack.c.l.b16 %v21
  %v51 = vpack.c.b16 %v45, %v44
  %v52 = vpack.c.b16 %v47, %v46
  %v53 = vpack.c.b16 %v49, %v48
  %v54 = vpack.c.b16 %v50, %v50
  %v63 = vunpack.c.l.b16 %v22
  %v64 = vunpack.c.l.b16 %v23
  %v65 = vunpack.c.l.b16 %v24
  %v66 = vunpack.c.l.b16 %v25
  %v67 = vunpack.c.l.b16 %v26
  %v68 = vunpack.c.l.b16 %v27
  %v69 = vunpack.c.l.b16 %v28
  %v70 = vunpack.c.l.b16 %v29
  %v71 = vpack.c.b16 %v64, %v63
  %v72 = vpack.c.b16 %v66, %v65
  %v73 = vpack.c.b16 %v68, %v67
  %v74 = vpack.c.b16 %v70, %v69
  %vm79 = vcmask 523264
  %v81 = vsel %vm79, %v51, 0
  %v84 = vsel %vm79, %v52, 0
  %v87 = vsel %vm79, %v53, 0
  %v90 = vsel %vm79, %v54, 0
  %92 = vmatprep.subr.bf16.mxu0 0
  %93 = vmatpush1.bf16.msra.mxu0 %v71
  %94 = vmatprep.subr.bf16.mxu0 0
  %95 = vmatpush1.bf16.msra.mxu0 %v72
  %96 = vmatprep.subr.bf16.mxu0 0
  %97 = vmatpush1.bf16.msra.mxu0 %v73
  %98 = vmatprep.subr.bf16.mxu0 0
  %99 = vmatpush1.bf16.msra.mxu0 %v74
  %100 = vmatprep.subr.bf16.mxu0 0
  %101 = vmatpush1.bf16.msra.mxu0 0
  %102 = vmatprep.subr.bf16.mxu0 0
  %103 = vmatpush1.bf16.msra.mxu0 0
  %104 = vmatprep.subr.bf16.mxu0 0
  %105 = vmatpush1.bf16.msra.mxu0 0
  %106 = vmatprep.subr.bf16.mxu0 0
  %107 = vmatpush1.bf16.msra.mxu0 0
  %108 = vmatprep.subr.bf16.mxu0 0
  %109 = vmatpush1.bf16.msra.mxu0 0
  %110 = vmatprep.subr.bf16.mxu0 0
  %111 = vmatpush1.bf16.msra.mxu0 0
  %112 = vmatprep.subr.bf16.mxu0 0
  %113 = vmatpush1.bf16.msra.mxu0 0
  %114 = vmatprep.subr.bf16.mxu0 0
  %115 = vmatpush1.bf16.msra.mxu0 0
  %116 = vmatprep.subr.bf16.mxu0 0
  %117 = vmatpush1.bf16.msra.mxu0 0
  %118 = vmatprep.subr.bf16.mxu0 0
  %119 = vmatpush1.bf16.msra.mxu0 0
  %120 = vmatprep.subr.bf16.mxu0 0
  %121 = vmatpush1.bf16.msra.mxu0 0
  %122 = vmatprep.subr.bf16.mxu0 0
  %123 = vmatpush1.bf16.msra.mxu0 0
  %124 = vmatprep.mubr.bf16.mxu0 0
  %125 = vmatmul.mubr.bf16.gmra.mrb[0].mxu0 %v81
  %v126 = vpop.f32.mrb[0].mxu0
  %v127 = vadd.f32 %v35, %v126
  %v128 = vpop.f32.mrb[0].mxu0
  %v129 = vpop.f32.mrb[0].mxu0
  %v130 = vadd.f32 %v35, %v129
  %v131 = vpop.f32.mrb[0].mxu0
  %132 = vmatprep.mubr.bf16.mxu0 0
  %133 = vmatmul.mubr.bf16.gmra.mrb[0].mxu0 %v84
  %v134 = vpop.f32.mrb[0].mxu0
  %v135 = vadd.f32 %v35, %v134
  %v136 = vpop.f32.mrb[0].mxu0
  %v137 = vpop.f32.mrb[0].mxu0
  %v138 = vadd.f32 %v35, %v137
  %v139 = vpop.f32.mrb[0].mxu0
  %140 = vmatprep.mubr.bf16.mxu0 0
  %141 = vmatmul.mubr.bf16.gmra.mrb[0].mxu0 %v87
  %v142 = vpop.f32.mrb[0].mxu0
  %v143 = vadd.f32 %v35, %v142
  %v144 = vpop.f32.mrb[0].mxu0
  %v145 = vpop.f32.mrb[0].mxu0
  %v146 = vadd.f32 %v35, %v145
  %v147 = vpop.f32.mrb[0].mxu0
  %148 = vmatprep.mubr.bf16.mxu0 0
  %149 = vmatmul.mubr.bf16.gmra.mrb[0].mxu0 %v90
  %v150 = vpop.f32.mrb[0].mxu0
  %v151 = vadd.f32 %v35, %v150
  %v152 = vpop.f32.mrb[0].mxu0
  %v153 = vpop.f32.mrb[0].mxu0
  %v154 = vpop.f32.mrb[0].mxu0
  %155 = vdwg.mxu0
  %v156 = vmax.f32 %v127, 0.0
  %v157 = vmax.f32 %v130, 0.0
  %v158 = vmax.f32 %v135, 0.0
  %v159 = vmax.f32 %v138, 0.0
  %v160 = vmax.f32 %v143, 0.0
  %v161 = vmax.f32 %v146, 0.0
  %v162 = vmax.f32 %v151, 0.0
  %163 = vst [vmem:[%s3] sm:$0xff] %v156
  %164 = vst [vmem:[%s3 + $0x8] sm:$0xff] %v157
  %165 = vst [vmem:[%s3 + $0x10] sm:$0xff] %v158
  %166 = vst [vmem:[%s3 + $0x18] sm:$0xff] %v159
  %167 = vst [vmem:[%s3 + $0x20] sm:$0xff] %v160
  %168 = vst [vmem:[%s3 + $0x28] sm:$0xff] %v161
  %169 = vst [vmem:[%s3 + $0x30] sm:$0xff] %v162
  // Predicated region
  $region14: #{model_forward.8} parent=0 // pred_check
    _
  $region15: #{model_forward.8} parent=0 // pred_check_branch
    %171 = sbr.rel (0) target = $region17
  $region16: #{model_forward.8} parent=0 // pred_region
    _
  $region17: #{model_forward.8} parent=0 // pred_fallthru
    _
  // Predicated region
  $region18: #{model_forward.8} parent=0 // pred_check
    _
  $region19: #{model_forward.8} parent=0 // pred_check_branch
    %173 = sbr.rel (0) target = $region21
  $region20: #{model_forward.8} parent=0 // pred_region
    _
  $region21: #{model_forward.8} parent=0 // pred_fallthru
    _

// kernel: model_forward.7
$region0: #{model_forward.7}
  #allocation0 [shape = 'u32[]', space=smem, size = 0x4, offset = 0x4, fixed_abs, tag = 'smem constant byte address 0x4 - core index']
  #allocation1 [shape = 'u32[144,128]{1,0:T(1,128)}', space=vmem, size = 0x12000, scoped, tag = 'internal scratch']
  %s0 = inlined_call_operand.vmem [shape: bf16[2,256], index: 0, kind: input, shape index: {}]
  %s1 = inlined_call_operand.vmem [shape: bf16[256,1024], index: 1, kind: input, shape index: {}]
  %s2 = inlined_call_operand.vmem [shape: f32[1,1024], index: 2, kind: input, shape index: {}]
  %s3 = inlined_call_operand.vmem [shape: bf16[1024,128], index: 3, kind: input, shape index: {}]
  %s4 = inlined_call_operand.vmem [shape: f32[1,128], index: 4, kind: input, shape index: {}]
  %s5 = inlined_call_operand.vmem [shape: bf16[128,1024], index: 5, kind: input, shape index: {}]
  %s6 = inlined_call_operand.vmem [shape: f32[1,1024], index: 6, kind: input, shape index: {}]
  %s7 = inlined_call_operand.vmem [shape: bf16[1024,256], index: 7, kind: input, shape index: {}]
  %s8 = inlined_call_operand.vmem [shape: f32[1,256], index: 8, kind: input, shape index: {}]
  %s9 = inlined_call_operand.hbm [shape: f32[2,128], index: 9, kind: output, shape index: {0}]
  %s10 = inlined_call_operand.vmem [shape: f32[2,256], index: 10, kind: output, shape index: {1}]
  %11 = xla_tuple %s9, %s10
  %s12 = sld [smem:[#allocation0]]
  $region54: #{model_forward.7} parent=0
    _
  %s14 = ssub.s32 1, %s12
  %s15 = scalar_select 0, %s14, %s12
  $region1: #{model_forward.7} parent=0
    #allocation2 [shape = 'u8[1024]{0}', space=vmem, size = 0x400, scoped, tag = 'output window, operand 0, single buffered']
    #allocation3 [shape = 's32[1]{0}', space=sflag, size = 0x4, scoped, tag = 'scoped memory for model_forward.7']
    %16 = vsyncpa [#allocation3], 0
    // Predicated region
    $region2: #{model_forward.7} parent=1 // pred_check
      _
    $region3: #{model_forward.7} parent=1 // pred_check_branch
      %18 = sbr.rel (0) target = $region5
    $region4: #{model_forward.7} parent=1 // pred_region
      _
    $region5: #{model_forward.7} parent=1 // pred_fallthru
      _
    // Predicated region
    $region6: #{model_forward.7} parent=1 // pred_check
      _
    $region7: #{model_forward.7} parent=1 // pred_check_branch
      %20 = sbr.rel (0) target = $region9
    $region8: #{model_forward.7} parent=1 // pred_region
      _
    $region9: #{model_forward.7} parent=1 // pred_fallthru
      _
    // Predicated region
    $region10: #{model_forward.7} parent=1 // pred_check
      _
    $region11: #{model_forward.7} parent=1 // pred_check_branch
      %22 = sbr.rel (0) target = $region13
    $region12: #{model_forward.7} parent=1 // pred_region
      _
    $region13: #{model_forward.7} parent=1 // pred_fallthru
      _
    // Predicated region
    $region14: #{model_forward.7} parent=1 // pred_check
      _
    $region15: #{model_forward.7} parent=1 // pred_check_branch
      %24 = sbr.rel (0) target = $region17
    $region16: #{model_forward.7} parent=1 // pred_region
      _
    $region17: #{model_forward.7} parent=1 // pred_fallthru
      _
    // Predicated region
    $region18: #{model_forward.7} parent=1 // pred_check
      _
    $region19: #{model_forward.7} parent=1 // pred_check_branch
      %26 = sbr.rel (0) target = $region21
    $region20: #{model_forward.7} parent=1 // pred_region
      _
    $region21: #{model_forward.7} parent=1 // pred_fallthru
      _
    // Predicated region
    $region22: #{model_forward.7} parent=1 // pred_check
      _
    $region23: #{model_forward.7} parent=1 // pred_check_branch
      %28 = sbr.rel (0) target = $region25
    $region24: #{model_forward.7} parent=1 // pred_region
      _
    $region25: #{model_forward.7} parent=1 // pred_fallthru
      _
    // Predicated region
    $region26: #{model_forward.7} parent=1 // pred_check
      _
    $region27: #{model_forward.7} parent=1 // pred_check_branch
      %30 = sbr.rel (0) target = $region29
    $region28: #{model_forward.7} parent=1 // pred_region
      _
    $region29: #{model_forward.7} parent=1 // pred_fallthru
      _
    // Predicated region
    $region30: #{model_forward.7} parent=1 // pred_check
      _
    $region31: #{model_forward.7} parent=1 // pred_check_branch
      %32 = sbr.rel (0) target = $region33
    $region32: #{model_forward.7} parent=1 // pred_region
      _
    $region33: #{model_forward.7} parent=1 // pred_fallthru
      _
    // Predicated region
    $region34: #{model_forward.7} parent=1 // pred_check
      _
    $region35: #{model_forward.7} parent=1 // pred_check_branch
      %34 = sbr.rel (0) target = $region37
    $region36: #{model_forward.7} parent=1 // pred_region
      _
    $region37: #{model_forward.7} parent=1 // pred_fallthru
      _
    %v36 = vld [vmem:[%s0] sm:$0x3]
    %v37 = vld [vmem:[%s1] sm:$0xff]
    %v38 = vld [vmem:[%s1 + $0x8] sm:$0xff]
    %v39 = vld [vmem:[%s1 + $0x10] sm:$0xff]
    %v40 = vld [vmem:[%s1 + $0x18] sm:$0xff]
    %v41 = vld [vmem:[%s1 + $0x20] sm:$0xff]
    %v42 = vld [vmem:[%s1 + $0x28] sm:$0xff]
    %v43 = vld [vmem:[%s1 + $0x30] sm:$0xff]
    %v44 = vld [vmem:[%s1 + $0x38] sm:$0xff]
    %v45 = vld [vmem:[%s1 + $0x40] sm:$0xff]
    %v46 = vld [vmem:[%s1 + $0x48] sm:$0xff]
    %v47 = vld [vmem:[%s1 + $0x50] sm:$0xff]
    %v48 = vld [vmem:[%s1 + $0x58] sm:$0xff]
    %v49 = vld [vmem:[%s1 + $0x60] sm:$0xff]
    %v50 = vld [vmem:[%s1 + $0x68] sm:$0xff]
    %v51 = vld [vmem:[%s1 + $0x70] sm:$0xff]
    %v52 = vld [vmem:[%s1 + $0x78] sm:$0xff]
    %v53 = vld [vmem:[%s1 + $0x80] sm:$0xff]
    %v54 = vld [vmem:[%s1 + $0x88] sm:$0xff]
    %v55 = vld [vmem:[%s1 + $0x90] sm:$0xff]
    %v56 = vld [vmem:[%s1 + $0x98] sm:$0xff]
    %v57 = vld [vmem:[%s1 + $0xa0] sm:$0xff]
    %v58 = vld [vmem:[%s1 + $0xa8] sm:$0xff]
    %v59 = vld [vmem:[%s1 + $0xb0] sm:$0xff]
    %v60 = vld [vmem:[%s1 + $0xb8] sm:$0xff]
    %v61 = vld [vmem:[%s1 + $0xc0] sm:$0xff]
    %v62 = vld [vmem:[%s1 + $0xc8] sm:$0xff]
    %v63 = vld [vmem:[%s1 + $0xd0] sm:$0xff]
    %v64 = vld [vmem:[%s1 + $0xd8] sm:$0xff]
    %v65 = vld [vmem:[%s1 + $0xe0] sm:$0xff]
    %v66 = vld [vmem:[%s1 + $0xe8] sm:$0xff]
    %v67 = vld [vmem:[%s1 + $0xf0] sm:$0xff]
    %v68 = vld [vmem:[%s1 + $0xf8] sm:$0xff]
    %v69 = vld [vmem:[%s1 + $0x100] sm:$0xff]
    %v70 = vld [vmem:[%s1 + $0x108] sm:$0xff]
    %v71 = vld [vmem:[%s1 + $0x110] sm:$0xff]
    %v72 = vld [vmem:[%s1 + $0x118] sm:$0xff]
    %v73 = vld [vmem:[%s1 + $0x120] sm:$0xff]
    %v74 = vld [vmem:[%s1 + $0x128] sm:$0xff]
    %v75 = vld [vmem:[%s1 + $0x130] sm:$0xff]
    %v76 = vld [vmem:[%s1 + $0x138] sm:$0xff]
    %v77 = vld [vmem:[%s1 + $0x140] sm:$0xff]
    %v78 = vld [vmem:[%s1 + $0x148] sm:$0xff]
    %v79 = vld [vmem:[%s1 + $0x150] sm:$0xff]
    %v80 = vld [vmem:[%s1 + $0x158] sm:$0xff]
    %v81 = vld [vmem:[%s1 + $0x160] sm:$0xff]
    %v82 = vld [vmem:[%s1 + $0x168] sm:$0xff]
    %v83 = vld [vmem:[%s1 + $0x170] sm:$0xff]
    %v84 = vld [vmem:[%s1 + $0x178] sm:$0xff]
    %v85 = vld [vmem:[%s1 + $0x180] sm:$0xff]
    %v86 = vld [vmem:[%s1 + $0x188] sm:$0xff]
    %v87 = vld [vmem:[%s1 + $0x190] sm:$0xff]
    %v88 = vld [vmem:[%s1 + $0x198] sm:$0xff]
    %v89 = vld [vmem:[%s1 + $0x1a0] sm:$0xff]
    %v90 = vld [vmem:[%s1 + $0x1a8] sm:$0xff]
    %v91 = vld [vmem:[%s1 + $0x1b0] sm:$0xff]
    %v92 = vld [vmem:[%s1 + $0x1b8] sm:$0xff]
    %v93 = vld [vmem:[%s1 + $0x1c0] sm:$0xff]
    %v94 = vld [vmem:[%s1 + $0x1c8] sm:$0xff]
    %v95 = vld [vmem:[%s1 + $0x1d0] sm:$0xff]
    %v96 = vld [vmem:[%s1 + $0x1d8] sm:$0xff]
    %v97 = vld [vmem:[%s1 + $0x1e0] sm:$0xff]
    %v98 = vld [vmem:[%s1 + $0x1e8] sm:$0xff]
    %v99 = vld [vmem:[%s1 + $0x1f0] sm:$0xff]
    %v100 = vld [vmem:[%s1 + $0x1f8] sm:$0xff]
    %v101 = vld [vmem:[%s1 + $0x200] sm:$0xff]
    %v102 = vld [vmem:[%s1 + $0x208] sm:$0xff]
    %v103 = vld [vmem:[%s1 + $0x210] sm:$0xff]
    %v104 = vld [vmem:[%s1 + $0x218] sm:$0xff]
    %v105 = vld [vmem:[%s1 + $0x220] sm:$0xff]
    %v106 = vld [vmem:[%s1 + $0x228] sm:$0xff]
    %v107 = vld [vmem:[%s1 + $0x230] sm:$0xff]
    %v108 = vld [vmem:[%s1 + $0x238] sm:$0xff]
    %v109 = vld [vmem:[%s1 + $0x240] sm:$0xff]
    %v110 = vld [vmem:[%s1 + $0x248] sm:$0xff]
    %v111 = vld [vmem:[%s1 + $0x250] sm:$0xff]
    %v112 = vld [vmem:[%s1 + $0x258] sm:$0xff]
    %v113 = vld [vmem:[%s1 + $0x260] sm:$0xff]
    %v114 = vld [vmem:[%s1 + $0x268] sm:$0xff]
    %v115 = vld [vmem:[%s1 + $0x270] sm:$0xff]
    %v116 = vld [vmem:[%s1 + $0x278] sm:$0xff]
    %v117 = vld [vmem:[%s1 + $0x280] sm:$0xff]
    %v118 = vld [vmem:[%s1 + $0x288] sm:$0xff]
    %v119 = vld [vmem:[%s1 + $0x290] sm:$0xff]
    %v120 = vld [vmem:[%s1 + $0x298] sm:$0xff]
    %v121 = vld [vmem:[%s1 + $0x2a0] sm:$0xff]
    %v122 = vld [vmem:[%s1 + $0x2a8] sm:$0xff]
    %v123 = vld [vmem:[%s1 + $0x2b0] sm:$0xff]
    %v124 = vld [vmem:[%s1 + $0x2b8] sm:$0xff]
    %v125 = vld [vmem:[%s1 + $0x2c0] sm:$0xff]
    %v126 = vld [vmem:[%s1 + $0x2c8] sm:$0xff]
    %v127 = vld [vmem:[%s1 + $0x2d0] sm:$0xff]
    %v128 = vld [vmem:[%s1 + $0x2d8] sm:$0xff]
    %v129 = vld [vmem:[%s1 + $0x2e0] sm:$0xff]
    %v130 = vld [vmem:[%s1 + $0x2e8] sm:$0xff]
    %v131 = vld [vmem:[%s1 + $0x2f0] sm:$0xff]
    %v132 = vld [vmem:[%s1 + $0x2f8] sm:$0xff]
    %v133 = vld [vmem:[%s1 + $0x300] sm:$0xff]
    %v134 = vld [vmem:[%s1 + $0x308] sm:$0xff]
    %v135 = vld [vmem:[%s1 + $0x310] sm:$0xff]
    %v136 = vld [vmem:[%s1 + $0x318] sm:$0xff]
    %v137 = vld [vmem:[%s1 + $0x320] sm:$0xff]
    %v138 = vld [vmem:[%s1 + $0x328] sm:$0xff]
    %v139 = vld [vmem:[%s1 + $0x330] sm:$0xff]
    %v140 = vld [vmem:[%s1 + $0x338] sm:$0xff]
    %v141 = vld [vmem:[%s1 + $0x340] sm:$0xff]
    %v142 = vld [vmem:[%s1 + $0x348] sm:$0xff]
    %v143 = vld [vmem:[%s1 + $0x350] sm:$0xff]
    %v144 = vld [vmem:[%s1 + $0x358] sm:$0xff]
    %v145 = vld [vmem:[%s1 + $0x360] sm:$0xff]
    %v146 = vld [vmem:[%s1 + $0x368] sm:$0xff]
    %v147 = vld [vmem:[%s1 + $0x370] sm:$0xff]
    %v148 = vld [vmem:[%s1 + $0x378] sm:$0xff]
    %v149 = vld [vmem:[%s1 + $0x380] sm:$0xff]
    %v150 = vld [vmem:[%s1 + $0x388] sm:$0xff]
    %v151 = vld [vmem:[%s1 + $0x390] sm:$0xff]
    %v152 = vld [vmem:[%s1 + $0x398] sm:$0xff]
    %v153 = vld [vmem:[%s1 + $0x3a0] sm:$0xff]
    %v154 = vld [vmem:[%s1 + $0x3a8] sm:$0xff]
    %v155 = vld [vmem:[%s1 + $0x3b0] sm:$0xff]
    %v156 = vld [vmem:[%s1 + $0x3b8] sm:$0xff]
    %v157 = vld [vmem:[%s1 + $0x3c0] sm:$0xff]
    %v158 = vld [vmem:[%s1 + $0x3c8] sm:$0xff]
    %v159 = vld [vmem:[%s1 + $0x3d0] sm:$0xff]
    %v160 = vld [vmem:[%s1 + $0x3d8] sm:$0xff]
    %v161 = vld [vmem:[%s1 + $0x3e0] sm:$0xff]
    %v162 = vld [vmem:[%s1 + $0x3e8] sm:$0xff]
    %v163 = vld [vmem:[%s1 + $0x3f0] sm:$0xff]
    %v164 = vld [vmem:[%s1 + $0x3f8] sm:$0xff]
    %v165 = vld [vmem:[%s2] sm:$0xff]
    %v167 = vlaneseq
    %v168 = vshrl.u32 %v167, 7
    %v169 = vsub.s32 0, %v168
    %v170 = vrot.slane %v165, %v169
    %v171 = vlaneseq
    %v172 = vshrl.u32 %v171, 7
    %v173 = vsub.s32 1, %v172
    %v174 = vrot.slane %v165, %v173
    %v175 = vlaneseq
    %v176 = vshrl.u32 %v175, 7
    %v177 = vsub.s32 2, %v176
    %v178 = vrot.slane %v165, %v177
    %v179 = vlaneseq
    %v180 = vshrl.u32 %v179, 7
    %v181 = vsub.s32 3, %v180
    %v182 = vrot.slane %v165, %v181
    %v183 = vlaneseq
    %v184 = vshrl.u32 %v183, 7
    %v185 = vsub.s32 4, %v184
    %v186 = vrot.slane %v165, %v185
    %v187 = vlaneseq
    %v188 = vshrl.u32 %v187, 7
    %v189 = vsub.s32 5, %v188
    %v190 = vrot.slane %v165, %v189
    %v191 = vlaneseq
    %v192 = vshrl.u32 %v191, 7
    %v193 = vsub.s32 6, %v192
    %v194 = vrot.slane %v165, %v193
    %v195 = vlaneseq
    %v196 = vshrl.u32 %v195, 7
    %v197 = vsub.s32 7, %v196
    %v198 = vrot.slane %v165, %v197
    %v209 = vunpack.c.l.s4 1966171168
    %v210 = vunpack.c.0.s8 %v209
    %v211 = vlaneseq
    %v212 = vshrl.u32 %v211, 7
    %v213 = vsub.s32 %v210, %v212
    %v214 = vrot.slane %v36, %v213
    %v215 = vcombine.high %v214, %v214
    %v217 = vunpack.c.l.s4 1966171168
    %v218 = vunpack.c.0.s8 %v217
    %v219 = vlaneseq
    %v220 = vshrl.u32 %v219, 7
    %v221 = vsub.s32 %v218, %v220
    %v222 = vrot.slane %v214, %v221
    %v224 = vunpack.c.l.s4 1966171168
    %v225 = vunpack.c.0.s8 %v224
    %v226 = vlaneseq
    %v227 = vshrl.u32 %v226, 7
    %v228 = vsub.s32 %v225, %v227
    %v229 = vrot.slane %v215, %v228
    %v360 = vunpack.c.l.b16 %v37
    %v361 = vunpack.c.h.b16 %v37
    %v362 = vunpack.c.l.b16 %v38
    %v363 = vunpack.c.h.b16 %v38
    %v364 = vunpack.c.l.b16 %v39
    %v365 = vunpack.c.h.b16 %v39
    %v366 = vunpack.c.l.b16 %v40
    %v367 = vunpack.c.h.b16 %v40
    %v368 = vunpack.c.l.b16 %v41
    %v369 = vunpack.c.h.b16 %v41
    %v370 = vunpack.c.l.b16 %v42
    %v371 = vunpack.c.h.b16 %v42
    %v372 = vunpack.c.l.b16 %v43
    %v373 = vunpack.c.h.b16 %v43
    %v374 = vunpack.c.l.b16 %v44
    %v375 = vunpack.c.h.b16 %v44
    %v376 = vunpack.c.l.b16 %v45
    %v377 = vunpack.c.h.b16 %v45
    %v378 = vunpack.c.l.b16 %v46
    %v379 = vunpack.c.h.b16 %v46
    %v380 = vunpack.c.l.b16 %v47
    %v381 = vunpack.c.h.b16 %v47
    %v382 = vunpack.c.l.b16 %v48
    %v383 = vunpack.c.h.b16 %v48
    %v384 = vunpack.c.l.b16 %v49
    %v385 = vunpack.c.h.b16 %v49
    %v386 = vunpack.c.l.b16 %v50
    %v387 = vunpack.c.h.b16 %v50
    %v388 = vunpack.c.l.b16 %v51
    %v389 = vunpack.c.h.b16 %v51
    %v390 = vunpack.c.l.b16 %v52
    %v391 = vunpack.c.h.b16 %v52
    %v392 = vunpack.c.l.b16 %v53
    %v393 = vunpack.c.h.b16 %v53
    %v394 = vunpack.c.l.b16 %v54
    %v395 = vunpack.c.h.b16 %v54
    %v396 = vunpack.c.l.b16 %v55
    %v397 = vunpack.c.h.b16 %v55
    %v398 = vunpack.c.l.b16 %v56
    %v399 = vunpack.c.h.b16 %v56
    %v400 = vunpack.c.l.b16 %v57
    %v401 = vunpack.c.h.b16 %v57
    %v402 = vunpack.c.l.b16 %v58
    %v403 = vunpack.c.h.b16 %v58
    %v404 = vunpack.c.l.b16 %v59
    %v405 = vunpack.c.h.b16 %v59
    %v406 = vunpack.c.l.b16 %v60
    %v407 = vunpack.c.h.b16 %v60
    %v408 = vunpack.c.l.b16 %v61
    %v409 = vunpack.c.h.b16 %v61
    %v410 = vunpack.c.l.b16 %v62
    %v411 = vunpack.c.h.b16 %v62
    %v412 = vunpack.c.l.b16 %v63
    %v413 = vunpack.c.h.b16 %v63
    %v414 = vunpack.c.l.b16 %v64
    %v415 = vunpack.c.h.b16 %v64
    %v416 = vunpack.c.l.b16 %v65
    %v417 = vunpack.c.h.b16 %v65
    %v418 = vunpack.c.l.b16 %v66
    %v419 = vunpack.c.h.b16 %v66
    %v420 = vunpack.c.l.b16 %v67
    %v421 = vunpack.c.h.b16 %v67
    %v422 = vunpack.c.l.b16 %v68
    %v423 = vunpack.c.h.b16 %v68
    %v424 = vunpack.c.l.b16 %v69
    %v425 = vunpack.c.h.b16 %v69
    %v426 = vunpack.c.l.b16 %v70
    %v427 = vunpack.c.h.b16 %v70
    %v428 = vunpack.c.l.b16 %v71
    %v429 = vunpack.c.h.b16 %v71
    %v430 = vunpack.c.l.b16 %v72
    %v431 = vunpack.c.h.b16 %v72
    %v432 = vunpack.c.l.b16 %v73
    %v433 = vunpack.c.h.b16 %v73
    %v434 = vunpack.c.l.b16 %v74
    %v435 = vunpack.c.h.b16 %v74
    %v436 = vunpack.c.l.b16 %v75
    %v437 = vunpack.c.h.b16 %v75
    %v438 = vunpack.c.l.b16 %v76
    %v439 = vunpack.c.h.b16 %v76
    %v440 = vunpack.c.l.b16 %v77
    %v441 = vunpack.c.h.b16 %v77
    %v442 = vunpack.c.l.b16 %v78
    %v443 = vunpack.c.h.b16 %v78
    %v444 = vunpack.c.l.b16 %v79
    %v445 = vunpack.c.h.b16 %v79
    %v446 = vunpack.c.l.b16 %v80
    %v447 = vunpack.c.h.b16 %v80
    %v448 = vunpack.c.l.b16 %v81
    %v449 = vunpack.c.h.b16 %v81
    %v450 = vunpack.c.l.b16 %v82
    %v451 = vunpack.c.h.b16 %v82
    %v452 = vunpack.c.l.b16 %v83
    %v453 = vunpack.c.h.b16 %v83
    %v454 = vunpack.c.l.b16 %v84
    %v455 = vunpack.c.h.b16 %v84
    %v456 = vunpack.c.l.b16 %v85
    %v457 = vunpack.c.h.b16 %v85
    %v458 = vunpack.c.l.b16 %v86
    %v459 = vunpack.c.h.b16 %v86
    %v460 = vunpack.c.l.b16 %v87
    %v461 = vunpack.c.h.b16 %v87
    %v462 = vunpack.c.l.b16 %v88
    %v463 = vunpack.c.h.b16 %v88
    %v464 = vunpack.c.l.b16 %v89
    %v465 = vunpack.c.h.b16 %v89
    %v466 = vunpack.c.l.b16 %v90
    %v467 = vunpack.c.h.b16 %v90
    %v468 = vunpack.c.l.b16 %v91
    %v469 = vunpack.c.h.b16 %v91
    %v470 = vunpack.c.l.b16 %v92
    %v471 = vunpack.c.h.b16 %v92
    %v472 = vunpack.c.l.b16 %v93
    %v473 = vunpack.c.h.b16 %v93
    %v474 = vunpack.c.l.b16 %v94
    %v475 = vunpack.c.h.b16 %v94
    %v476 = vunpack.c.l.b16 %v95
    %v477 = vunpack.c.h.b16 %v95
    %v478 = vunpack.c.l.b16 %v96
    %v479 = vunpack.c.h.b16 %v96
    %v480 = vunpack.c.l.b16 %v97
    %v481 = vunpack.c.h.b16 %v97
    %v482 = vunpack.c.l.b16 %v98
    %v483 = vunpack.c.h.b16 %v98
    %v484 = vunpack.c.l.b16 %v99
    %v485 = vunpack.c.h.b16 %v99
    %v486 = vunpack.c.l.b16 %v100
    %v487 = vunpack.c.h.b16 %v100
    %v488 = vunpack.c.l.b16 %v101
    %v489 = vunpack.c.h.b16 %v101
    %v490 = vunpack.c.l.b16 %v102
    %v491 = vunpack.c.h.b16 %v102
    %v492 = vunpack.c.l.b16 %v103
    %v493 = vunpack.c.h.b16 %v103
    %v494 = vunpack.c.l.b16 %v104
    %v495 = vunpack.c.h.b16 %v104
    %v496 = vunpack.c.l.b16 %v105
    %v497 = vunpack.c.h.b16 %v105
    %v498 = vunpack.c.l.b16 %v106
    %v499 = vunpack.c.h.b16 %v106
    %v500 = vunpack.c.l.b16 %v107
    %v501 = vunpack.c.h.b16 %v107
    %v502 = vunpack.c.l.b16 %v108
    %v503 = vunpack.c.h.b16 %v108
    %v504 = vunpack.c.l.b16 %v109
    %v505 = vunpack.c.h.b16 %v109
    %v506 = vunpack.c.l.b16 %v110
    %v507 = vunpack.c.h.b16 %v110
    %v508 = vunpack.c.l.b16 %v111
    %v509 = vunpack.c.h.b16 %v111
    %v510 = vunpack.c.l.b16 %v112
    %v511 = vunpack.c.h.b16 %v112
    %v512 = vunpack.c.l.b16 %v113
    %v513 = vunpack.c.h.b16 %v113
    %v514 = vunpack.c.l.b16 %v114
    %v515 = vunpack.c.h.b16 %v114
    %v516 = vunpack.c.l.b16 %v115
    %v517 = vunpack.c.h.b16 %v115
    %v518 = vunpack.c.l.b16 %v116
    %v519 = vunpack.c.h.b16 %v116
    %v520 = vunpack.c.l.b16 %v117
    %v521 = vunpack.c.h.b16 %v117
    %v522 = vunpack.c.l.b16 %v118
    %v523 = vunpack.c.h.b16 %v118
    %v524 = vunpack.c.l.b16 %v119
    %v525 = vunpack.c.h.b16 %v119
    %v526 = vunpack.c.l.b16 %v120
    %v527 = vunpack.c.h.b16 %v120
    %v528 = vunpack.c.l.b16 %v121
    %v529 = vunpack.c.h.b16 %v121
    %v530 = vunpack.c.l.b16 %v122
    %v531 = vunpack.c.h.b16 %v122
    %v532 = vunpack.c.l.b16 %v123
    %v533 = vunpack.c.h.b16 %v123
    %v534 = vunpack.c.l.b16 %v124
    %v535 = vunpack.c.h.b16 %v124
    %v536 = vunpack.c.l.b16 %v125
    %v537 = vunpack.c.h.b16 %v125
    %v538 = vunpack.c.l.b16 %v126
    %v539 = vunpack.c.h.b16 %v126
    %v540 = vunpack.c.l.b16 %v127
    %v541 = vunpack.c.h.b16 %v127
    %v542 = vunpack.c.l.b16 %v128
    %v543 = vunpack.c.h.b16 %v128
    %v544 = vunpack.c.l.b16 %v129
    %v545 = vunpack.c.h.b16 %v129
    %v546 = vunpack.c.l.b16 %v130
    %v547 = vunpack.c.h.b16 %v130
    %v548 = vunpack.c.l.b16 %v131
    %v549 = vunpack.c.h.b16 %v131
    %v550 = vunpack.c.l.b16 %v132
    %v551 = vunpack.c.h.b16 %v132
    %v552 = vunpack.c.l.b16 %v133
    %v553 = vunpack.c.h.b16 %v133
    %v554 = vunpack.c.l.b16 %v134
    %v555 = vunpack.c.h.b16 %v134
    %v556 = vunpack.c.l.b16 %v135
    %v557 = vunpack.c.h.b16 %v135
    %v558 = vunpack.c.l.b16 %v136
    %v559 = vunpack.c.h.b16 %v136
    %v560 = vunpack.c.l.b16 %v137
    %v561 = vunpack.c.h.b16 %v137
    %v562 = vunpack.c.l.b16 %v138
    %v563 = vunpack.c.h.b16 %v138
    %v564 = vunpack.c.l.b16 %v139
    %v565 = vunpack.c.h.b16 %v139
    %v566 = vunpack.c.l.b16 %v140
    %v567 = vunpack.c.h.b16 %v140
    %v568 = vunpack.c.l.b16 %v141
    %v569 = vunpack.c.h.b16 %v141
    %v570 = vunpack.c.l.b16 %v142
    %v571 = vunpack.c.h.b16 %v142
    %v572 = vunpack.c.l.b16 %v143
    %v573 = vunpack.c.h.b16 %v143
    %v574 = vunpack.c.l.b16 %v144
    %v575 = vunpack.c.h.b16 %v144
    %v576 = vunpack.c.l.b16 %v145
    %v577 = vunpack.c.h.b16 %v145
    %v578 = vunpack.c.l.b16 %v146
    %v579 = vunpack.c.h.b16 %v146
    %v580 = vunpack.c.l.b16 %v147
    %v581 = vunpack.c.h.b16 %v147
    %v582 = vunpack.c.l.b16 %v148
    %v583 = vunpack.c.h.b16 %v148
    %v584 = vunpack.c.l.b16 %v149
    %v585 = vunpack.c.h.b16 %v149
    %v586 = vunpack.c.l.b16 %v150
    %v587 = vunpack.c.h.b16 %v150
    %v588 = vunpack.c.l.b16 %v151
    %v589 = vunpack.c.h.b16 %v151
    %v590 = vunpack.c.l.b16 %v152
    %v591 = vunpack.c.h.b16 %v152
    %v592 = vunpack.c.l.b16 %v153
    %v593 = vunpack.c.h.b16 %v153
    %v594 = vunpack.c.l.b16 %v154
    %v595 = vunpack.c.h.b16 %v154
    %v596 = vunpack.c.l.b16 %v155
    %v597 = vunpack.c.h.b16 %v155
    %v598 = vunpack.c.l.b16 %v156
    %v599 = vunpack.c.h.b16 %v156
    %v600 = vunpack.c.l.b16 %v157
    %v601 = vunpack.c.h.b16 %v157
    %v602 = vunpack.c.l.b16 %v158
    %v603 = vunpack.c.h.b16 %v158
    %v604 = vunpack.c.l.b16 %v159
    %v605 = vunpack.c.h.b16 %v159
    %v606 = vunpack.c.l.b16 %v160
    %v607 = vunpack.c.h.b16 %v160
    %v608 = vunpack.c.l.b16 %v161
    %v609 = vunpack.c.h.b16 %v161
    %v610 = vunpack.c.l.b16 %v162
    %v611 = vunpack.c.h.b16 %v162
    %v612 = vunpack.c.l.b16 %v163
    %v613 = vunpack.c.h.b16 %v163
    %v614 = vunpack.c.l.b16 %v164
    %v615 = vunpack.c.h.b16 %v164
    %v616 = vpack.c.b16 %v368, %v360
    %v617 = vpack.c.b16 %v369, %v361
    %v618 = vpack.c.b16 %v370, %v362
    %v619 = vpack.c.b16 %v371, %v363
    %v620 = vpack.c.b16 %v372, %v364
    %v621 = vpack.c.b16 %v373, %v365
    %v622 = vpack.c.b16 %v374, %v366
    %v623 = vpack.c.b16 %v375, %v367
    %v624 = vpack.c.b16 %v384, %v376
    %v625 = vpack.c.b16 %v385, %v377
    %v626 = vpack.c.b16 %v386, %v378
    %v627 = vpack.c.b16 %v387, %v379
    %v628 = vpack.c.b16 %v388, %v380
    %v629 = vpack.c.b16 %v389, %v381
    %v630 = vpack.c.b16 %v390, %v382
    %v631 = vpack.c.b16 %v391, %v383
    %v632 = vpack.c.b16 %v400, %v392
    %v633 = vpack.c.b16 %v401, %v393
    %v634 = vpack.c.b16 %v402, %v394
    %v635 = vpack.c.b16 %v403, %v395
    %v636 = vpack.c.b16 %v404, %v396
    %v637 = vpack.c.b16 %v405, %v397
    %v638 = vpack.c.b16 %v406, %v398
    %v639 = vpack.c.b16 %v407, %v399
    %v640 = vpack.c.b16 %v416, %v408
    %v641 = vpack.c.b16 %v417, %v409
    %v642 = vpack.c.b16 %v418, %v410
    %v643 = vpack.c.b16 %v419, %v411
    %v644 = vpack.c.b16 %v420, %v412
    %v645 = vpack.c.b16 %v421, %v413
    %v646 = vpack.c.b16 %v422, %v414
    %v647 = vpack.c.b16 %v423, %v415
    %v648 = vpack.c.b16 %v432, %v424
    %v649 = vpack.c.b16 %v433, %v425
    %v650 = vpack.c.b16 %v434, %v426
    %v651 = vpack.c.b16 %v435, %v427
    %v652 = vpack.c.b16 %v436, %v428
    %v653 = vpack.c.b16 %v437, %v429
    %v654 = vpack.c.b16 %v438, %v430
    %v655 = vpack.c.b16 %v439, %v431
    %v656 = vpack.c.b16 %v448, %v440
    %v657 = vpack.c.b16 %v449, %v441
    %v658 = vpack.c.b16 %v450, %v442
    %v659 = vpack.c.b16 %v451, %v443
    %v660 = vpack.c.b16 %v452, %v444
    %v661 = vpack.c.b16 %v453, %v445
    %v662 = vpack.c.b16 %v454, %v446
    %v663 = vpack.c.b16 %v455, %v447
    %v664 = vpack.c.b16 %v464, %v456
    %v665 = vpack.c.b16 %v465, %v457
    %v666 = vpack.c.b16 %v466, %v458
    %v667 = vpack.c.b16 %v467, %v459
    %v668 = vpack.c.b16 %v468, %v460
    %v669 = vpack.c.b16 %v469, %v461
    %v670 = vpack.c.b16 %v470, %v462
    %v671 = vpack.c.b16 %v471, %v463
    %v672 = vpack.c.b16 %v480, %v472
    %v673 = vpack.c.b16 %v481, %v473
    %v674 = vpack.c.b16 %v482, %v474
    %v675 = vpack.c.b16 %v483, %v475
    %v676 = vpack.c.b16 %v484, %v476
    %v677 = vpack.c.b16 %v485, %v477
    %v678 = vpack.c.b16 %v486, %v478
    %v679 = vpack.c.b16 %v487, %v479
    %v680 = vpack.c.b16 %v496, %v488
    %v681 = vpack.c.b16 %v497, %v489
    %v682 = vpack.c.b16 %v498, %v490
    %v683 = vpack.c.b16 %v499, %v491
    %v684 = vpack.c.b16 %v500, %v492
    %v685 = vpack.c.b16 %v501, %v493
    %v686 = vpack.c.b16 %v502, %v494
    %v687 = vpack.c.b16 %v503, %v495
    %v688 = vpack.c.b16 %v512, %v504
    %v689 = vpack.c.b16 %v513, %v505
    %v690 = vpack.c.b16 %v514, %v506
    %v691 = vpack.c.b16 %v515, %v507
    %v692 = vpack.c.b16 %v516, %v508
    %v693 = vpack.c.b16 %v517, %v509
    %v694 = vpack.c.b16 %v518, %v510
    %v695 = vpack.c.b16 %v519, %v511
    %v696 = vpack.c.b16 %v528, %v520
    %v697 = vpack.c.b16 %v529, %v521
    %v698 = vpack.c.b16 %v530, %v522
    %v699 = vpack.c.b16 %v531, %v523
    %v700 = vpack.c.b16 %v532, %v524
    %v701 = vpack.c.b16 %v533, %v525
    %v702 = vpack.c.b16 %v534, %v526
    %v703 = vpack.c.b16 %v535, %v527
    %v704 = vpack.c.b16 %v544, %v536
    %v705 = vpack.c.b16 %v545, %v537
    %v706 = vpack.c.b16 %v546, %v538
    %v707 = vpack.c.b16 %v547, %v539
    %v708 = vpack.c.b16 %v548, %v540
    %v709 = vpack.c.b16 %v549, %v541
    %v710 = vpack.c.b16 %v550, %v542
    %v711 = vpack.c.b16 %v551, %v543
    %v712 = vpack.c.b16 %v560, %v552
    %v713 = vpack.c.b16 %v561, %v553
    %v714 = vpack.c.b16 %v562, %v554
    %v715 = vpack.c.b16 %v563, %v555
    %v716 = vpack.c.b16 %v564, %v556
    %v717 = vpack.c.b16 %v565, %v557
    %v718 = vpack.c.b16 %v566, %v558
    %v719 = vpack.c.b16 %v567, %v559
    %v720 = vpack.c.b16 %v576, %v568
    %v721 = vpack.c.b16 %v577, %v569
    %v722 = vpack.c.b16 %v578, %v570
    %v723 = vpack.c.b16 %v579, %v571
    %v724 = vpack.c.b16 %v580, %v572
    %v725 = vpack.c.b16 %v581, %v573
    %v726 = vpack.c.b16 %v582, %v574
    %v727 = vpack.c.b16 %v583, %v575
    %v728 = vpack.c.b16 %v592, %v584
    %v729 = vpack.c.b16 %v593, %v585
    %v730 = vpack.c.b16 %v594, %v586
    %v731 = vpack.c.b16 %v595, %v587
    %v732 = vpack.c.b16 %v596, %v588
    %v733 = vpack.c.b16 %v597, %v589
    %v734 = vpack.c.b16 %v598, %v590
    %v735 = vpack.c.b16 %v599, %v591
    %v736 = vpack.c.b16 %v608, %v600
    %v737 = vpack.c.b16 %v609, %v601
    %v738 = vpack.c.b16 %v610, %v602
    %v739 = vpack.c.b16 %v611, %v603
    %v740 = vpack.c.b16 %v612, %v604
    %v741 = vpack.c.b16 %v613, %v605
    %v742 = vpack.c.b16 %v614, %v606
    %v743 = vpack.c.b16 %v615, %v607
    %872 = vmatprep.subr.bf16.mxu0 %v617
    %873 = vmatpush1.bf16.msra.mxu0 %v616
    %874 = vmatprep.subr.bf16.mxu0 %v625
    %875 = vmatpush1.bf16.msra.mxu0 %v624
    %876 = vmatprep.subr.bf16.mxu0 %v633
    %877 = vmatpush1.bf16.msra.mxu0 %v632
    %878 = vmatprep.subr.bf16.mxu0 %v641
    %879 = vmatpush1.bf16.msra.mxu0 %v640
    %880 = vmatprep.subr.bf16.mxu0 %v649
    %881 = vmatpush1.bf16.msra.mxu0 %v648
    %882 = vmatprep.subr.bf16.mxu0 %v657
    %883 = vmatpush1.bf16.msra.mxu0 %v656
    %884 = vmatprep.subr.bf16.mxu0 %v665
    %885 = vmatpush1.bf16.msra.mxu0 %v664
    %886 = vmatprep.subr.bf16.mxu0 %v673
    %887 = vmatpush1.bf16.msra.mxu0 %v672
    %888 = vmatprep.subr.bf16.mxu0 %v681
    %889 = vmatpush1.bf16.msra.mxu0 %v680
    %890 = vmatprep.subr.bf16.mxu0 %v689
    %891 = vmatpush1.bf16.msra.mxu0 %v688
    %892 = vmatprep.subr.bf16.mxu0 %v697
    %893 = vmatpush1.bf16.msra.mxu0 %v696
    %894 = vmatprep.subr.bf16.mxu0 %v705
    %895 = vmatpush1.bf16.msra.mxu0 %v704
    %896 = vmatprep.subr.bf16.mxu0 %v713
    %897 = vmatpush1.bf16.msra.mxu0 %v712
    %898 = vmatprep.subr.bf16.mxu0 %v721
    %899 = vmatpush1.bf16.msra.mxu0 %v720
    %900 = vmatprep.subr.bf16.mxu0 %v729
    %901 = vmatpush1.bf16.msra.mxu0 %v728
    %902 = vmatprep.subr.bf16.mxu0 %v737
    %903 = vmatpush1.bf16.msra.mxu0 %v736
    %904 = vmatprep.mubr.bf16.mxu0 %v229
    %905 = vmatmul.mubr.bf16.gmra.mrb[0].mxu0 %v222
    %v906 = vpop.f32.mrb[0].mxu0
    %v907 = vadd.f32 %v170, %v906
    %v908 = vpop.f32.mrb[0].mxu0
    %v909 = vadd.f32 %v174, %v908
    %v910 = vpop.f32.mrb[0].mxu0
    %v911 = vpop.f32.mrb[0].mxu0
    %912 = vdwg.mxu0
    %913 = vmatprep.subr.bf16.mxu0 %v619
    %914 = vmatpush1.bf16.msra.mxu0 %v618
    %915 = vmatprep.subr.bf16.mxu0 %v627
    %916 = vmatpush1.bf16.msra.mxu0 %v626
    %917 = vmatprep.subr.bf16.mxu0 %v635
    %918 = vmatpush1.bf16.msra.mxu0 %v634
    %919 = vmatprep.subr.bf16.mxu0 %v643
    %920 = vmatpush1.bf16.msra.mxu0 %v642
    %921 = vmatprep.subr.bf16.mxu0 %v651
    %922 = vmatpush1.bf16.msra.mxu0 %v650
    %923 = vmatprep.subr.bf16.mxu0 %v659
    %924 = vmatpush1.bf16.msra.mxu0 %v658
    %925 = vmatprep.subr.bf16.mxu0 %v667
    %926 = vmatpush1.bf16.msra.mxu0 %v666
    %927 = vmatprep.subr.bf16.mxu0 %v675
    %928 = vmatpush1.bf16.msra.mxu0 %v674
    %929 = vmatprep.subr.bf16.mxu0 %v683
    %930 = vmatpush1.bf16.msra.mxu0 %v682
    %931 = vmatprep.subr.bf16.mxu0 %v691
    %932 = vmatpush1.bf16.msra.mxu0 %v690
    %933 = vmatprep.subr.bf16.mxu0 %v699
    %934 = vmatpush1.bf16.msra.mxu0 %v698
    %935 = vmatprep.subr.bf16.mxu0 %v707
    %936 = vmatpush1.bf16.msra.mxu0 %v706
    %937 = vmatprep.subr.bf16.mxu0 %v715
    %938 = vmatpush1.bf16.msra.mxu0 %v714
    %939 = vmatprep.subr.bf16.mxu0 %v723
    %940 = vmatpush1.bf16.msra.mxu0 %v722
    %941 = vmatprep.subr.bf16.mxu0 %v731
    %942 = vmatpush1.bf16.msra.mxu0 %v730
    %943 = vmatprep.subr.bf16.mxu0 %v739
    %944 = vmatpush1.bf16.msra.mxu0 %v738
    %945 = vmatprep.mubr.bf16.mxu0 %v229
    %946 = vmatmul.mubr.bf16.gmra.mrb[0].mxu0 %v222
    %v947 = vpop.f32.mrb[0].mxu0
    %v948 = vadd.f32 %v178, %v947
    %v949 = vpop.f32.mrb[0].mxu0
    %v950 = vadd.f32 %v182, %v949
    %v951 = vpop.f32.mrb[0].mxu0
    %v952 = vpop.f32.mrb[0].mxu0
    %953 = vdwg.mxu0
    %954 = vmatprep.subr.bf16.mxu0 %v621
    %955 = vmatpush1.bf16.msra.mxu0 %v620
    %956 = vmatprep.subr.bf16.mxu0 %v629
    %957 = vmatpush1.bf16.msra.mxu0 %v628
    %958 = vmatprep.subr.bf16.mxu0 %v637
    %959 = vmatpush1.bf16.msra.mxu0 %v636
    %960 = vmatprep.subr.bf16.mxu0 %v645
    %961 = vmatpush1.bf16.msra.mxu0 %v644
    %962 = vmatprep.subr.bf16.mxu0 %v653
    %963 = vmatpush1.bf16.msra.mxu0 %v652
    %964 = vmatprep.subr.bf16.mxu0 %v661
    %965 = vmatpush1.bf16.msra.mxu0 %v660
    %966 = vmatprep.subr.bf16.mxu0 %v669
    %967 = vmatpush1.bf16.msra.mxu0 %v668
    %968 = vmatprep.subr.bf16.mxu0 %v677
    %969 = vmatpush1.bf16.msra.mxu0 %v676
    %970 = vmatprep.subr.bf16.mxu0 %v685
    %971 = vmatpush1.bf16.msra.mxu0 %v684
    %972 = vmatprep.subr.bf16.mxu0 %v693
    %973 = vmatpush1.bf16.msra.mxu0 %v692
    %974 = vmatprep.subr.bf16.mxu0 %v701
    %975 = vmatpush1.bf16.msra.mxu0 %v700
    %976 = vmatprep.subr.bf16.mxu0 %v709
    %977 = vmatpush1.bf16.msra.mxu0 %v708
    %978 = vmatprep.subr.bf16.mxu0 %v717
    %979 = vmatpush1.bf16.msra.mxu0 %v716
    %980 = vmatprep.subr.bf16.mxu0 %v725
    %981 = vmatpush1.bf16.msra.mxu0 %v724
    %982 = vmatprep.subr.bf16.mxu0 %v733
    %983 = vmatpush1.bf16.msra.mxu0 %v732
    %984 = vmatprep.subr.bf16.mxu0 %v741
    %985 = vmatpush1.bf16.msra.mxu0 %v740
    %986 = vmatprep.mubr.bf16.mxu0 %v229
    %987 = vmatmul.mubr.bf16.gmra.mrb[0].mxu0 %v222
    %v988 = vpop.f32.mrb[0].mxu0
    %v989 = vadd.f32 %v186, %v988
    %v990 = vpop.f32.mrb[0].mxu0
    %v991 = vadd.f32 %v190, %v990
    %v992 = vpop.f32.mrb[0].mxu0
    %v993 = vpop.f32.mrb[0].mxu0
    %994 = vdwg.mxu0
    %995 = vmatprep.subr.bf16.mxu0 %v623
    %996 = vmatpush1.bf16.msra.mxu0 %v622
    %997 = vmatprep.subr.bf16.mxu0 %v631
    %998 = vmatpush1.bf16.msra.mxu0 %v630
    %999 = vmatprep.subr.bf16.mxu0 %v639
    %1000 = vmatpush1.bf16.msra.mxu0 %v638
    %1001 = vmatprep.subr.bf16.mxu0 %v647
    %1002 = vmatpush1.bf16.msra.mxu0 %v646
    %1003 = vmatprep.subr.bf16.mxu0 %v655
    %1004 = vmatpush1.bf16.msra.mxu0 %v654
    %1005 = vmatprep.subr.bf16.mxu0 %v663
    %1006 = vmatpush1.bf16.msra.mxu0 %v662
    %1007 = vmatprep.subr.bf16.mxu0 %v671
    %1008 = vmatpush1.bf16.msra.mxu0 %v670
    %1009 = vmatprep.subr.bf16.mxu0 %v679
    %1010 = vmatpush1.bf16.msra.mxu0 %v678
    %1011 = vmatprep.subr.bf16.mxu0 %v687
    %1012 = vmatpush1.bf16.msra.mxu0 %v686
    %1013 = vmatprep.subr.bf16.mxu0 %v695
    %1014 = vmatpush1.bf16.msra.mxu0 %v694
    %1015 = vmatprep.subr.bf16.mxu0 %v703
    %1016 = vmatpush1.bf16.msra.mxu0 %v702
    %1017 = vmatprep.subr.bf16.mxu0 %v711
    %1018 = vmatpush1.bf16.msra.mxu0 %v710
    %1019 = vmatprep.subr.bf16.mxu0 %v719
    %1020 = vmatpush1.bf16.msra.mxu0 %v718
    %1021 = vmatprep.subr.bf16.mxu0 %v727
    %1022 = vmatpush1.bf16.msra.mxu0 %v726
    %1023 = vmatprep.subr.bf16.mxu0 %v735
    %1024 = vmatpush1.bf16.msra.mxu0 %v734
    %1025 = vmatprep.subr.bf16.mxu0 %v743
    %1026 = vmatpush1.bf16.msra.mxu0 %v742
    %1027 = vmatprep.mubr.bf16.mxu0 %v229
    %1028 = vmatmul.mubr.bf16.gmra.mrb[0].mxu0 %v222
    %v1029 = vpop.f32.mrb[0].mxu0
    %v1030 = vadd.f32 %v194, %v1029
    %v1031 = vpop.f32.mrb[0].mxu0
    %v1032 = vadd.f32 %v198, %v1031
    %v1033 = vpop.f32.mrb[0].mxu0
    %v1034 = vpop.f32.mrb[0].mxu0
    %1035 = vdwg.mxu0
    %vm1036 = vcmp.gt.f32.partialorder %v907, 0.0
    %vm1037 = vcmp.gt.f32.partialorder %v909, 0.0
    %vm1038 = vcmp.gt.f32.partialorder %v948, 0.0
    %vm1039 = vcmp.gt.f32.partialorder %v950, 0.0
    %vm1040 = vcmp.gt.f32.partialorder %v989, 0.0
    %vm1041 = vcmp.gt.f32.partialorder %v991, 0.0
    %vm1042 = vcmp.gt.f32.partialorder %v1030, 0.0
    %vm1043 = vcmp.gt.f32.partialorder %v1032, 0.0
    %v1044 = vmul.f32 %v907, 0.01
    %v1045 = vmul.f32 %v909, 0.01
    %v1046 = vmul.f32 %v948, 0.01
    %v1047 = vmul.f32 %v950, 0.01
    %v1048 = vmul.f32 %v989, 0.01
    %v1049 = vmul.f32 %v991, 0.01
    %v1050 = vmul.f32 %v1030, 0.01
    %v1051 = vmul.f32 %v1032, 0.01
    %v1052 = vsel %vm1036, %v907, %v1044
    %v1053 = vsel %vm1037, %v909, %v1045
    %v1054 = vsel %vm1038, %v948, %v1046
    %v1055 = vsel %vm1039, %v950, %v1047
    %v1056 = vsel %vm1040, %v989, %v1048
    %v1057 = vsel %vm1041, %v991, %v1049
    %v1058 = vsel %vm1042, %v1030, %v1050
    %v1059 = vsel %vm1043, %v1032, %v1051
    %v1060 = vpack.c.bf16 %v1052, %v1052
    %v1061 = vpack.c.bf16 %v1053, %v1053
    %v1062 = vpack.c.bf16 %v1054, %v1054
    %v1063 = vpack.c.bf16 %v1055, %v1055
    %v1064 = vpack.c.bf16 %v1056, %v1056
    %v1065 = vpack.c.bf16 %v1057, %v1057
    %v1066 = vpack.c.bf16 %v1058, %v1058
    %v1067 = vpack.c.bf16 %v1059, %v1059
    %v1068 = vld [vmem:[%s3] sm:$0xf]
    %v1069 = vld [vmem:[%s3 + $0x4] sm:$0xf]
    %v1070 = vld [vmem:[%s3 + $0x8] sm:$0xf]
    %v1071 = vld [vmem:[%s3 + $0xc] sm:$0xf]
    %v1072 = vld [vmem:[%s3 + $0x10] sm:$0xf]
    %v1073 = vld [vmem:[%s3 + $0x14] sm:$0xf]
    %v1074 = vld [vmem:[%s3 + $0x18] sm:$0xf]
    %v1075 = vld [vmem:[%s3 + $0x1c] sm:$0xf]
    %v1076 = vld [vmem:[%s3 + $0x20] sm:$0xf]
    %v1077 = vld [vmem:[%s3 + $0x24] sm:$0xf]
    %v1078 = vld [vmem:[%s3 + $0x28] sm:$0xf]
    %v1079 = vld [vmem:[%s3 + $0x2c] sm:$0xf]
    %v1080 = vld [vmem:[%s3 + $0x30] sm:$0xf]
    %v1081 = vld [vmem:[%s3 + $0x34] sm:$0xf]
    %v1082 = vld [vmem:[%s3 + $0x38] sm:$0xf]
    %v1083 = vld [vmem:[%s3 + $0x3c] sm:$0xf]
    %v1084 = vld [vmem:[%s3 + $0x40] sm:$0xf]
    %v1085 = vld [vmem:[%s3 + $0x44] sm:$0xf]
    %v1086 = vld [vmem:[%s3 + $0x48] sm:$0xf]
    %v1087 = vld [vmem:[%s3 + $0x4c] sm:$0xf]
    %v1088 = vld [vmem:[%s3 + $0x50] sm:$0xf]
    %v1089 = vld [vmem:[%s3 + $0x54] sm:$0xf]
    %v1090 = vld [vmem:[%s3 + $0x58] sm:$0xf]
    %v1091 = vld [vmem:[%s3 + $0x5c] sm:$0xf]
    %v1092 = vld [vmem:[%s3 + $0x60] sm:$0xf]
    %v1093 = vld [vmem:[%s3 + $0x64] sm:$0xf]
    %v1094 = vld [vmem:[%s3 + $0x68] sm:$0xf]
    %v1095 = vld [vmem:[%s3 + $0x6c] sm:$0xf]
    %v1096 = vld [vmem:[%s3 + $0x70] sm:$0xf]
    %v1097 = vld [vmem:[%s3 + $0x74] sm:$0xf]
    %v1098 = vld [vmem:[%s3 + $0x78] sm:$0xf]
    %v1099 = vld [vmem:[%s3 + $0x7c] sm:$0xf]
    %v1100 = vld [vmem:[%s3 + $0x80] sm:$0xf]
    %v1101 = vld [vmem:[%s3 + $0x84] sm:$0xf]
    %v1102 = vld [vmem:[%s3 + $0x88] sm:$0xf]
    %v1103 = vld [vmem:[%s3 + $0x8c] sm:$0xf]
    %v1104 = vld [vmem:[%s3 + $0x90] sm:$0xf]
    %v1105 = vld [vmem:[%s3 + $0x94] sm:$0xf]
    %v1106 = vld [vmem:[%s3 + $0x98] sm:$0xf]
    %v1107 = vld [vmem:[%s3 + $0x9c] sm:$0xf]
    %v1108 = vld [vmem:[%s3 + $0xa0] sm:$0xf]
    %v1109 = vld [vmem:[%s3 + $0xa4] sm:$0xf]
    %v1110 = vld [vmem:[%s3 + $0xa8] sm:$0xf]
    %v1111 = vld [vmem:[%s3 + $0xac] sm:$0xf]
    %v1112 = vld [vmem:[%s3 + $0xb0] sm:$0xf]
    %v1113 = vld [vmem:[%s3 + $0xb4] sm:$0xf]
    %v1114 = vld [vmem:[%s3 + $0xb8] sm:$0xf]
    %v1115 = vld [vmem:[%s3 + $0xbc] sm:$0xf]
    %v1116 = vld [vmem:[%s3 + $0xc0] sm:$0xf]
    %v1117 = vld [vmem:[%s3 + $0xc4] sm:$0xf]
    %v1118 = vld [vmem:[%s3 + $0xc8] sm:$0xf]
    %v1119 = vld [vmem:[%s3 + $0xcc] sm:$0xf]
    %v1120 = vld [vmem:[%s3 + $0xd0] sm:$0xf]
    %v1121 = vld [vmem:[%s3 + $0xd4] sm:$0xf]
    %v1122 = vld [vmem:[%s3 + $0xd8] sm:$0xf]
    %v1123 = vld [vmem:[%s3 + $0xdc] sm:$0xf]
    %v1124 = vld [vmem:[%s3 + $0xe0] sm:$0xf]
    %v1125 = vld [vmem:[%s3 + $0xe4] sm:$0xf]
    %v1126 = vld [vmem:[%s3 + $0xe8] sm:$0xf]
    %v1127 = vld [vmem:[%s3 + $0xec] sm:$0xf]
    %v1128 = vld [vmem:[%s3 + $0xf0] sm:$0xf]
    %v1129 = vld [vmem:[%s3 + $0xf4] sm:$0xf]
    %v1130 = vld [vmem:[%s3 + $0xf8] sm:$0xf]
    %v1131 = vld [vmem:[%s3 + $0xfc] sm:$0xf]
    %v1132 = vld [vmem:[%s3 + $0x100] sm:$0xf]
    %v1133 = vld [vmem:[%s3 + $0x104] sm:$0xf]
    %v1134 = vld [vmem:[%s3 + $0x108] sm:$0xf]
    %v1135 = vld [vmem:[%s3 + $0x10c] sm:$0xf]
    %v1136 = vld [vmem:[%s3 + $0x110] sm:$0xf]
    %v1137 = vld [vmem:[%s3 + $0x114] sm:$0xf]
    %v1138 = vld [vmem:[%s3 + $0x118] sm:$0xf]
    %v1139 = vld [vmem:[%s3 + $0x11c] sm:$0xf]
    %v1140 = vld [vmem:[%s3 + $0x120] sm:$0xf]
    %v1141 = vld [vmem:[%s3 + $0x124] sm:$0xf]
    %v1142 = vld [vmem:[%s3 + $0x128] sm:$0xf]
    %v1143 = vld [vmem:[%s3 + $0x12c] sm:$0xf]
    %v1144 = vld [vmem:[%s3 + $0x130] sm:$0xf]
    %v1145 = vld [vmem:[%s3 + $0x134] sm:$0xf]
    %v1146 = vld [vmem:[%s3 + $0x138] sm:$0xf]
    %v1147 = vld [vmem:[%s3 + $0x13c] sm:$0xf]
    %v1148 = vld [vmem:[%s3 + $0x140] sm:$0xf]
    %v1149 = vld [vmem:[%s3 + $0x144] sm:$0xf]
    %v1150 = vld [vmem:[%s3 + $0x148] sm:$0xf]
    %v1151 = vld [vmem:[%s3 + $0x14c] sm:$0xf]
    %v1152 = vld [vmem:[%s3 + $0x150] sm:$0xf]
    %v1153 = vld [vmem:[%s3 + $0x154] sm:$0xf]
    %v1154 = vld [vmem:[%s3 + $0x158] sm:$0xf]
    %v1155 = vld [vmem:[%s3 + $0x15c] sm:$0xf]
    %v1156 = vld [vmem:[%s3 + $0x160] sm:$0xf]
    %v1157 = vld [vmem:[%s3 + $0x164] sm:$0xf]
    %v1158 = vld [vmem:[%s3 + $0x168] sm:$0xf]
    %v1159 = vld [vmem:[%s3 + $0x16c] sm:$0xf]
    %v1160 = vld [vmem:[%s3 + $0x170] sm:$0xf]
    %v1161 = vld [vmem:[%s3 + $0x174] sm:$0xf]
    %v1162 = vld [vmem:[%s3 + $0x178] sm:$0xf]
    %v1163 = vld [vmem:[%s3 + $0x17c] sm:$0xf]
    %v1164 = vld [vmem:[%s3 + $0x180] sm:$0xf]
    %v1165 = vld [vmem:[%s3 + $0x184] sm:$0xf]
    %v1166 = vld [vmem:[%s3 + $0x188] sm:$0xf]
    %v1167 = vld [vmem:[%s3 + $0x18c] sm:$0xf]
    %v1168 = vld [vmem:[%s3 + $0x190] sm:$0xf]
    %v1169 = vld [vmem:[%s3 + $0x194] sm:$0xf]
    %v1170 = vld [vmem:[%s3 + $0x198] sm:$0xf]
    %v1171 = vld [vmem:[%s3 + $0x19c] sm:$0xf]
    %v1172 = vld [vmem:[%s3 + $0x1a0] sm:$0xf]
    %v1173 = vld [vmem:[%s3 + $0x1a4] sm:$0xf]
    %v1174 = vld [vmem:[%s3 + $0x1a8] sm:$0xf]
    %v1175 = vld [vmem:[%s3 + $0x1ac] sm:$0xf]
    %v1176 = vld [vmem:[%s3 + $0x1b0] sm:$0xf]
    %v1177 = vld [vmem:[%s3 + $0x1b4] sm:$0xf]
    %v1178 = vld [vmem:[%s3 + $0x1b8] sm:$0xf]
    %v1179 = vld [vmem:[%s3 + $0x1bc] sm:$0xf]
    %v1180 = vld [vmem:[%s3 + $0x1c0] sm:$0xf]
    %v1181 = vld [vmem:[%s3 + $0x1c4] sm:$0xf]
    %v1182 = vld [vmem:[%s3 + $0x1c8] sm:$0xf]
    %v1183 = vld [vmem:[%s3 + $0x1cc] sm:$0xf]
    %v1184 = vld [vmem:[%s3 + $0x1d0] sm:$0xf]
    %v1185 = vld [vmem:[%s3 + $0x1d4] sm:$0xf]
    %v1186 = vld [vmem:[%s3 + $0x1d8] sm:$0xf]
    %v1187 = vld [vmem:[%s3 + $0x1dc] sm:$0xf]
    %v1188 = vld [vmem:[%s3 + $0x1e0] sm:$0xf]
    %v1189 = vld [vmem:[%s3 + $0x1e4] sm:$0xf]
    %v1190 = vld [vmem:[%s3 + $0x1e8] sm:$0xf]
    %v1191 = vld [vmem:[%s3 + $0x1ec] sm:$0xf]
    %v1192 = vld [vmem:[%s3 + $0x1f0] sm:$0xf]
    %v1193 = vld [vmem:[%s3 + $0x1f4] sm:$0xf]
    %v1194 = vld [vmem:[%s3 + $0x1f8] sm:$0xf]
    %v1195 = vld [vmem:[%s3 + $0x1fc] sm:$0xf]
    %v1196 = vld [vmem:[%s4] sm:$0x1]
    %v1198 = vlaneseq
    %v1199 = vshrl.u32 %v1198, 7
    %v1200 = vsub.s32 0, %v1199
    %v1201 = vrot.slane %v1196, %v1200
    %v1331 = vunpack.c.l.b16 %v1068
    %v1332 = vunpack.c.l.b16 %v1069
    %v1333 = vunpack.c.l.b16 %v1070
    %v1334 = vunpack.c.l.b16 %v1071
    %v1335 = vunpack.c.l.b16 %v1072
    %v1336 = vunpack.c.l.b16 %v1073
    %v1337 = vunpack.c.l.b16 %v1074
    %v1338 = vunpack.c.l.b16 %v1075
    %v1339 = vunpack.c.l.b16 %v1076
    %v1340 = vunpack.c.l.b16 %v1077
    %v1341 = vunpack.c.l.b16 %v1078
    %v1342 = vunpack.c.l.b16 %v1079
    %v1343 = vunpack.c.l.b16 %v1080
    %v1344 = vunpack.c.l.b16 %v1081
    %v1345 = vunpack.c.l.b16 %v1082
    %v1346 = vunpack.c.l.b16 %v1083
    %v1347 = vunpack.c.l.b16 %v1084
    %v1348 = vunpack.c.l.b16 %v1085
    %v1349 = vunpack.c.l.b16 %v1086
    %v1350 = vunpack.c.l.b16 %v1087
    %v1351 = vunpack.c.l.b16 %v1088
    %v1352 = vunpack.c.l.b16 %v1089
    %v1353 = vunpack.c.l.b16 %v1090
    %v1354 = vunpack.c.l.b16 %v1091
    %v1355 = vunpack.c.l.b16 %v1092
    %v1356 = vunpack.c.l.b16 %v1093
    %v1357 = vunpack.c.l.b16 %v1094
    %v1358 = vunpack.c.l.b16 %v1095
    %v1359 = vunpack.c.l.b16 %v1096
    %v1360 = vunpack.c.l.b16 %v1097
    %v1361 = vunpack.c.l.b16 %v1098
    %v1362 = vunpack.c.l.b16 %v1099
    %v1363 = vunpack.c.l.b16 %v1100
    %v1364 = vunpack.c.l.b16 %v1101
    %v1365 = vunpack.c.l.b16 %v1102
    %v1366 = vunpack.c.l.b16 %v1103
    %v1367 = vunpack.c.l.b16 %v1104
    %v1368 = vunpack.c.l.b16 %v1105
    %v1369 = vunpack.c.l.b16 %v1106
    %v1370 = vunpack.c.l.b16 %v1107
    %v1371 = vunpack.c.l.b16 %v1108
    %v1372 = vunpack.c.l.b16 %v1109
    %v1373 = vunpack.c.l.b16 %v1110
    %v1374 = vunpack.c.l.b16 %v1111
    %v1375 = vunpack.c.l.b16 %v1112
    %v1376 = vunpack.c.l.b16 %v1113
    %v1377 = vunpack.c.l.b16 %v1114
    %v1378 = vunpack.c.l.b16 %v1115
    %v1379 = vunpack.c.l.b16 %v1116
    %v1380 = vunpack.c.l.b16 %v1117
    %v1381 = vunpack.c.l.b16 %v1118
    %v1382 = vunpack.c.l.b16 %v1119
    %v1383 = vunpack.c.l.b16 %v1120
    %v1384 = vunpack.c.l.b16 %v1121
    %v1385 = vunpack.c.l.b16 %v1122
    %v1386 = vunpack.c.l.b16 %v1123
    %v1387 = vunpack.c.l.b16 %v1124
    %v1388 = vunpack.c.l.b16 %v1125
    %v1389 = vunpack.c.l.b16 %v1126
    %v1390 = vunpack.c.l.b16 %v1127
    %v1391 = vunpack.c.l.b16 %v1128
    %v1392 = vunpack.c.l.b16 %v1129
    %v1393 = vunpack.c.l.b16 %v1130
    %v1394 = vunpack.c.l.b16 %v1131
    %v1395 = vunpack.c.l.b16 %v1132
    %v1396 = vunpack.c.l.b16 %v1133
    %v1397 = vunpack.c.l.b16 %v1134
    %v1398 = vunpack.c.l.b16 %v1135
    %v1399 = vunpack.c.l.b16 %v1136
    %v1400 = vunpack.c.l.b16 %v1137
    %v1401 = vunpack.c.l.b16 %v1138
    %v1402 = vunpack.c.l.b16 %v1139
    %v1403 = vunpack.c.l.b16 %v1140
    %v1404 = vunpack.c.l.b16 %v1141
    %v1405 = vunpack.c.l.b16 %v1142
    %v1406 = vunpack.c.l.b16 %v1143
    %v1407 = vunpack.c.l.b16 %v1144
    %v1408 = vunpack.c.l.b16 %v1145
    %v1409 = vunpack.c.l.b16 %v1146
    %v1410 = vunpack.c.l.b16 %v1147
    %v1411 = vunpack.c.l.b16 %v1148
    %v1412 = vunpack.c.l.b16 %v1149
    %v1413 = vunpack.c.l.b16 %v1150
    %v1414 = vunpack.c.l.b16 %v1151
    %v1415 = vunpack.c.l.b16 %v1152
    %v1416 = vunpack.c.l.b16 %v1153
    %v1417 = vunpack.c.l.b16 %v1154
    %v1418 = vunpack.c.l.b16 %v1155
    %v1419 = vunpack.c.l.b16 %v1156
    %v1420 = vunpack.c.l.b16 %v1157
    %v1421 = vunpack.c.l.b16 %v1158
    %v1422 = vunpack.c.l.b16 %v1159
    %v1423 = vunpack.c.l.b16 %v1160
    %v1424 = vunpack.c.l.b16 %v1161
    %v1425 = vunpack.c.l.b16 %v1162
    %v1426 = vunpack.c.l.b16 %v1163
    %v1427 = vunpack.c.l.b16 %v1164
    %v1428 = vunpack.c.l.b16 %v1165
    %v1429 = vunpack.c.l.b16 %v1166
    %v1430 = vunpack.c.l.b16 %v1167
    %v1431 = vunpack.c.l.b16 %v1168
    %v1432 = vunpack.c.l.b16 %v1169
    %v1433 = vunpack.c.l.b16 %v1170
    %v1434 = vunpack.c.l.b16 %v1171
    %v1435 = vunpack.c.l.b16 %v1172
    %v1436 = vunpack.c.l.b16 %v1173
    %v1437 = vunpack.c.l.b16 %v1174
    %v1438 = vunpack.c.l.b16 %v1175
    %v1439 = vunpack.c.l.b16 %v1176
    %v1440 = vunpack.c.l.b16 %v1177
    %v1441 = vunpack.c.l.b16 %v1178
    %v1442 = vunpack.c.l.b16 %v1179
    %v1443 = vunpack.c.l.b16 %v1180
    %v1444 = vunpack.c.l.b16 %v1181
    %v1445 = vunpack.c.l.b16 %v1182
    %v1446 = vunpack.c.l.b16 %v1183
    %v1447 = vunpack.c.l.b16 %v1184
    %v1448 = vunpack.c.l.b16 %v1185
    %v1449 = vunpack.c.l.b16 %v1186
    %v1450 = vunpack.c.l.b16 %v1187
    %v1451 = vunpack.c.l.b16 %v1188
    %v1452 = vunpack.c.l.b16 %v1189
    %v1453 = vunpack.c.l.b16 %v1190
    %v1454 = vunpack.c.l.b16 %v1191
    %v1455 = vunpack.c.l.b16 %v1192
    %v1456 = vunpack.c.l.b16 %v1193
    %v1457 = vunpack.c.l.b16 %v1194
    %v1458 = vunpack.c.l.b16 %v1195
    %v1459 = vpack.c.b16 %v1332, %v1331
    %v1460 = vpack.c.b16 %v1334, %v1333
    %v1461 = vpack.c.b16 %v1336, %v1335
    %v1462 = vpack.c.b16 %v1338, %v1337
    %v1463 = vpack.c.b16 %v1340, %v1339
    %v1464 = vpack.c.b16 %v1342, %v1341
    %v1465 = vpack.c.b16 %v1344, %v1343
    %v1466 = vpack.c.b16 %v1346, %v1345
    %v1467 = vpack.c.b16 %v1348, %v1347
    %v1468 = vpack.c.b16 %v1350, %v1349
    %v1469 = vpack.c.b16 %v1352, %v1351
    %v1470 = vpack.c.b16 %v1354, %v1353
    %v1471 = vpack.c.b16 %v1356, %v1355
    %v1472 = vpack.c.b16 %v1358, %v1357
    %v1473 = vpack.c.b16 %v1360, %v1359
    %v1474 = vpack.c.b16 %v1362, %v1361
    %v1475 = vpack.c.b16 %v1364, %v1363
    %v1476 = vpack.c.b16 %v1366, %v1365
    %v1477 = vpack.c.b16 %v1368, %v1367
    %v1478 = vpack.c.b16 %v1370, %v1369
    %v1479 = vpack.c.b16 %v1372, %v1371
    %v1480 = vpack.c.b16 %v1374, %v1373
    %v1481 = vpack.c.b16 %v1376, %v1375
    %v1482 = vpack.c.b16 %v1378, %v1377
    %v1483 = vpack.c.b16 %v1380, %v1379
    %v1484 = vpack.c.b16 %v1382, %v1381
    %v1485 = vpack.c.b16 %v1384, %v1383
    %v1486 = vpack.c.b16 %v1386, %v1385
    %v1487 = vpack.c.b16 %v1388, %v1387
    %v1488 = vpack.c.b16 %v1390, %v1389
    %v1489 = vpack.c.b16 %v1392, %v1391
    %v1490 = vpack.c.b16 %v1394, %v1393
    %v1491 = vpack.c.b16 %v1396, %v1395
    %v1492 = vpack.c.b16 %v1398, %v1397
    %v1493 = vpack.c.b16 %v1400, %v1399
    %v1494 = vpack.c.b16 %v1402, %v1401
    %v1495 = vpack.c.b16 %v1404, %v1403
    %v1496 = vpack.c.b16 %v1406, %v1405
    %v1497 = vpack.c.b16 %v1408, %v1407
    %v1498 = vpack.c.b16 %v1410, %v1409
    %v1499 = vpack.c.b16 %v1412, %v1411
    %v1500 = vpack.c.b16 %v1414, %v1413
    %v1501 = vpack.c.b16 %v1416, %v1415
    %v1502 = vpack.c.b16 %v1418, %v1417
    %v1503 = vpack.c.b16 %v1420, %v1419
    %v1504 = vpack.c.b16 %v1422, %v1421
    %v1505 = vpack.c.b16 %v1424, %v1423
    %v1506 = vpack.c.b16 %v1426, %v1425
    %v1507 = vpack.c.b16 %v1428, %v1427
    %v1508 = vpack.c.b16 %v1430, %v1429
    %v1509 = vpack.c.b16 %v1432, %v1431
    %v1510 = vpack.c.b16 %v1434, %v1433
    %v1511 = vpack.c.b16 %v1436, %v1435
    %v1512 = vpack.c.b16 %v1438, %v1437
    %v1513 = vpack.c.b16 %v1440, %v1439
    %v1514 = vpack.c.b16 %v1442, %v1441
    %v1515 = vpack.c.b16 %v1444, %v1443
    %v1516 = vpack.c.b16 %v1446, %v1445
    %v1517 = vpack.c.b16 %v1448, %v1447
    %v1518 = vpack.c.b16 %v1450, %v1449
    %v1519 = vpack.c.b16 %v1452, %v1451
    %v1520 = vpack.c.b16 %v1454, %v1453
    %v1521 = vpack.c.b16 %v1456, %v1455
    %v1522 = vpack.c.b16 %v1458, %v1457
    %1587 = vmatprep.subr.bf16.mxu0 0
    %1588 = vmatpush1.bf16.msra.mxu0 %v1459
    %1589 = vmatprep.subr.bf16.mxu0 0
    %1590 = vmatpush1.bf16.msra.mxu0 %v1460
    %1591 = vmatprep.subr.bf16.mxu0 0
    %1592 = vmatpush1.bf16.msra.mxu0 %v1461
    %1593 = vmatprep.subr.bf16.mxu0 0
    %1594 = vmatpush1.bf16.msra.mxu0 %v1462
    %1595 = vmatprep.subr.bf16.mxu0 0
    %1596 = vmatpush1.bf16.msra.mxu0 %v1463
    %1597 = vmatprep.subr.bf16.mxu0 0
    %1598 = vmatpush1.bf16.msra.mxu0 %v1464
    %1599 = vmatprep.subr.bf16.mxu0 0
    %1600 = vmatpush1.bf16.msra.mxu0 %v1465
    %1601 = vmatprep.subr.bf16.mxu0 0
    %1602 = vmatpush1.bf16.msra.mxu0 %v1466
    %1603 = vmatprep.subr.bf16.mxu0 0
    %1604 = vmatpush1.bf16.msra.mxu0 %v1467
    %1605 = vmatprep.subr.bf16.mxu0 0
    %1606 = vmatpush1.bf16.msra.mxu0 %v1468
    %1607 = vmatprep.subr.bf16.mxu0 0
    %1608 = vmatpush1.bf16.msra.mxu0 %v1469
    %1609 = vmatprep.subr.bf16.mxu0 0
    %1610 = vmatpush1.bf16.msra.mxu0 %v1470
    %1611 = vmatprep.subr.bf16.mxu0 0
    %1612 = vmatpush1.bf16.msra.mxu0 %v1471
    %1613 = vmatprep.subr.bf16.mxu0 0
    %1614 = vmatpush1.bf16.msra.mxu0 %v1472
    %1615 = vmatprep.subr.bf16.mxu0 0
    %1616 = vmatpush1.bf16.msra.mxu0 %v1473
    %1617 = vmatprep.subr.bf16.mxu0 0
    %1618 = vmatpush1.bf16.msra.mxu0 %v1474
    %1619 = vmatprep.mubr.bf16.mxu0 %v1061
    %1620 = vmatmul.mubr.bf16.gmra.mrb[0].mxu0 %v1060
    %v1621 = vpop.f32.mrb[0].mxu0
    %v1622 = vadd.f32 %v1201, %v1621
    %v1623 = vpop.f32.mrb[0].mxu0
    %v1624 = vpop.f32.mrb[0].mxu0
    %v1625 = vpop.f32.mrb[0].mxu0
    %1626 = vdwg.mxu0
    %1627 = vmatprep.subr.bf16.mxu0 0
    %1628 = vmatpush1.bf16.msra.mxu0 %v1475
    %1629 = vmatprep.subr.bf16.mxu0 0
    %1630 = vmatpush1.bf16.msra.mxu0 %v1476
    %1631 = vmatprep.subr.bf16.mxu0 0
    %1632 = vmatpush1.bf16.msra.mxu0 %v1477
    %1633 = vmatprep.subr.bf16.mxu0 0
    %1634 = vmatpush1.bf16.msra.mxu0 %v1478
    %1635 = vmatprep.subr.bf16.mxu0 0
    %1636 = vmatpush1.bf16.msra.mxu0 %v1479
    %1637 = vmatprep.subr.bf16.mxu0 0
    %1638 = vmatpush1.bf16.msra.mxu0 %v1480
    %1639 = vmatprep.subr.bf16.mxu0 0
    %1640 = vmatpush1.bf16.msra.mxu0 %v1481
    %1641 = vmatprep.subr.bf16.mxu0 0
    %1642 = vmatpush1.bf16.msra.mxu0 %v1482
    %1643 = vmatprep.subr.bf16.mxu0 0
    %1644 = vmatpush1.bf16.msra.mxu0 %v1483
    %1645 = vmatprep.subr.bf16.mxu0 0
    %1646 = vmatpush1.bf16.msra.mxu0 %v1484
    %1647 = vmatprep.subr.bf16.mxu0 0
    %1648 = vmatpush1.bf16.msra.mxu0 %v1485
    %1649 = vmatprep.subr.bf16.mxu0 0
    %1650 = vmatpush1.bf16.msra.mxu0 %v1486
    %1651 = vmatprep.subr.bf16.mxu0 0
    %1652 = vmatpush1.bf16.msra.mxu0 %v1487
    %1653 = vmatprep.subr.bf16.mxu0 0
    %1654 = vmatpush1.bf16.msra.mxu0 %v1488
    %1655 = vmatprep.subr.bf16.mxu0 0
    %1656 = vmatpush1.bf16.msra.mxu0 %v1489
    %1657 = vmatprep.subr.bf16.mxu0 0
    %1658 = vmatpush1.bf16.msra.mxu0 %v1490
    %1659 = vmatprep.mubr.bf16.mxu0 %v1063
    %1660 = vmatmul.mubr.bf16.gmra.mrb[0].mxu0 %v1062
    %v1661 = vpop.f32.mrb[0].mxu0
    %v1662 = vadd.f32 %v1622, %v1661
    %v1663 = vpop.f32.mrb[0].mxu0
    %v1664 = vpop.f32.mrb[0].mxu0
    %v1665 = vpop.f32.mrb[0].mxu0
    %1666 = vdwg.mxu0
    %1667 = vmatprep.subr.bf16.mxu0 0
    %1668 = vmatpush1.bf16.msra.mxu0 %v1491
    %1669 = vmatprep.subr.bf16.mxu0 0
    %1670 = vmatpush1.bf16.msra.mxu0 %v1492
    %1671 = vmatprep.subr.bf16.mxu0 0
    %1672 = vmatpush1.bf16.msra.mxu0 %v1493
    %1673 = vmatprep.subr.bf16.mxu0 0
    %1674 = vmatpush1.bf16.msra.mxu0 %v1494
    %1675 = vmatprep.subr.bf16.mxu0 0
    %1676 = vmatpush1.bf16.msra.mxu0 %v1495
    %1677 = vmatprep.subr.bf16.mxu0 0
    %1678 = vmatpush1.bf16.msra.mxu0 %v1496
    %1679 = vmatprep.subr.bf16.mxu0 0
    %1680 = vmatpush1.bf16.msra.mxu0 %v1497
    %1681 = vmatprep.subr.bf16.mxu0 0
    %1682 = vmatpush1.bf16.msra.mxu0 %v1498
    %1683 = vmatprep.subr.bf16.mxu0 0
    %1684 = vmatpush1.bf16.msra.mxu0 %v1499
    %1685 = vmatprep.subr.bf16.mxu0 0
    %1686 = vmatpush1.bf16.msra.mxu0 %v1500
    %1687 = vmatprep.subr.bf16.mxu0 0
    %1688 = vmatpush1.bf16.msra.mxu0 %v1501
    %1689 = vmatprep.subr.bf16.mxu0 0
    %1690 = vmatpush1.bf16.msra.mxu0 %v1502
    %1691 = vmatprep.subr.bf16.mxu0 0
    %1692 = vmatpush1.bf16.msra.mxu0 %v1503
    %1693 = vmatprep.subr.bf16.mxu0 0
    %1694 = vmatpush1.bf16.msra.mxu0 %v1504
    %1695 = vmatprep.subr.bf16.mxu0 0
    %1696 = vmatpush1.bf16.msra.mxu0 %v1505
    %1697 = vmatprep.subr.bf16.mxu0 0
    %1698 = vmatpush1.bf16.msra.mxu0 %v1506
    %1699 = vmatprep.mubr.bf16.mxu0 %v1065
    %1700 = vmatmul.mubr.bf16.gmra.mrb[0].mxu0 %v1064
    %v1701 = vpop.f32.mrb[0].mxu0
    %v1702 = vadd.f32 %v1662, %v1701
    %v1703 = vpop.f32.mrb[0].mxu0
    %v1704 = vpop.f32.mrb[0].mxu0
    %v1705 = vpop.f32.mrb[0].mxu0
    %1706 = vdwg.mxu0
    %1707 = vmatprep.subr.bf16.mxu0 0
    %1708 = vmatpush1.bf16.msra.mxu0 %v1507
    %1709 = vmatprep.subr.bf16.mxu0 0
    %1710 = vmatpush1.bf16.msra.mxu0 %v1508
    %1711 = vmatprep.subr.bf16.mxu0 0
    %1712 = vmatpush1.bf16.msra.mxu0 %v1509
    %1713 = vmatprep.subr.bf16.mxu0 0
    %1714 = vmatpush1.bf16.msra.mxu0 %v1510
    %1715 = vmatprep.subr.bf16.mxu0 0
    %1716 = vmatpush1.bf16.msra.mxu0 %v1511
    %1717 = vmatprep.subr.bf16.mxu0 0
    %1718 = vmatpush1.bf16.msra.mxu0 %v1512
    %1719 = vmatprep.subr.bf16.mxu0 0
    %1720 = vmatpush1.bf16.msra.mxu0 %v1513
    %1721 = vmatprep.subr.bf16.mxu0 0
    %1722 = vmatpush1.bf16.msra.mxu0 %v1514
    %1723 = vmatprep.subr.bf16.mxu0 0
    %1724 = vmatpush1.bf16.msra.mxu0 %v1515
    %1725 = vmatprep.subr.bf16.mxu0 0
    %1726 = vmatpush1.bf16.msra.mxu0 %v1516
    %1727 = vmatprep.subr.bf16.mxu0 0
    %1728 = vmatpush1.bf16.msra.mxu0 %v1517
    %1729 = vmatprep.subr.bf16.mxu0 0
    %1730 = vmatpush1.bf16.msra.mxu0 %v1518
    %1731 = vmatprep.subr.bf16.mxu0 0
    %1732 = vmatpush1.bf16.msra.mxu0 %v1519
    %1733 = vmatprep.subr.bf16.mxu0 0
    %1734 = vmatpush1.bf16.msra.mxu0 %v1520
    %1735 = vmatprep.subr.bf16.mxu0 0
    %1736 = vmatpush1.bf16.msra.mxu0 %v1521
    %1737 = vmatprep.subr.bf16.mxu0 0
    %1738 = vmatpush1.bf16.msra.mxu0 %v1522
    %1739 = vmatprep.mubr.bf16.mxu0 %v1067
    %1740 = vmatmul.mubr.bf16.gmra.mrb[0].mxu0 %v1066
    %v1741 = vpop.f32.mrb[0].mxu0
    %v1742 = vadd.f32 %v1702, %v1741
    %v1743 = vpop.f32.mrb[0].mxu0
    %v1744 = vpop.f32.mrb[0].mxu0
    %v1745 = vpop.f32.mrb[0].mxu0
    %1746 = vdwg.mxu0
    %1747 = vst [vmem:[#allocation2] sm:$0x3] %v1742
    %v1748 = vpack.c.bf16 %v1742, %v1742
    %v1749 = vld [vmem:[%s5] sm:$0xff]
    %v1750 = vld [vmem:[%s5 + $0x8] sm:$0xff]
    %v1751 = vld [vmem:[%s5 + $0x10] sm:$0xff]
    %v1752 = vld [vmem:[%s5 + $0x18] sm:$0xff]
    %v1753 = vld [vmem:[%s5 + $0x20] sm:$0xff]
    %v1754 = vld [vmem:[%s5 + $0x28] sm:$0xff]
    %v1755 = vld [vmem:[%s5 + $0x30] sm:$0xff]
    %v1756 = vld [vmem:[%s5 + $0x38] sm:$0xff]
    %v1757 = vld [vmem:[%s5 + $0x40] sm:$0xff]
    %v1758 = vld [vmem:[%s5 + $0x48] sm:$0xff]
    %v1759 = vld [vmem:[%s5 + $0x50] sm:$0xff]
    %v1760 = vld [vmem:[%s5 + $0x58] sm:$0xff]
    %v1761 = vld [vmem:[%s5 + $0x60] sm:$0xff]
    %v1762 = vld [vmem:[%s5 + $0x68] sm:$0xff]
    %v1763 = vld [vmem:[%s5 + $0x70] sm:$0xff]
    %v1764 = vld [vmem:[%s5 + $0x78] sm:$0xff]
    %v1765 = vld [vmem:[%s5 + $0x80] sm:$0xff]
    %v1766 = vld [vmem:[%s5 + $0x88] sm:$0xff]
    %v1767 = vld [vmem:[%s5 + $0x90] sm:$0xff]
    %v1768 = vld [vmem:[%s5 + $0x98] sm:$0xff]
    %v1769 = vld [vmem:[%s5 + $0xa0] sm:$0xff]
    %v1770 = vld [vmem:[%s5 + $0xa8] sm:$0xff]
    %v1771 = vld [vmem:[%s5 + $0xb0] sm:$0xff]
    %v1772 = vld [vmem:[%s5 + $0xb8] sm:$0xff]
    %v1773 = vld [vmem:[%s5 + $0xc0] sm:$0xff]
    %v1774 = vld [vmem:[%s5 + $0xc8] sm:$0xff]
    %v1775 = vld [vmem:[%s5 + $0xd0] sm:$0xff]
    %v1776 = vld [vmem:[%s5 + $0xd8] sm:$0xff]
    %v1777 = vld [vmem:[%s5 + $0xe0] sm:$0xff]
    %v1778 = vld [vmem:[%s5 + $0xe8] sm:$0xff]
    %v1779 = vld [vmem:[%s5 + $0xf0] sm:$0xff]
    %v1780 = vld [vmem:[%s5 + $0xf8] sm:$0xff]
    %v1781 = vld [vmem:[%s5 + $0x100] sm:$0xff]
    %v1782 = vld [vmem:[%s5 + $0x108] sm:$0xff]
    %v1783 = vld [vmem:[%s5 + $0x110] sm:$0xff]
    %v1784 = vld [vmem:[%s5 + $0x118] sm:$0xff]
    %v1785 = vld [vmem:[%s5 + $0x120] sm:$0xff]
    %v1786 = vld [vmem:[%s5 + $0x128] sm:$0xff]
    %v1787 = vld [vmem:[%s5 + $0x130] sm:$0xff]
    %v1788 = vld [vmem:[%s5 + $0x138] sm:$0xff]
    %v1789 = vld [vmem:[%s5 + $0x140] sm:$0xff]
    %v1790 = vld [vmem:[%s5 + $0x148] sm:$0xff]
    %v1791 = vld [vmem:[%s5 + $0x150] sm:$0xff]
    %v1792 = vld [vmem:[%s5 + $0x158] sm:$0xff]
    %v1793 = vld [vmem:[%s5 + $0x160] sm:$0xff]
    %v1794 = vld [vmem:[%s5 + $0x168] sm:$0xff]
    %v1795 = vld [vmem:[%s5 + $0x170] sm:$0xff]
    %v1796 = vld [vmem:[%s5 + $0x178] sm:$0xff]
    %v1797 = vld [vmem:[%s5 + $0x180] sm:$0xff]
    %v1798 = vld [vmem:[%s5 + $0x188] sm:$0xff]
    %v1799 = vld [vmem:[%s5 + $0x190] sm:$0xff]
    %v1800 = vld [vmem:[%s5 + $0x198] sm:$0xff]
    %v1801 = vld [vmem:[%s5 + $0x1a0] sm:$0xff]
    %v1802 = vld [vmem:[%s5 + $0x1a8] sm:$0xff]
    %v1803 = vld [vmem:[%s5 + $0x1b0] sm:$0xff]
    %v1804 = vld [vmem:[%s5 + $0x1b8] sm:$0xff]
    %v1805 = vld [vmem:[%s5 + $0x1c0] sm:$0xff]
    %v1806 = vld [vmem:[%s5 + $0x1c8] sm:$0xff]
    %v1807 = vld [vmem:[%s5 + $0x1d0] sm:$0xff]
    %v1808 = vld [vmem:[%s5 + $0x1d8] sm:$0xff]
    %v1809 = vld [vmem:[%s5 + $0x1e0] sm:$0xff]
    %v1810 = vld [vmem:[%s5 + $0x1e8] sm:$0xff]
    %v1811 = vld [vmem:[%s5 + $0x1f0] sm:$0xff]
    %v1812 = vld [vmem:[%s5 + $0x1f8] sm:$0xff]
    %v1813 = vld [vmem:[%s6] sm:$0xff]
    %v1815 = vlaneseq
    %v1816 = vshrl.u32 %v1815, 7
    %v1817 = vsub.s32 0, %v1816
    %v1818 = vrot.slane %v1813, %v1817
    %v1819 = vlaneseq
    %v1820 = vshrl.u32 %v1819, 7
    %v1821 = vsub.s32 1, %v1820
    %v1822 = vrot.slane %v1813, %v1821
    %v1823 = vlaneseq
    %v1824 = vshrl.u32 %v1823, 7
    %v1825 = vsub.s32 2, %v1824
    %v1826 = vrot.slane %v1813, %v1825
    %v1827 = vlaneseq
    %v1828 = vshrl.u32 %v1827, 7
    %v1829 = vsub.s32 3, %v1828
    %v1830 = vrot.slane %v1813, %v1829
    %v1831 = vlaneseq
    %v1832 = vshrl.u32 %v1831, 7
    %v1833 = vsub.s32 4, %v1832
    %v1834 = vrot.slane %v1813, %v1833
    %v1835 = vlaneseq
    %v1836 = vshrl.u32 %v1835, 7
    %v1837 = vsub.s32 5, %v1836
    %v1838 = vrot.slane %v1813, %v1837
    %v1839 = vlaneseq
    %v1840 = vshrl.u32 %v1839, 7
    %v1841 = vsub.s32 6, %v1840
    %v1842 = vrot.slane %v1813, %v1841
    %v1843 = vlaneseq
    %v1844 = vshrl.u32 %v1843, 7
    %v1845 = vsub.s32 7, %v1844
    %v1846 = vrot.slane %v1813, %v1845
    %v1919 = vunpack.c.l.b16 %v1749
    %v1920 = vunpack.c.h.b16 %v1749
    %v1921 = vunpack.c.l.b16 %v1750
    %v1922 = vunpack.c.h.b16 %v1750
    %v1923 = vunpack.c.l.b16 %v1751
    %v1924 = vunpack.c.h.b16 %v1751
    %v1925 = vunpack.c.l.b16 %v1752
    %v1926 = vunpack.c.h.b16 %v1752
    %v1927 = vunpack.c.l.b16 %v1753
    %v1928 = vunpack.c.h.b16 %v1753
    %v1929 = vunpack.c.l.b16 %v1754
    %v1930 = vunpack.c.h.b16 %v1754
    %v1931 = vunpack.c.l.b16 %v1755
    %v1932 = vunpack.c.h.b16 %v1755
    %v1933 = vunpack.c.l.b16 %v1756
    %v1934 = vunpack.c.h.b16 %v1756
    %v1935 = vunpack.c.l.b16 %v1757
    %v1936 = vunpack.c.h.b16 %v1757
    %v1937 = vunpack.c.l.b16 %v1758
    %v1938 = vunpack.c.h.b16 %v1758
    %v1939 = vunpack.c.l.b16 %v1759
    %v1940 = vunpack.c.h.b16 %v1759
    %v1941 = vunpack.c.l.b16 %v1760
    %v1942 = vunpack.c.h.b16 %v1760
    %v1943 = vunpack.c.l.b16 %v1761
    %v1944 = vunpack.c.h.b16 %v1761
    %v1945 = vunpack.c.l.b16 %v1762
    %v1946 = vunpack.c.h.b16 %v1762
    %v1947 = vunpack.c.l.b16 %v1763
    %v1948 = vunpack.c.h.b16 %v1763
    %v1949 = vunpack.c.l.b16 %v1764
    %v1950 = vunpack.c.h.b16 %v1764
    %v1951 = vunpack.c.l.b16 %v1765
    %v1952 = vunpack.c.h.b16 %v1765
    %v1953 = vunpack.c.l.b16 %v1766
    %v1954 = vunpack.c.h.b16 %v1766
    %v1955 = vunpack.c.l.b16 %v1767
    %v1956 = vunpack.c.h.b16 %v1767
    %v1957 = vunpack.c.l.b16 %v1768
    %v1958 = vunpack.c.h.b16 %v1768
    %v1959 = vunpack.c.l.b16 %v1769
    %v1960 = vunpack.c.h.b16 %v1769
    %v1961 = vunpack.c.l.b16 %v1770
    %v1962 = vunpack.c.h.b16 %v1770
    %v1963 = vunpack.c.l.b16 %v1771
    %v1964 = vunpack.c.h.b16 %v1771
    %v1965 = vunpack.c.l.b16 %v1772
    %v1966 = vunpack.c.h.b16 %v1772
    %v1967 = vunpack.c.l.b16 %v1773
    %v1968 = vunpack.c.h.b16 %v1773
    %v1969 = vunpack.c.l.b16 %v1774
    %v1970 = vunpack.c.h.b16 %v1774
    %v1971 = vunpack.c.l.b16 %v1775
    %v1972 = vunpack.c.h.b16 %v1775
    %v1973 = vunpack.c.l.b16 %v1776
    %v1974 = vunpack.c.h.b16 %v1776
    %v1975 = vunpack.c.l.b16 %v1777
    %v1976 = vunpack.c.h.b16 %v1777
    %v1977 = vunpack.c.l.b16 %v1778
    %v1978 = vunpack.c.h.b16 %v1778
    %v1979 = vunpack.c.l.b16 %v1779
    %v1980 = vunpack.c.h.b16 %v1779
    %v1981 = vunpack.c.l.b16 %v1780
    %v1982 = vunpack.c.h.b16 %v1780
    %v1983 = vunpack.c.l.b16 %v1781
    %v1984 = vunpack.c.h.b16 %v1781
    %v1985 = vunpack.c.l.b16 %v1782
    %v1986 = vunpack.c.h.b16 %v1782
    %v1987 = vunpack.c.l.b16 %v1783
    %v1988 = vunpack.c.h.b16 %v1783
    %v1989 = vunpack.c.l.b16 %v1784
    %v1990 = vunpack.c.h.b16 %v1784
    %v1991 = vunpack.c.l.b16 %v1785
    %v1992 = vunpack.c.h.b16 %v1785
    %v1993 = vunpack.c.l.b16 %v1786
    %v1994 = vunpack.c.h.b16 %v1786
    %v1995 = vunpack.c.l.b16 %v1787
    %v1996 = vunpack.c.h.b16 %v1787
    %v1997 = vunpack.c.l.b16 %v1788
    %v1998 = vunpack.c.h.b16 %v1788
    %v1999 = vunpack.c.l.b16 %v1789
    %v2000 = vunpack.c.h.b16 %v1789
    %v2001 = vunpack.c.l.b16 %v1790
    %v2002 = vunpack.c.h.b16 %v1790
    %v2003 = vunpack.c.l.b16 %v1791
    %v2004 = vunpack.c.h.b16 %v1791
    %v2005 = vunpack.c.l.b16 %v1792
    %v2006 = vunpack.c.h.b16 %v1792
    %v2007 = vunpack.c.l.b16 %v1793
    %v2008 = vunpack.c.h.b16 %v1793
    %v2009 = vunpack.c.l.b16 %v1794
    %v2010 = vunpack.c.h.b16 %v1794
    %v2011 = vunpack.c.l.b16 %v1795
    %v2012 = vunpack.c.h.b16 %v1795
    %v2013 = vunpack.c.l.b16 %v1796
    %v2014 = vunpack.c.h.b16 %v1796
    %v2015 = vunpack.c.l.b16 %v1797
    %v2016 = vunpack.c.h.b16 %v1797
    %v2017 = vunpack.c.l.b16 %v1798
    %v2018 = vunpack.c.h.b16 %v1798
    %v2019 = vunpack.c.l.b16 %v1799
    %v2020 = vunpack.c.h.b16 %v1799
    %v2021 = vunpack.c.l.b16 %v1800
    %v2022 = vunpack.c.h.b16 %v1800
    %v2023 = vunpack.c.l.b16 %v1801
    %v2024 = vunpack.c.h.b16 %v1801
    %v2025 = vunpack.c.l.b16 %v1802
    %v2026 = vunpack.c.h.b16 %v1802
    %v2027 = vunpack.c.l.b16 %v1803
    %v2028 = vunpack.c.h.b16 %v1803
    %v2029 = vunpack.c.l.b16 %v1804
    %v2030 = vunpack.c.h.b16 %v1804
    %v2031 = vunpack.c.l.b16 %v1805
    %v2032 = vunpack.c.h.b16 %v1805
    %v2033 = vunpack.c.l.b16 %v1806
    %v2034 = vunpack.c.h.b16 %v1806
    %v2035 = vunpack.c.l.b16 %v1807
    %v2036 = vunpack.c.h.b16 %v1807
    %v2037 = vunpack.c.l.b16 %v1808
    %v2038 = vunpack.c.h.b16 %v1808
    %v2039 = vunpack.c.l.b16 %v1809
    %v2040 = vunpack.c.h.b16 %v1809
    %v2041 = vunpack.c.l.b16 %v1810
    %v2042 = vunpack.c.h.b16 %v1810
    %v2043 = vunpack.c.l.b16 %v1811
    %v2044 = vunpack.c.h.b16 %v1811
    %v2045 = vunpack.c.l.b16 %v1812
    %v2046 = vunpack.c.h.b16 %v1812
    %v2047 = vpack.c.b16 %v1927, %v1919
    %v2048 = vpack.c.b16 %v1928, %v1920
    %v2049 = vpack.c.b16 %v1929, %v1921
    %v2050 = vpack.c.b16 %v1930, %v1922
    %v2051 = vpack.c.b16 %v1931, %v1923
    %v2052 = vpack.c.b16 %v1932, %v1924
    %v2053 = vpack.c.b16 %v1933, %v1925
    %v2054 = vpack.c.b16 %v1934, %v1926
    %v2055 = vpack.c.b16 %v1943, %v1935
    %v2056 = vpack.c.b16 %v1944, %v1936
    %v2057 = vpack.c.b16 %v1945, %v1937
    %v2058 = vpack.c.b16 %v1946, %v1938
    %v2059 = vpack.c.b16 %v1947, %v1939
    %v2060 = vpack.c.b16 %v1948, %v1940
    %v2061 = vpack.c.b16 %v1949, %v1941
    %v2062 = vpack.c.b16 %v1950, %v1942
    %v2063 = vpack.c.b16 %v1959, %v1951
    %v2064 = vpack.c.b16 %v1960, %v1952
    %v2065 = vpack.c.b16 %v1961, %v1953
    %v2066 = vpack.c.b16 %v1962, %v1954
    %v2067 = vpack.c.b16 %v1963, %v1955
    %v2068 = vpack.c.b16 %v1964, %v1956
    %v2069 = vpack.c.b16 %v1965, %v1957
    %v2070 = vpack.c.b16 %v1966, %v1958
    %v2071 = vpack.c.b16 %v1975, %v1967
    %v2072 = vpack.c.b16 %v1976, %v1968
    %v2073 = vpack.c.b16 %v1977, %v1969
    %v2074 = vpack.c.b16 %v1978, %v1970
    %v2075 = vpack.c.b16 %v1979, %v1971
    %v2076 = vpack.c.b16 %v1980, %v1972
    %v2077 = vpack.c.b16 %v1981, %v1973
    %v2078 = vpack.c.b16 %v1982, %v1974
    %v2079 = vpack.c.b16 %v1991, %v1983
    %v2080 = vpack.c.b16 %v1992, %v1984
    %v2081 = vpack.c.b16 %v1993, %v1985
    %v2082 = vpack.c.b16 %v1994, %v1986
    %v2083 = vpack.c.b16 %v1995, %v1987
    %v2084 = vpack.c.b16 %v1996, %v1988
    %v2085 = vpack.c.b16 %v1997, %v1989
    %v2086 = vpack.c.b16 %v1998, %v1990
    %v2087 = vpack.c.b16 %v2007, %v1999
    %v2088 = vpack.c.b16 %v2008, %v2000
    %v2089 = vpack.c.b16 %v2009, %v2001
    %v2090 = vpack.c.b16 %v2010, %v2002
    %v2091 = vpack.c.b16 %v2011, %v2003
    %v2092 = vpack.c.b16 %v2012, %v2004
    %v2093 = vpack.c.b16 %v2013, %v2005
    %v2094 = vpack.c.b16 %v2014, %v2006
    %v2095 = vpack.c.b16 %v2023, %v2015
    %v2096 = vpack.c.b16 %v2024, %v2016
    %v2097 = vpack.c.b16 %v2025, %v2017
    %v2098 = vpack.c.b16 %v2026, %v2018
    %v2099 = vpack.c.b16 %v2027, %v2019
    %v2100 = vpack.c.b16 %v2028, %v2020
    %v2101 = vpack.c.b16 %v2029, %v2021
    %v2102 = vpack.c.b16 %v2030, %v2022
    %v2103 = vpack.c.b16 %v2039, %v2031
    %v2104 = vpack.c.b16 %v2040, %v2032
    %v2105 = vpack.c.b16 %v2041, %v2033
    %v2106 = vpack.c.b16 %v2042, %v2034
    %v2107 = vpack.c.b16 %v2043, %v2035
    %v2108 = vpack.c.b16 %v2044, %v2036
    %v2109 = vpack.c.b16 %v2045, %v2037
    %v2110 = vpack.c.b16 %v2046, %v2038
    %2175 = vmatprep.subr.bf16.mxu0 %v2048
    %2176 = vmatpush1.bf16.msra.mxu0 %v2047
    %2177 = vmatprep.subr.bf16.mxu0 %v2056
    %2178 = vmatpush1.bf16.msra.mxu0 %v2055
    %2179 = vmatprep.subr.bf16.mxu0 %v2064
    %2180 = vmatpush1.bf16.msra.mxu0 %v2063
    %2181 = vmatprep.subr.bf16.mxu0 %v2072
    %2182 = vmatpush1.bf16.msra.mxu0 %v2071
    %2183 = vmatprep.subr.bf16.mxu0 %v2080
    %2184 = vmatpush1.bf16.msra.mxu0 %v2079
    %2185 = vmatprep.subr.bf16.mxu0 %v2088
    %2186 = vmatpush1.bf16.msra.mxu0 %v2087
    %2187 = vmatprep.subr.bf16.mxu0 %v2096
    %2188 = vmatpush1.bf16.msra.mxu0 %v2095
    %2189 = vmatprep.subr.bf16.mxu0 %v2104
    %2190 = vmatpush1.bf16.msra.mxu0 %v2103
    %2191 = vmatprep.subr.bf16.mxu0 0
    %2192 = vmatpush1.bf16.msra.mxu0 0
    %2193 = vmatprep.subr.bf16.mxu0 0
    %2194 = vmatpush1.bf16.msra.mxu0 0
    %2195 = vmatprep.subr.bf16.mxu0 0
    %2196 = vmatpush1.bf16.msra.mxu0 0
    %2197 = vmatprep.subr.bf16.mxu0 0
    %2198 = vmatpush1.bf16.msra.mxu0 0
    %2199 = vmatprep.subr.bf16.mxu0 0
    %2200 = vmatpush1.bf16.msra.mxu0 0
    %2201 = vmatprep.subr.bf16.mxu0 0
    %2202 = vmatpush1.bf16.msra.mxu0 0
    %2203 = vmatprep.subr.bf16.mxu0 0
    %2204 = vmatpush1.bf16.msra.mxu0 0
    %2205 = vmatprep.subr.bf16.mxu0 0
    %2206 = vmatpush1.bf16.msra.mxu0 0
    %2207 = vmatprep.mubr.bf16.mxu0 0
    %2208 = vmatmul.mubr.bf16.gmra.mrb[0].mxu0 %v1748
    %v2209 = vpop.f32.mrb[0].mxu0
    %v2210 = vadd.f32 %v1818, %v2209
    %v2211 = vpop.f32.mrb[0].mxu0
    %v2212 = vadd.f32 %v1822, %v2211
    %v2213 = vpop.f32.mrb[0].mxu0
    %v2214 = vpop.f32.mrb[0].mxu0
    %2215 = vdwg.mxu0
    %2216 = vmatprep.subr.bf16.mxu0 %v2050
    %2217 = vmatpush1.bf16.msra.mxu0 %v2049
    %2218 = vmatprep.subr.bf16.mxu0 %v2058
    %2219 = vmatpush1.bf16.msra.mxu0 %v2057
    %2220 = vmatprep.subr.bf16.mxu0 %v2066
    %2221 = vmatpush1.bf16.msra.mxu0 %v2065
    %2222 = vmatprep.subr.bf16.mxu0 %v2074
    %2223 = vmatpush1.bf16.msra.mxu0 %v2073
    %2224 = vmatprep.subr.bf16.mxu0 %v2082
    %2225 = vmatpush1.bf16.msra.mxu0 %v2081
    %2226 = vmatprep.subr.bf16.mxu0 %v2090
    %2227 = vmatpush1.bf16.msra.mxu0 %v2089
    %2228 = vmatprep.subr.bf16.mxu0 %v2098
    %2229 = vmatpush1.bf16.msra.mxu0 %v2097
    %2230 = vmatprep.subr.bf16.mxu0 %v2106
    %2231 = vmatpush1.bf16.msra.mxu0 %v2105
    %2232 = vmatprep.subr.bf16.mxu0 0
    %2233 = vmatpush1.bf16.msra.mxu0 0
    %2234 = vmatprep.subr.bf16.mxu0 0
    %2235 = vmatpush1.bf16.msra.mxu0 0
    %2236 = vmatprep.subr.bf16.mxu0 0
    %2237 = vmatpush1.bf16.msra.mxu0 0
    %2238 = vmatprep.subr.bf16.mxu0 0
    %2239 = vmatpush1.bf16.msra.mxu0 0
    %2240 = vmatprep.subr.bf16.mxu0 0
    %2241 = vmatpush1.bf16.msra.mxu0 0
    %2242 = vmatprep.subr.bf16.mxu0 0
    %2243 = vmatpush1.bf16.msra.mxu0 0
    %2244 = vmatprep.subr.bf16.mxu0 0
    %2245 = vmatpush1.bf16.msra.mxu0 0
    %2246 = vmatprep.subr.bf16.mxu0 0
    %2247 = vmatpush1.bf16.msra.mxu0 0
    %2248 = vmatprep.mubr.bf16.mxu0 0
    %2249 = vmatmul.mubr.bf16.gmra.mrb[0].mxu0 %v1748
    %v2250 = vpop.f32.mrb[0].mxu0
    %v2251 = vadd.f32 %v1826, %v2250
    %v2252 = vpop.f32.mrb[0].mxu0
    %v2253 = vadd.f32 %v1830, %v2252
    %v2254 = vpop.f32.mrb[0].mxu0
    %v2255 = vpop.f32.mrb[0].mxu0
    %2256 = vdwg.mxu0
    %2257 = vmatprep.subr.bf16.mxu0 %v2052
    %2258 = vmatpush1.bf16.msra.mxu0 %v2051
    %2259 = vmatprep.subr.bf16.mxu0 %v2060
    %2260 = vmatpush1.bf16.msra.mxu0 %v2059
    %2261 = vmatprep.subr.bf16.mxu0 %v2068
    %2262 = vmatpush1.bf16.msra.mxu0 %v2067
    %2263 = vmatprep.subr.bf16.mxu0 %v2076
    %2264 = vmatpush1.bf16.msra.mxu0 %v2075
    %2265 = vmatprep.subr.bf16.mxu0 %v2084
    %2266 = vmatpush1.bf16.msra.mxu0 %v2083
    %2267 = vmatprep.subr.bf16.mxu0 %v2092
    %2268 = vmatpush1.bf16.msra.mxu0 %v2091
    %2269 = vmatprep.subr.bf16.mxu0 %v2100
    %2270 = vmatpush1.bf16.msra.mxu0 %v2099
    %2271 = vmatprep.subr.bf16.mxu0 %v2108
    %2272 = vmatpush1.bf16.msra.mxu0 %v2107
    %2273 = vmatprep.subr.bf16.mxu0 0
    %2274 = vmatpush1.bf16.msra.mxu0 0
    %2275 = vmatprep.subr.bf16.mxu0 0
    %2276 = vmatpush1.bf16.msra.mxu0 0
    %2277 = vmatprep.subr.bf16.mxu0 0
    %2278 = vmatpush1.bf16.msra.mxu0 0
    %2279 = vmatprep.subr.bf16.mxu0 0
    %2280 = vmatpush1.bf16.msra.mxu0 0
    %2281 = vmatprep.subr.bf16.mxu0 0
    %2282 = vmatpush1.bf16.msra.mxu0 0
    %2283 = vmatprep.subr.bf16.mxu0 0
    %2284 = vmatpush1.bf16.msra.mxu0 0
    %2285 = vmatprep.subr.bf16.mxu0 0
    %2286 = vmatpush1.bf16.msra.mxu0 0
    %2287 = vmatprep.subr.bf16.mxu0 0
    %2288 = vmatpush1.bf16.msra.mxu0 0
    %2289 = vmatprep.mubr.bf16.mxu0 0
    %2290 = vmatmul.mubr.bf16.gmra.mrb[0].mxu0 %v1748
    %v2291 = vpop.f32.mrb[0].mxu0
    %v2292 = vadd.f32 %v1834, %v2291
    %v2293 = vpop.f32.mrb[0].mxu0
    %v2294 = vadd.f32 %v1838, %v2293
    %v2295 = vpop.f32.mrb[0].mxu0
    %v2296 = vpop.f32.mrb[0].mxu0
    %2297 = vdwg.mxu0
    %2298 = vmatprep.subr.bf16.mxu0 %v2054
    %2299 = vmatpush1.bf16.msra.mxu0 %v2053
    %2300 = vmatprep.subr.bf16.mxu0 %v2062
    %2301 = vmatpush1.bf16.msra.mxu0 %v2061
    %2302 = vmatprep.subr.bf16.mxu0 %v2070
    %2303 = vmatpush1.bf16.msra.mxu0 %v2069
    %2304 = vmatprep.subr.bf16.mxu0 %v2078
    %2305 = vmatpush1.bf16.msra.mxu0 %v2077
    %2306 = vmatprep.subr.bf16.mxu0 %v2086
    %2307 = vmatpush1.bf16.msra.mxu0 %v2085
    %2308 = vmatprep.subr.bf16.mxu0 %v2094
    %2309 = vmatpush1.bf16.msra.mxu0 %v2093
    %2310 = vmatprep.subr.bf16.mxu0 %v2102
    %2311 = vmatpush1.bf16.msra.mxu0 %v2101
    %2312 = vmatprep.subr.bf16.mxu0 %v2110
    %2313 = vmatpush1.bf16.msra.mxu0 %v2109
    %2314 = vmatprep.subr.bf16.mxu0 0
    %2315 = vmatpush1.bf16.msra.mxu0 0
    %2316 = vmatprep.subr.bf16.mxu0 0
    %2317 = vmatpush1.bf16.msra.mxu0 0
    %2318 = vmatprep.subr.bf16.mxu0 0
    %2319 = vmatpush1.bf16.msra.mxu0 0
    %2320 = vmatprep.subr.bf16.mxu0 0
    %2321 = vmatpush1.bf16.msra.mxu0 0
    %2322 = vmatprep.subr.bf16.mxu0 0
    %2323 = vmatpush1.bf16.msra.mxu0 0
    %2324 = vmatprep.subr.bf16.mxu0 0
    %2325 = vmatpush1.bf16.msra.mxu0 0
    %2326 = vmatprep.subr.bf16.mxu0 0
    %2327 = vmatpush1.bf16.msra.mxu0 0
    %2328 = vmatprep.subr.bf16.mxu0 0
    %2329 = vmatpush1.bf16.msra.mxu0 0
    %2330 = vmatprep.mubr.bf16.mxu0 0
    %2331 = vmatmul.mubr.bf16.gmra.mrb[0].mxu0 %v1748
    %v2332 = vpop.f32.mrb[0].mxu0
    %v2333 = vadd.f32 %v1842, %v2332
    %v2334 = vpop.f32.mrb[0].mxu0
    %v2335 = vadd.f32 %v1846, %v2334
    %v2336 = vpop.f32.mrb[0].mxu0
    %v2337 = vpop.f32.mrb[0].mxu0
    %2338 = vdwg.mxu0
    %v2339 = vmax.f32 %v2210, 0.0
    %v2340 = vmax.f32 %v2212, 0.0
    %v2341 = vmax.f32 %v2251, 0.0
    %v2342 = vmax.f32 %v2253, 0.0
    %v2343 = vmax.f32 %v2292, 0.0
    %v2344 = vmax.f32 %v2294, 0.0
    %v2345 = vmax.f32 %v2333, 0.0
    %v2346 = vmax.f32 %v2335, 0.0
    %v2347 = vpack.c.bf16 %v2339, %v2339
    %v2348 = vpack.c.bf16 %v2340, %v2340
    %v2349 = vpack.c.bf16 %v2341, %v2341
    %v2350 = vpack.c.bf16 %v2342, %v2342
    %v2351 = vpack.c.bf16 %v2343, %v2343
    %v2352 = vpack.c.bf16 %v2344, %v2344
    %v2353 = vpack.c.bf16 %v2345, %v2345
    %v2354 = vpack.c.bf16 %v2346, %v2346
    %v2355 = vld [vmem:[%s7] sm:$0xff]
    %v2356 = vld [vmem:[%s7 + $0x8] sm:$0xff]
    %v2357 = vld [vmem:[%s7 + $0x10] sm:$0xff]
    %v2358 = vld [vmem:[%s7 + $0x18] sm:$0xff]
    %v2359 = vld [vmem:[%s7 + $0x20] sm:$0xff]
    %v2360 = vld [vmem:[%s7 + $0x28] sm:$0xff]
    %v2361 = vld [vmem:[%s7 + $0x30] sm:$0xff]
    %v2362 = vld [vmem:[%s7 + $0x38] sm:$0xff]
    %v2363 = vld [vmem:[%s7 + $0x40] sm:$0xff]
    %v2364 = vld [vmem:[%s7 + $0x48] sm:$0xff]
    %v2365 = vld [vmem:[%s7 + $0x50] sm:$0xff]
    %v2366 = vld [vmem:[%s7 + $0x58] sm:$0xff]
    %v2367 = vld [vmem:[%s7 + $0x60] sm:$0xff]
    %v2368 = vld [vmem:[%s7 + $0x68] sm:$0xff]
    %v2369 = vld [vmem:[%s7 + $0x70] sm:$0xff]
    %v2370 = vld [vmem:[%s7 + $0x78] sm:$0xff]
    %v2371 = vld [vmem:[%s7 + $0x80] sm:$0xff]
    %v2372 = vld [vmem:[%s7 + $0x88] sm:$0xff]
    %v2373 = vld [vmem:[%s7 + $0x90] sm:$0xff]
    %v2374 = vld [vmem:[%s7 + $0x98] sm:$0xff]
    %v2375 = vld [vmem:[%s7 + $0xa0] sm:$0xff]
    %v2376 = vld [vmem:[%s7 + $0xa8] sm:$0xff]
    %v2377 = vld [vmem:[%s7 + $0xb0] sm:$0xff]
    %v2378 = vld [vmem:[%s7 + $0xb8] sm:$0xff]
    %v2379 = vld [vmem:[%s7 + $0xc0] sm:$0xff]
    %v2380 = vld [vmem:[%s7 + $0xc8] sm:$0xff]
    %v2381 = vld [vmem:[%s7 + $0xd0] sm:$0xff]
    %v2382 = vld [vmem:[%s7 + $0xd8] sm:$0xff]
    %v2383 = vld [vmem:[%s7 + $0xe0] sm:$0xff]
    %v2384 = vld [vmem:[%s7 + $0xe8] sm:$0xff]
    %v2385 = vld [vmem:[%s7 + $0xf0] sm:$0xff]
    %v2386 = vld [vmem:[%s7 + $0xf8] sm:$0xff]
    %v2387 = vld [vmem:[%s7 + $0x100] sm:$0xff]
    %v2388 = vld [vmem:[%s7 + $0x108] sm:$0xff]
    %v2389 = vld [vmem:[%s7 + $0x110] sm:$0xff]
    %v2390 = vld [vmem:[%s7 + $0x118] sm:$0xff]
    %v2391 = vld [vmem:[%s7 + $0x120] sm:$0xff]
    %v2392 = vld [vmem:[%s7 + $0x128] sm:$0xff]
    %v2393 = vld [vmem:[%s7 + $0x130] sm:$0xff]
    %v2394 = vld [vmem:[%s7 + $0x138] sm:$0xff]
    %v2395 = vld [vmem:[%s7 + $0x140] sm:$0xff]
    %v2396 = vld [vmem:[%s7 + $0x148] sm:$0xff]
    %v2397 = vld [vmem:[%s7 + $0x150] sm:$0xff]
    %v2398 = vld [vmem:[%s7 + $0x158] sm:$0xff]
    %v2399 = vld [vmem:[%s7 + $0x160] sm:$0xff]
    %v2400 = vld [vmem:[%s7 + $0x168] sm:$0xff]
    %v2401 = vld [vmem:[%s7 + $0x170] sm:$0xff]
    %v2402 = vld [vmem:[%s7 + $0x178] sm:$0xff]
    %v2403 = vld [vmem:[%s7 + $0x180] sm:$0xff]
    %v2404 = vld [vmem:[%s7 + $0x188] sm:$0xff]
    %v2405 = vld [vmem:[%s7 + $0x190] sm:$0xff]
    %v2406 = vld [vmem:[%s7 + $0x198] sm:$0xff]
    %v2407 = vld [vmem:[%s7 + $0x1a0] sm:$0xff]
    %v2408 = vld [vmem:[%s7 + $0x1a8] sm:$0xff]
    %v2409 = vld [vmem:[%s7 + $0x1b0] sm:$0xff]
    %v2410 = vld [vmem:[%s7 + $0x1b8] sm:$0xff]
    %v2411 = vld [vmem:[%s7 + $0x1c0] sm:$0xff]
    %v2412 = vld [vmem:[%s7 + $0x1c8] sm:$0xff]
    %v2413 = vld [vmem:[%s7 + $0x1d0] sm:$0xff]
    %v2414 = vld [vmem:[%s7 + $0x1d8] sm:$0xff]
    %v2415 = vld [vmem:[%s7 + $0x1e0] sm:$0xff]
    %v2416 = vld [vmem:[%s7 + $0x1e8] sm:$0xff]
    %v2417 = vld [vmem:[%s7 + $0x1f0] sm:$0xff]
    %v2418 = vld [vmem:[%s7 + $0x1f8] sm:$0xff]
    %v2419 = vld [vmem:[%s7 + $0x200] sm:$0xff]
    %v2420 = vld [vmem:[%s7 + $0x208] sm:$0xff]
    %v2421 = vld [vmem:[%s7 + $0x210] sm:$0xff]
    %v2422 = vld [vmem:[%s7 + $0x218] sm:$0xff]
    %v2423 = vld [vmem:[%s7 + $0x220] sm:$0xff]
    %v2424 = vld [vmem:[%s7 + $0x228] sm:$0xff]
    %v2425 = vld [vmem:[%s7 + $0x230] sm:$0xff]
    %v2426 = vld [vmem:[%s7 + $0x238] sm:$0xff]
    %v2427 = vld [vmem:[%s7 + $0x240] sm:$0xff]
    %v2428 = vld [vmem:[%s7 + $0x248] sm:$0xff]
    %v2429 = vld [vmem:[%s7 + $0x250] sm:$0xff]
    %v2430 = vld [vmem:[%s7 + $0x258] sm:$0xff]
    %v2431 = vld [vmem:[%s7 + $0x260] sm:$0xff]
    %v2432 = vld [vmem:[%s7 + $0x268] sm:$0xff]
    %v2433 = vld [vmem:[%s7 + $0x270] sm:$0xff]
    %v2434 = vld [vmem:[%s7 + $0x278] sm:$0xff]
    %v2435 = vld [vmem:[%s7 + $0x280] sm:$0xff]
    %v2436 = vld [vmem:[%s7 + $0x288] sm:$0xff]
    %v2437 = vld [vmem:[%s7 + $0x290] sm:$0xff]
    %v2438 = vld [vmem:[%s7 + $0x298] sm:$0xff]
    %v2439 = vld [vmem:[%s7 + $0x2a0] sm:$0xff]
    %v2440 = vld [vmem:[%s7 + $0x2a8] sm:$0xff]
    %v2441 = vld [vmem:[%s7 + $0x2b0] sm:$0xff]
    %v2442 = vld [vmem:[%s7 + $0x2b8] sm:$0xff]
    %v2443 = vld [vmem:[%s7 + $0x2c0] sm:$0xff]
    %v2444 = vld [vmem:[%s7 + $0x2c8] sm:$0xff]
    %v2445 = vld [vmem:[%s7 + $0x2d0] sm:$0xff]
    %v2446 = vld [vmem:[%s7 + $0x2d8] sm:$0xff]
    %v2447 = vld [vmem:[%s7 + $0x2e0] sm:$0xff]
    %v2448 = vld [vmem:[%s7 + $0x2e8] sm:$0xff]
    %v2449 = vld [vmem:[%s7 + $0x2f0] sm:$0xff]
    %v2450 = vld [vmem:[%s7 + $0x2f8] sm:$0xff]
    %v2451 = vld [vmem:[%s7 + $0x300] sm:$0xff]
    %v2452 = vld [vmem:[%s7 + $0x308] sm:$0xff]
    %v2453 = vld [vmem:[%s7 + $0x310] sm:$0xff]
    %v2454 = vld [vmem:[%s7 + $0x318] sm:$0xff]
    %v2455 = vld [vmem:[%s7 + $0x320] sm:$0xff]
    %v2456 = vld [vmem:[%s7 + $0x328] sm:$0xff]
    %v2457 = vld [vmem:[%s7 + $0x330] sm:$0xff]
    %v2458 = vld [vmem:[%s7 + $0x338] sm:$0xff]
    %v2459 = vld [vmem:[%s7 + $0x340] sm:$0xff]
    %v2460 = vld [vmem:[%s7 + $0x348] sm:$0xff]
    %v2461 = vld [vmem:[%s7 + $0x350] sm:$0xff]
    %v2462 = vld [vmem:[%s7 + $0x358] sm:$0xff]
    %v2463 = vld [vmem:[%s7 + $0x360] sm:$0xff]
    %v2464 = vld [vmem:[%s7 + $0x368] sm:$0xff]
    %v2465 = vld [vmem:[%s7 + $0x370] sm:$0xff]
    %v2466 = vld [vmem:[%s7 + $0x378] sm:$0xff]
    %v2467 = vld [vmem:[%s7 + $0x380] sm:$0xff]
    %v2468 = vld [vmem:[%s7 + $0x388] sm:$0xff]
    %v2469 = vld [vmem:[%s7 + $0x390] sm:$0xff]
    %v2470 = vld [vmem:[%s7 + $0x398] sm:$0xff]
    %v2471 = vld [vmem:[%s7 + $0x3a0] sm:$0xff]
    %v2472 = vld [vmem:[%s7 + $0x3a8] sm:$0xff]
    %v2473 = vld [vmem:[%s7 + $0x3b0] sm:$0xff]
    %v2474 = vld [vmem:[%s7 + $0x3b8] sm:$0xff]
    %v2475 = vld [vmem:[%s7 + $0x3c0] sm:$0xff]
    %v2476 = vld [vmem:[%s7 + $0x3c8] sm:$0xff]
    %v2477 = vld [vmem:[%s7 + $0x3d0] sm:$0xff]
    %v2478 = vld [vmem:[%s7 + $0x3d8] sm:$0xff]
    %v2479 = vld [vmem:[%s7 + $0x3e0] sm:$0xff]
    %v2480 = vld [vmem:[%s7 + $0x3e8] sm:$0xff]
    %v2481 = vld [vmem:[%s7 + $0x3f0] sm:$0xff]
    %v2482 = vld [vmem:[%s7 + $0x3f8] sm:$0xff]
    %v2483 = vld [vmem:[%s8] sm:$0x3]
    %v2485 = vlaneseq
    %v2486 = vshrl.u32 %v2485, 7
    %v2487 = vsub.s32 0, %v2486
    %v2488 = vrot.slane %v2483, %v2487
    %v2489 = vlaneseq
    %v2490 = vshrl.u32 %v2489, 7
    %v2491 = vsub.s32 1, %v2490
    %v2492 = vrot.slane %v2483, %v2491
    %v2623 = vunpack.c.l.b16 %v2355
    %v2624 = vunpack.c.h.b16 %v2355
    %v2625 = vunpack.c.l.b16 %v2356
    %v2626 = vunpack.c.h.b16 %v2356
    %v2627 = vunpack.c.l.b16 %v2357
    %v2628 = vunpack.c.h.b16 %v2357
    %v2629 = vunpack.c.l.b16 %v2358
    %v2630 = vunpack.c.h.b16 %v2358
    %v2631 = vunpack.c.l.b16 %v2359
    %v2632 = vunpack.c.h.b16 %v2359
    %v2633 = vunpack.c.l.b16 %v2360
    %v2634 = vunpack.c.h.b16 %v2360
    %v2635 = vunpack.c.l.b16 %v2361
    %v2636 = vunpack.c.h.b16 %v2361
    %v2637 = vunpack.c.l.b16 %v2362
    %v2638 = vunpack.c.h.b16 %v2362
    %v2639 = vunpack.c.l.b16 %v2363
    %v2640 = vunpack.c.h.b16 %v2363
    %v2641 = vunpack.c.l.b16 %v2364
    %v2642 = vunpack.c.h.b16 %v2364
    %v2643 = vunpack.c.l.b16 %v2365
    %v2644 = vunpack.c.h.b16 %v2365
    %v2645 = vunpack.c.l.b16 %v2366
    %v2646 = vunpack.c.h.b16 %v2366
    %v2647 = vunpack.c.l.b16 %v2367
    %v2648 = vunpack.c.h.b16 %v2367
    %v2649 = vunpack.c.l.b16 %v2368
    %v2650 = vunpack.c.h.b16 %v2368
    %v2651 = vunpack.c.l.b16 %v2369
    %v2652 = vunpack.c.h.b16 %v2369
    %v2653 = vunpack.c.l.b16 %v2370
    %v2654 = vunpack.c.h.b16 %v2370
    %v2655 = vunpack.c.l.b16 %v2371
    %v2656 = vunpack.c.h.b16 %v2371
    %v2657 = vunpack.c.l.b16 %v2372
    %v2658 = vunpack.c.h.b16 %v2372
    %v2659 = vunpack.c.l.b16 %v2373
    %v2660 = vunpack.c.h.b16 %v2373
    %v2661 = vunpack.c.l.b16 %v2374
    %v2662 = vunpack.c.h.b16 %v2374
    %v2663 = vunpack.c.l.b16 %v2375
    %v2664 = vunpack.c.h.b16 %v2375
    %v2665 = vunpack.c.l.b16 %v2376
    %v2666 = vunpack.c.h.b16 %v2376
    %v2667 = vunpack.c.l.b16 %v2377
    %v2668 = vunpack.c.h.b16 %v2377
    %v2669 = vunpack.c.l.b16 %v2378
    %v2670 = vunpack.c.h.b16 %v2378
    %v2671 = vunpack.c.l.b16 %v2379
    %v2672 = vunpack.c.h.b16 %v2379
    %v2673 = vunpack.c.l.b16 %v2380
    %v2674 = vunpack.c.h.b16 %v2380
    %v2675 = vunpack.c.l.b16 %v2381
    %v2676 = vunpack.c.h.b16 %v2381
    %v2677 = vunpack.c.l.b16 %v2382
    %v2678 = vunpack.c.h.b16 %v2382
    %v2679 = vunpack.c.l.b16 %v2383
    %v2680 = vunpack.c.h.b16 %v2383
    %v2681 = vunpack.c.l.b16 %v2384
    %v2682 = vunpack.c.h.b16 %v2384
    %v2683 = vunpack.c.l.b16 %v2385
    %v2684 = vunpack.c.h.b16 %v2385
    %v2685 = vunpack.c.l.b16 %v2386
    %v2686 = vunpack.c.h.b16 %v2386
    %v2687 = vunpack.c.l.b16 %v2387
    %v2688 = vunpack.c.h.b16 %v2387
    %v2689 = vunpack.c.l.b16 %v2388
    %v2690 = vunpack.c.h.b16 %v2388
    %v2691 = vunpack.c.l.b16 %v2389
    %v2692 = vunpack.c.h.b16 %v2389
    %v2693 = vunpack.c.l.b16 %v2390
    %v2694 = vunpack.c.h.b16 %v2390
    %v2695 = vunpack.c.l.b16 %v2391
    %v2696 = vunpack.c.h.b16 %v2391
    %v2697 = vunpack.c.l.b16 %v2392
    %v2698 = vunpack.c.h.b16 %v2392
    %v2699 = vunpack.c.l.b16 %v2393
    %v2700 = vunpack.c.h.b16 %v2393
    %v2701 = vunpack.c.l.b16 %v2394
    %v2702 = vunpack.c.h.b16 %v2394
    %v2703 = vunpack.c.l.b16 %v2395
    %v2704 = vunpack.c.h.b16 %v2395
    %v2705 = vunpack.c.l.b16 %v2396
    %v2706 = vunpack.c.h.b16 %v2396
    %v2707 = vunpack.c.l.b16 %v2397
    %v2708 = vunpack.c.h.b16 %v2397
    %v2709 = vunpack.c.l.b16 %v2398
    %v2710 = vunpack.c.h.b16 %v2398
    %v2711 = vunpack.c.l.b16 %v2399
    %v2712 = vunpack.c.h.b16 %v2399
    %v2713 = vunpack.c.l.b16 %v2400
    %v2714 = vunpack.c.h.b16 %v2400
    %v2715 = vunpack.c.l.b16 %v2401
    %v2716 = vunpack.c.h.b16 %v2401
    %v2717 = vunpack.c.l.b16 %v2402
    %v2718 = vunpack.c.h.b16 %v2402
    %v2719 = vunpack.c.l.b16 %v2403
    %v2720 = vunpack.c.h.b16 %v2403
    %v2721 = vunpack.c.l.b16 %v2404
    %v2722 = vunpack.c.h.b16 %v2404
    %v2723 = vunpack.c.l.b16 %v2405
    %v2724 = vunpack.c.h.b16 %v2405
    %v2725 = vunpack.c.l.b16 %v2406
    %v2726 = vunpack.c.h.b16 %v2406
    %v2727 = vunpack.c.l.b16 %v2407
    %v2728 = vunpack.c.h.b16 %v2407
    %v2729 = vunpack.c.l.b16 %v2408
    %v2730 = vunpack.c.h.b16 %v2408
    %v2731 = vunpack.c.l.b16 %v2409
    %v2732 = vunpack.c.h.b16 %v2409
    %v2733 = vunpack.c.l.b16 %v2410
    %v2734 = vunpack.c.h.b16 %v2410
    %v2735 = vunpack.c.l.b16 %v2411
    %v2736 = vunpack.c.h.b16 %v2411
    %v2737 = vunpack.c.l.b16 %v2412
    %v2738 = vunpack.c.h.b16 %v2412
    %v2739 = vunpack.c.l.b16 %v2413
    %v2740 = vunpack.c.h.b16 %v2413
    %v2741 = vunpack.c.l.b16 %v2414
    %v2742 = vunpack.c.h.b16 %v2414
    %v2743 = vunpack.c.l.b16 %v2415
    %v2744 = vunpack.c.h.b16 %v2415
    %v2745 = vunpack.c.l.b16 %v2416
    %v2746 = vunpack.c.h.b16 %v2416
    %v2747 = vunpack.c.l.b16 %v2417
    %v2748 = vunpack.c.h.b16 %v2417
    %v2749 = vunpack.c.l.b16 %v2418
    %v2750 = vunpack.c.h.b16 %v2418
    %v2751 = vunpack.c.l.b16 %v2419
    %v2752 = vunpack.c.h.b16 %v2419
    %v2753 = vunpack.c.l.b16 %v2420
    %v2754 = vunpack.c.h.b16 %v2420
    %v2755 = vunpack.c.l.b16 %v2421
    %v2756 = vunpack.c.h.b16 %v2421
    %v2757 = vunpack.c.l.b16 %v2422
    %v2758 = vunpack.c.h.b16 %v2422
    %v2759 = vunpack.c.l.b16 %v2423
    %v2760 = vunpack.c.h.b16 %v2423
    %v2761 = vunpack.c.l.b16 %v2424
    %v2762 = vunpack.c.h.b16 %v2424
    %v2763 = vunpack.c.l.b16 %v2425
    %v2764 = vunpack.c.h.b16 %v2425
    %v2765 = vunpack.c.l.b16 %v2426
    %v2766 = vunpack.c.h.b16 %v2426
    %v2767 = vunpack.c.l.b16 %v2427
    %v2768 = vunpack.c.h.b16 %v2427
    %v2769 = vunpack.c.l.b16 %v2428
    %v2770 = vunpack.c.h.b16 %v2428
    %v2771 = vunpack.c.l.b16 %v2429
    %v2772 = vunpack.c.h.b16 %v2429
    %v2773 = vunpack.c.l.b16 %v2430
    %v2774 = vunpack.c.h.b16 %v2430
    %v2775 = vunpack.c.l.b16 %v2431
    %v2776 = vunpack.c.h.b16 %v2431
    %v2777 = vunpack.c.l.b16 %v2432
    %v2778 = vunpack.c.h.b16 %v2432
    %v2779 = vunpack.c.l.b16 %v2433
    %v2780 = vunpack.c.h.b16 %v2433
    %v2781 = vunpack.c.l.b16 %v2434
    %v2782 = vunpack.c.h.b16 %v2434
    %v2783 = vunpack.c.l.b16 %v2435
    %v2784 = vunpack.c.h.b16 %v2435
    %v2785 = vunpack.c.l.b16 %v2436
    %v2786 = vunpack.c.h.b16 %v2436
    %v2787 = vunpack.c.l.b16 %v2437
    %v2788 = vunpack.c.h.b16 %v2437
    %v2789 = vunpack.c.l.b16 %v2438
    %v2790 = vunpack.c.h.b16 %v2438
    %v2791 = vunpack.c.l.b16 %v2439
    %v2792 = vunpack.c.h.b16 %v2439
    %v2793 = vunpack.c.l.b16 %v2440
    %v2794 = vunpack.c.h.b16 %v2440
    %v2795 = vunpack.c.l.b16 %v2441
    %v2796 = vunpack.c.h.b16 %v2441
    %v2797 = vunpack.c.l.b16 %v2442
    %v2798 = vunpack.c.h.b16 %v2442
    %v2799 = vunpack.c.l.b16 %v2443
    %v2800 = vunpack.c.h.b16 %v2443
    %v2801 = vunpack.c.l.b16 %v2444
    %v2802 = vunpack.c.h.b16 %v2444
    %v2803 = vunpack.c.l.b16 %v2445
    %v2804 = vunpack.c.h.b16 %v2445
    %v2805 = vunpack.c.l.b16 %v2446
    %v2806 = vunpack.c.h.b16 %v2446
    %v2807 = vunpack.c.l.b16 %v2447
    %v2808 = vunpack.c.h.b16 %v2447
    %v2809 = vunpack.c.l.b16 %v2448
    %v2810 = vunpack.c.h.b16 %v2448
    %v2811 = vunpack.c.l.b16 %v2449
    %v2812 = vunpack.c.h.b16 %v2449
    %v2813 = vunpack.c.l.b16 %v2450
    %v2814 = vunpack.c.h.b16 %v2450
    %v2815 = vunpack.c.l.b16 %v2451
    %v2816 = vunpack.c.h.b16 %v2451
    %v2817 = vunpack.c.l.b16 %v2452
    %v2818 = vunpack.c.h.b16 %v2452
    %v2819 = vunpack.c.l.b16 %v2453
    %v2820 = vunpack.c.h.b16 %v2453
    %v2821 = vunpack.c.l.b16 %v2454
    %v2822 = vunpack.c.h.b16 %v2454
    %v2823 = vunpack.c.l.b16 %v2455
    %v2824 = vunpack.c.h.b16 %v2455
    %v2825 = vunpack.c.l.b16 %v2456
    %v2826 = vunpack.c.h.b16 %v2456
    %v2827 = vunpack.c.l.b16 %v2457
    %v2828 = vunpack.c.h.b16 %v2457
    %v2829 = vunpack.c.l.b16 %v2458
    %v2830 = vunpack.c.h.b16 %v2458
    %v2831 = vunpack.c.l.b16 %v2459
    %v2832 = vunpack.c.h.b16 %v2459
    %v2833 = vunpack.c.l.b16 %v2460
    %v2834 = vunpack.c.h.b16 %v2460
    %v2835 = vunpack.c.l.b16 %v2461
    %v2836 = vunpack.c.h.b16 %v2461
    %v2837 = vunpack.c.l.b16 %v2462
    %v2838 = vunpack.c.h.b16 %v2462
    %v2839 = vunpack.c.l.b16 %v2463
    %v2840 = vunpack.c.h.b16 %v2463
    %v2841 = vunpack.c.l.b16 %v2464
    %v2842 = vunpack.c.h.b16 %v2464
    %v2843 = vunpack.c.l.b16 %v2465
    %v2844 = vunpack.c.h.b16 %v2465
    %v2845 = vunpack.c.l.b16 %v2466
    %v2846 = vunpack.c.h.b16 %v2466
    %v2847 = vunpack.c.l.b16 %v2467
    %v2848 = vunpack.c.h.b16 %v2467
    %v2849 = vunpack.c.l.b16 %v2468
    %v2850 = vunpack.c.h.b16 %v2468
    %v2851 = vunpack.c.l.b16 %v2469
    %v2852 = vunpack.c.h.b16 %v2469
    %v2853 = vunpack.c.l.b16 %v2470
    %v2854 = vunpack.c.h.b16 %v2470
    %v2855 = vunpack.c.l.b16 %v2471
    %v2856 = vunpack.c.h.b16 %v2471
    %v2857 = vunpack.c.l.b16 %v2472
    %v2858 = vunpack.c.h.b16 %v2472
    %v2859 = vunpack.c.l.b16 %v2473
    %v2860 = vunpack.c.h.b16 %v2473
    %v2861 = vunpack.c.l.b16 %v2474
    %v2862 = vunpack.c.h.b16 %v2474
    %v2863 = vunpack.c.l.b16 %v2475
    %v2864 = vunpack.c.h.b16 %v2475
    %v2865 = vunpack.c.l.b16 %v2476
    %v2866 = vunpack.c.h.b16 %v2476
    %v2867 = vunpack.c.l.b16 %v2477
    %v2868 = vunpack.c.h.b16 %v2477
    %v2869 = vunpack.c.l.b16 %v2478
    %v2870 = vunpack.c.h.b16 %v2478
    %v2871 = vunpack.c.l.b16 %v2479
    %v2872 = vunpack.c.h.b16 %v2479
    %v2873 = vunpack.c.l.b16 %v2480
    %v2874 = vunpack.c.h.b16 %v2480
    %v2875 = vunpack.c.l.b16 %v2481
    %v2876 = vunpack.c.h.b16 %v2481
    %v2877 = vunpack.c.l.b16 %v2482
    %v2878 = vunpack.c.h.b16 %v2482
    %v2879 = vpack.c.b16 %v2625, %v2623
    %v2880 = vpack.c.b16 %v2626, %v2624
    %v2881 = vpack.c.b16 %v2629, %v2627
    %v2882 = vpack.c.b16 %v2630, %v2628
    %v2883 = vpack.c.b16 %v2633, %v2631
    %v2884 = vpack.c.b16 %v2634, %v2632
    %v2885 = vpack.c.b16 %v2637, %v2635
    %v2886 = vpack.c.b16 %v2638, %v2636
    %v2887 = vpack.c.b16 %v2641, %v2639
    %v2888 = vpack.c.b16 %v2642, %v2640
    %v2889 = vpack.c.b16 %v2645, %v2643
    %v2890 = vpack.c.b16 %v2646, %v2644
    %v2891 = vpack.c.b16 %v2649, %v2647
    %v2892 = vpack.c.b16 %v2650, %v2648
    %v2893 = vpack.c.b16 %v2653, %v2651
    %v2894 = vpack.c.b16 %v2654, %v2652
    %v2895 = vpack.c.b16 %v2657, %v2655
    %v2896 = vpack.c.b16 %v2658, %v2656
    %v2897 = vpack.c.b16 %v2661, %v2659
    %v2898 = vpack.c.b16 %v2662, %v2660
    %v2899 = vpack.c.b16 %v2665, %v2663
    %v2900 = vpack.c.b16 %v2666, %v2664
    %v2901 = vpack.c.b16 %v2669, %v2667
    %v2902 = vpack.c.b16 %v2670, %v2668
    %v2903 = vpack.c.b16 %v2673, %v2671
    %v2904 = vpack.c.b16 %v2674, %v2672
    %v2905 = vpack.c.b16 %v2677, %v2675
    %v2906 = vpack.c.b16 %v2678, %v2676
    %v2907 = vpack.c.b16 %v2681, %v2679
    %v2908 = vpack.c.b16 %v2682, %v2680
    %v2909 = vpack.c.b16 %v2685, %v2683
    %v2910 = vpack.c.b16 %v2686, %v2684
    %v2911 = vpack.c.b16 %v2689, %v2687
    %v2912 = vpack.c.b16 %v2690, %v2688
    %v2913 = vpack.c.b16 %v2693, %v2691
    %v2914 = vpack.c.b16 %v2694, %v2692
    %v2915 = vpack.c.b16 %v2697, %v2695
    %v2916 = vpack.c.b16 %v2698, %v2696
    %v2917 = vpack.c.b16 %v2701, %v2699
    %v2918 = vpack.c.b16 %v2702, %v2700
    %v2919 = vpack.c.b16 %v2705, %v2703
    %v2920 = vpack.c.b16 %v2706, %v2704
    %v2921 = vpack.c.b16 %v2709, %v2707
    %v2922 = vpack.c.b16 %v2710, %v2708
    %v2923 = vpack.c.b16 %v2713, %v2711
    %v2924 = vpack.c.b16 %v2714, %v2712
    %v2925 = vpack.c.b16 %v2717, %v2715
    %v2926 = vpack.c.b16 %v2718, %v2716
    %v2927 = vpack.c.b16 %v2721, %v2719
    %v2928 = vpack.c.b16 %v2722, %v2720
    %v2929 = vpack.c.b16 %v2725, %v2723
    %v2930 = vpack.c.b16 %v2726, %v2724
    %v2931 = vpack.c.b16 %v2729, %v2727
    %v2932 = vpack.c.b16 %v2730, %v2728
    %v2933 = vpack.c.b16 %v2733, %v2731
    %v2934 = vpack.c.b16 %v2734, %v2732
    %v2935 = vpack.c.b16 %v2737, %v2735
    %v2936 = vpack.c.b16 %v2738, %v2736
    %v2937 = vpack.c.b16 %v2741, %v2739
    %v2938 = vpack.c.b16 %v2742, %v2740
    %v2939 = vpack.c.b16 %v2745, %v2743
    %v2940 = vpack.c.b16 %v2746, %v2744
    %v2941 = vpack.c.b16 %v2749, %v2747
    %v2942 = vpack.c.b16 %v2750, %v2748
    %v2943 = vpack.c.b16 %v2753, %v2751
    %v2944 = vpack.c.b16 %v2754, %v2752
    %v2945 = vpack.c.b16 %v2757, %v2755
    %v2946 = vpack.c.b16 %v2758, %v2756
    %v2947 = vpack.c.b16 %v2761, %v2759
    %v2948 = vpack.c.b16 %v2762, %v2760
    %v2949 = vpack.c.b16 %v2765, %v2763
    %v2950 = vpack.c.b16 %v2766, %v2764
    %v2951 = vpack.c.b16 %v2769, %v2767
    %v2952 = vpack.c.b16 %v2770, %v2768
    %v2953 = vpack.c.b16 %v2773, %v2771
    %v2954 = vpack.c.b16 %v2774, %v2772
    %v2955 = vpack.c.b16 %v2777, %v2775
    %v2956 = vpack.c.b16 %v2778, %v2776
    %v2957 = vpack.c.b16 %v2781, %v2779
    %v2958 = vpack.c.b16 %v2782, %v2780
    %v2959 = vpack.c.b16 %v2785, %v2783
    %v2960 = vpack.c.b16 %v2786, %v2784
    %v2961 = vpack.c.b16 %v2789, %v2787
    %v2962 = vpack.c.b16 %v2790, %v2788
    %v2963 = vpack.c.b16 %v2793, %v2791
    %v2964 = vpack.c.b16 %v2794, %v2792
    %v2965 = vpack.c.b16 %v2797, %v2795
    %v2966 = vpack.c.b16 %v2798, %v2796
    %v2967 = vpack.c.b16 %v2801, %v2799
    %v2968 = vpack.c.b16 %v2802, %v2800
    %v2969 = vpack.c.b16 %v2805, %v2803
    %v2970 = vpack.c.b16 %v2806, %v2804
    %v2971 = vpack.c.b16 %v2809, %v2807
    %v2972 = vpack.c.b16 %v2810, %v2808
    %v2973 = vpack.c.b16 %v2813, %v2811
    %v2974 = vpack.c.b16 %v2814, %v2812
    %v2975 = vpack.c.b16 %v2817, %v2815
    %v2976 = vpack.c.b16 %v2818, %v2816
    %v2977 = vpack.c.b16 %v2821, %v2819
    %v2978 = vpack.c.b16 %v2822, %v2820
    %v2979 = vpack.c.b16 %v2825, %v2823
    %v2980 = vpack.c.b16 %v2826, %v2824
    %v2981 = vpack.c.b16 %v2829, %v2827
    %v2982 = vpack.c.b16 %v2830, %v2828
    %v2983 = vpack.c.b16 %v2833, %v2831
    %v2984 = vpack.c.b16 %v2834, %v2832
    %v2985 = vpack.c.b16 %v2837, %v2835
    %v2986 = vpack.c.b16 %v2838, %v2836
    %v2987 = vpack.c.b16 %v2841, %v2839
    %v2988 = vpack.c.b16 %v2842, %v2840
    %v2989 = vpack.c.b16 %v2845, %v2843
    %v2990 = vpack.c.b16 %v2846, %v2844
    %v2991 = vpack.c.b16 %v2849, %v2847
    %v2992 = vpack.c.b16 %v2850, %v2848
    %v2993 = vpack.c.b16 %v2853, %v2851
    %v2994 = vpack.c.b16 %v2854, %v2852
    %v2995 = vpack.c.b16 %v2857, %v2855
    %v2996 = vpack.c.b16 %v2858, %v2856
    %v2997 = vpack.c.b16 %v2861, %v2859
    %v2998 = vpack.c.b16 %v2862, %v2860
    %v2999 = vpack.c.b16 %v2865, %v2863
    %v3000 = vpack.c.b16 %v2866, %v2864
    %v3001 = vpack.c.b16 %v2869, %v2867
    %v3002 = vpack.c.b16 %v2870, %v2868
    %v3003 = vpack.c.b16 %v2873, %v2871
    %v3004 = vpack.c.b16 %v2874, %v2872
    %v3005 = vpack.c.b16 %v2877, %v2875
    %v3006 = vpack.c.b16 %v2878, %v2876
    %3135 = vmatprep.subr.bf16.mxu0 %v2880
    %3136 = vmatpush1.bf16.msra.mxu0 %v2879
    %3137 = vmatprep.subr.bf16.mxu0 %v2882
    %3138 = vmatpush1.bf16.msra.mxu0 %v2881
    %3139 = vmatprep.subr.bf16.mxu0 %v2884
    %3140 = vmatpush1.bf16.msra.mxu0 %v2883
    %3141 = vmatprep.subr.bf16.mxu0 %v2886
    %3142 = vmatpush1.bf16.msra.mxu0 %v2885
    %3143 = vmatprep.subr.bf16.mxu0 %v2888
    %3144 = vmatpush1.bf16.msra.mxu0 %v2887
    %3145 = vmatprep.subr.bf16.mxu0 %v2890
    %3146 = vmatpush1.bf16.msra.mxu0 %v2889
    %3147 = vmatprep.subr.bf16.mxu0 %v2892
    %3148 = vmatpush1.bf16.msra.mxu0 %v2891
    %3149 = vmatprep.subr.bf16.mxu0 %v2894
    %3150 = vmatpush1.bf16.msra.mxu0 %v2893
    %3151 = vmatprep.subr.bf16.mxu0 %v2896
    %3152 = vmatpush1.bf16.msra.mxu0 %v2895
    %3153 = vmatprep.subr.bf16.mxu0 %v2898
    %3154 = vmatpush1.bf16.msra.mxu0 %v2897
    %3155 = vmatprep.subr.bf16.mxu0 %v2900
    %3156 = vmatpush1.bf16.msra.mxu0 %v2899
    %3157 = vmatprep.subr.bf16.mxu0 %v2902
    %3158 = vmatpush1.bf16.msra.mxu0 %v2901
    %3159 = vmatprep.subr.bf16.mxu0 %v2904
    %3160 = vmatpush1.bf16.msra.mxu0 %v2903
    %3161 = vmatprep.subr.bf16.mxu0 %v2906
    %3162 = vmatpush1.bf16.msra.mxu0 %v2905
    %3163 = vmatprep.subr.bf16.mxu0 %v2908
    %3164 = vmatpush1.bf16.msra.mxu0 %v2907
    %3165 = vmatprep.subr.bf16.mxu0 %v2910
    %3166 = vmatpush1.bf16.msra.mxu0 %v2909
    %3167 = vmatprep.mubr.bf16.mxu0 %v2348
    %3168 = vmatmul.mubr.bf16.gmra.mrb[0].mxu0 %v2347
    %v3169 = vpop.f32.mrb[0].mxu0
    %v3170 = vadd.f32 %v2488, %v3169
    %v3171 = vpop.f32.mrb[0].mxu0
    %v3172 = vadd.f32 %v2492, %v3171
    %v3173 = vpop.f32.mrb[0].mxu0
    %v3174 = vpop.f32.mrb[0].mxu0
    %3175 = vdwg.mxu0
    %3176 = vmatprep.subr.bf16.mxu0 %v2912
    %3177 = vmatpush1.bf16.msra.mxu0 %v2911
    %3178 = vmatprep.subr.bf16.mxu0 %v2914
    %3179 = vmatpush1.bf16.msra.mxu0 %v2913
    %3180 = vmatprep.subr.bf16.mxu0 %v2916
    %3181 = vmatpush1.bf16.msra.mxu0 %v2915
    %3182 = vmatprep.subr.bf16.mxu0 %v2918
    %3183 = vmatpush1.bf16.msra.mxu0 %v2917
    %3184 = vmatprep.subr.bf16.mxu0 %v2920
    %3185 = vmatpush1.bf16.msra.mxu0 %v2919
    %3186 = vmatprep.subr.bf16.mxu0 %v2922
    %3187 = vmatpush1.bf16.msra.mxu0 %v2921
    %3188 = vmatprep.subr.bf16.mxu0 %v2924
    %3189 = vmatpush1.bf16.msra.mxu0 %v2923
    %3190 = vmatprep.subr.bf16.mxu0 %v2926
    %3191 = vmatpush1.bf16.msra.mxu0 %v2925
    %3192 = vmatprep.subr.bf16.mxu0 %v2928
    %3193 = vmatpush1.bf16.msra.mxu0 %v2927
    %3194 = vmatprep.subr.bf16.mxu0 %v2930
    %3195 = vmatpush1.bf16.msra.mxu0 %v2929
    %3196 = vmatprep.subr.bf16.mxu0 %v2932
    %3197 = vmatpush1.bf16.msra.mxu0 %v2931
    %3198 = vmatprep.subr.bf16.mxu0 %v2934
    %3199 = vmatpush1.bf16.msra.mxu0 %v2933
    %3200 = vmatprep.subr.bf16.mxu0 %v2936
    %3201 = vmatpush1.bf16.msra.mxu0 %v2935
    %3202 = vmatprep.subr.bf16.mxu0 %v2938
    %3203 = vmatpush1.bf16.msra.mxu0 %v2937
    %3204 = vmatprep.subr.bf16.mxu0 %v2940
    %3205 = vmatpush1.bf16.msra.mxu0 %v2939
    %3206 = vmatprep.subr.bf16.mxu0 %v2942
    %3207 = vmatpush1.bf16.msra.mxu0 %v2941
    %3208 = vmatprep.mubr.bf16.mxu0 %v2350
    %3209 = vmatmul.mubr.bf16.gmra.mrb[0].mxu0 %v2349
    %v3210 = vpop.f32.mrb[0].mxu0
    %v3211 = vadd.f32 %v3170, %v3210
    %v3212 = vpop.f32.mrb[0].mxu0
    %v3213 = vadd.f32 %v3172, %v3212
    %v3214 = vpop.f32.mrb[0].mxu0
    %v3215 = vpop.f32.mrb[0].mxu0
    %3216 = vdwg.mxu0
    %3217 = vmatprep.subr.bf16.mxu0 %v2944
    %3218 = vmatpush1.bf16.msra.mxu0 %v2943
    %3219 = vmatprep.subr.bf16.mxu0 %v2946
    %3220 = vmatpush1.bf16.msra.mxu0 %v2945
    %3221 = vmatprep.subr.bf16.mxu0 %v2948
    %3222 = vmatpush1.bf16.msra.mxu0 %v2947
    %3223 = vmatprep.subr.bf16.mxu0 %v2950
    %3224 = vmatpush1.bf16.msra.mxu0 %v2949
    %3225 = vmatprep.subr.bf16.mxu0 %v2952
    %3226 = vmatpush1.bf16.msra.mxu0 %v2951
    %3227 = vmatprep.subr.bf16.mxu0 %v2954
    %3228 = vmatpush1.bf16.msra.mxu0 %v2953
    %3229 = vmatprep.subr.bf16.mxu0 %v2956
    %3230 = vmatpush1.bf16.msra.mxu0 %v2955
    %3231 = vmatprep.subr.bf16.mxu0 %v2958
    %3232 = vmatpush1.bf16.msra.mxu0 %v2957
    %3233 = vmatprep.subr.bf16.mxu0 %v2960
    %3234 = vmatpush1.bf16.msra.mxu0 %v2959
    %3235 = vmatprep.subr.bf16.mxu0 %v2962
    %3236 = vmatpush1.bf16.msra.mxu0 %v2961
    %3237 = vmatprep.subr.bf16.mxu0 %v2964
    %3238 = vmatpush1.bf16.msra.mxu0 %v2963
    %3239 = vmatprep.subr.bf16.mxu0 %v2966
    %3240 = vmatpush1.bf16.msra.mxu0 %v2965
    %3241 = vmatprep.subr.bf16.mxu0 %v2968
    %3242 = vmatpush1.bf16.msra.mxu0 %v2967
    %3243 = vmatprep.subr.bf16.mxu0 %v2970
    %3244 = vmatpush1.bf16.msra.mxu0 %v2969
    %3245 = vmatprep.subr.bf16.mxu0 %v2972
    %3246 = vmatpush1.bf16.msra.mxu0 %v2971
    %3247 = vmatprep.subr.bf16.mxu0 %v2974
    %3248 = vmatpush1.bf16.msra.mxu0 %v2973
    %3249 = vmatprep.mubr.bf16.mxu0 %v2352
    %3250 = vmatmul.mubr.bf16.gmra.mrb[0].mxu0 %v2351
    %v3251 = vpop.f32.mrb[0].mxu0
    %v3252 = vadd.f32 %v3211, %v3251
    %v3253 = vpop.f32.mrb[0].mxu0
    %v3254 = vadd.f32 %v3213, %v3253
    %v3255 = vpop.f32.mrb[0].mxu0
    %v3256 = vpop.f32.mrb[0].mxu0
    %3257 = vdwg.mxu0
    %3258 = vmatprep.subr.bf16.mxu0 %v2976
    %3259 = vmatpush1.bf16.msra.mxu0 %v2975
    %3260 = vmatprep.subr.bf16.mxu0 %v2978
    %3261 = vmatpush1.bf16.msra.mxu0 %v2977
    %3262 = vmatprep.subr.bf16.mxu0 %v2980
    %3263 = vmatpush1.bf16.msra.mxu0 %v2979
    %3264 = vmatprep.subr.bf16.mxu0 %v2982
    %3265 = vmatpush1.bf16.msra.mxu0 %v2981
    %3266 = vmatprep.subr.bf16.mxu0 %v2984
    %3267 = vmatpush1.bf16.msra.mxu0 %v2983
    %3268 = vmatprep.subr.bf16.mxu0 %v2986
    %3269 = vmatpush1.bf16.msra.mxu0 %v2985
    %3270 = vmatprep.subr.bf16.mxu0 %v2988
    %3271 = vmatpush1.bf16.msra.mxu0 %v2987
    %3272 = vmatprep.subr.bf16.mxu0 %v2990
    %3273 = vmatpush1.bf16.msra.mxu0 %v2989
    %3274 = vmatprep.subr.bf16.mxu0 %v2992
    %3275 = vmatpush1.bf16.msra.mxu0 %v2991
    %3276 = vmatprep.subr.bf16.mxu0 %v2994
    %3277 = vmatpush1.bf16.msra.mxu0 %v2993
    %3278 = vmatprep.subr.bf16.mxu0 %v2996
    %3279 = vmatpush1.bf16.msra.mxu0 %v2995
    %3280 = vmatprep.subr.bf16.mxu0 %v2998
    %3281 = vmatpush1.bf16.msra.mxu0 %v2997
    %3282 = vmatprep.subr.bf16.mxu0 %v3000
    %3283 = vmatpush1.bf16.msra.mxu0 %v2999
    %3284 = vmatprep.subr.bf16.mxu0 %v3002
    %3285 = vmatpush1.bf16.msra.mxu0 %v3001
    %3286 = vmatprep.subr.bf16.mxu0 %v3004
    %3287 = vmatpush1.bf16.msra.mxu0 %v3003
    %3288 = vmatprep.subr.bf16.mxu0 %v3006
    %3289 = vmatpush1.bf16.msra.mxu0 %v3005
    %3290 = vmatprep.mubr.bf16.mxu0 %v2354
    %3291 = vmatmul.mubr.bf16.gmra.mrb[0].mxu0 %v2353
    %v3292 = vpop.f32.mrb[0].mxu0
    %v3293 = vadd.f32 %v3252, %v3292
    %v3294 = vpop.f32.mrb[0].mxu0
    %v3295 = vadd.f32 %v3254, %v3294
    %v3296 = vpop.f32.mrb[0].mxu0
    %v3297 = vpop.f32.mrb[0].mxu0
    %3298 = vdwg.mxu0
    %v3299 = vmax.f32 %v3293, 0.0
    %v3300 = vmax.f32 %v3295, 0.0
    %v3303 = vcombine.low %v3299, %v3300
    %v3305 = vunpack.c.l.s4 1983009808
    %v3306 = vunpack.c.0.s8 %v3305
    %v3307 = vlaneseq
    %v3308 = vshrl.u32 %v3307, 7
    %v3309 = vsub.s32 %v3306, %v3308
    %v3310 = vrot.slane %v3303, %v3309
    %3312 = vst [vmem:[%s10] sm:$0xf] %v3310
    // Predicated region
    $region38: #{model_forward.7} parent=1 // pred_check
      _
    $region39: #{model_forward.7} parent=1 // pred_check_branch
      %3314 = sbr.rel (0) target = $region41
    $region40: #{model_forward.7} parent=1 // pred_region
      %s3316 = ssub.s32 32, 32
      %3317 = vsyncadd [#allocation3], %s3316
      %s3319 = sshll.u32 [#allocation2], 4
      %s3320 = int_to_ptr.vmem [resolvable:$true] %s3319
      %3322 = dma.vmem_to_hbm [thread:$0]  %s3320, 32, %s9, [#allocation3]
    $region41: #{model_forward.7} parent=1 // pred_fallthru
      _
    // Predicated region
    $region42: #{model_forward.7} parent=1 // pred_check
      _
    $region43: #{model_forward.7} parent=1 // pred_check_branch
      %3324 = sbr.rel (0) target = $region45
    $region44: #{model_forward.7} parent=1 // pred_region
      _
    $region45: #{model_forward.7} parent=1 // pred_fallthru
      _
    // Predicated region
    $region46: #{model_forward.7} parent=1 // pred_check
      _
    $region47: #{model_forward.7} parent=1 // pred_check_branch
      %3326 = sbr.rel (0) target = $region49
    $region48: #{model_forward.7} parent=1 // pred_region
      %3327 = dma.done [#allocation3], 32
    $region49: #{model_forward.7} parent=1 // pred_fallthru
      _
    // Predicated region
    $region50: #{model_forward.7} parent=1 // pred_check
      _
    $region51: #{model_forward.7} parent=1 // pred_check_branch
      %3329 = sbr.rel (0) target = $region53
    $region52: #{model_forward.7} parent=1 // pred_region
      _
    $region53: #{model_forward.7} parent=1 // pred_fallthru
      _
    %3330 = vsyncpa [#allocation3], 1

// kernel: model_forward.9
$region0: #{model_forward.9}
  #allocation0 [shape = 'u32[]', space=smem, size = 0x4, offset = 0x4, fixed_abs, tag = 'smem constant byte address 0x4 - core index']
  #allocation1 [shape = 'u32[144,128]{1,0:T(1,128)}', space=vmem, size = 0x12000, scoped, tag = 'internal scratch']
  %s0 = inlined_call_operand.vmem [shape: bf16[168,32], index: 0, kind: input, shape index: {}]
  %s1 = inlined_call_operand.vmem [shape: bf16[32,128], index: 1, kind: input, shape index: {}]
  %s2 = inlined_call_operand.vmem [shape: f32[1,128], index: 2, kind: input, shape index: {}]
  %s3 = inlined_call_operand.vmem [shape: f32[168,128], index: 3, kind: output, shape index: {}]
  %s4 = sld [smem:[#allocation0]]
  $region22: #{model_forward.9} parent=0
    _
  %s6 = ssub.s32 1, %s4
  %s7 = scalar_select 0, %s6, %s4
  // Predicated region
  $region2: #{model_forward.9} parent=0 // pred_check
    _
  $region3: #{model_forward.9} parent=0 // pred_check_branch
    %9 = sbr.rel (0) target = $region5
  $region4: #{model_forward.9} parent=0 // pred_region
    _
  $region5: #{model_forward.9} parent=0 // pred_fallthru
    _
  // Predicated region
  $region6: #{model_forward.9} parent=0 // pred_check
    _
  $region7: #{model_forward.9} parent=0 // pred_check_branch
    %11 = sbr.rel (0) target = $region9
  $region8: #{model_forward.9} parent=0 // pred_region
    _
  $region9: #{model_forward.9} parent=0 // pred_fallthru
    _
  // Predicated region
  $region10: #{model_forward.9} parent=0 // pred_check
    _
  $region11: #{model_forward.9} parent=0 // pred_check_branch
    %13 = sbr.rel (0) target = $region13
  $region12: #{model_forward.9} parent=0 // pred_region
    _
  $region13: #{model_forward.9} parent=0 // pred_fallthru
    _
  %v15 = vld [vmem:[%s0] sm:$0xf]
  %v16 = vld [vmem:[%s0 + $0x4] sm:$0xf]
  %v17 = vld [vmem:[%s0 + $0x8] sm:$0xf]
  %v18 = vld [vmem:[%s0 + $0xc] sm:$0xf]
  %v19 = vld [vmem:[%s0 + $0x10] sm:$0xf]
  %v20 = vld [vmem:[%s0 + $0x14] sm:$0xf]
  %v21 = vld [vmem:[%s0 + $0x18] sm:$0xf]
  %v22 = vld [vmem:[%s0 + $0x1c] sm:$0xf]
  %v23 = vld [vmem:[%s0 + $0x20] sm:$0xf]
  %v24 = vld [vmem:[%s0 + $0x24] sm:$0xf]
  %v25 = vld [vmem:[%s0 + $0x28] sm:$0xf]
  %v26 = vld [vmem:[%s0 + $0x2c] sm:$0xf]
  %v27 = vld [vmem:[%s0 + $0x30] sm:$0xf]
  %v28 = vld [vmem:[%s0 + $0x34] sm:$0xf]
  %v29 = vld [vmem:[%s0 + $0x38] sm:$0xf]
  %v30 = vld [vmem:[%s0 + $0x3c] sm:$0xf]
  %v31 = vld [vmem:[%s0 + $0x40] sm:$0xf]
  %v32 = vld [vmem:[%s0 + $0x44] sm:$0xf]
  %v33 = vld [vmem:[%s0 + $0x48] sm:$0xf]
  %v34 = vld [vmem:[%s0 + $0x4c] sm:$0xf]
  %v35 = vld [vmem:[%s0 + $0x50] sm:$0xf]
  %v36 = vld [vmem:[%s1] sm:$0xf]
  %v37 = vld [vmem:[%s1 + $0x4] sm:$0xf]
  %v38 = vld [vmem:[%s1 + $0x8] sm:$0xf]
  %v39 = vld [vmem:[%s1 + $0xc] sm:$0xf]
  %v40 = vld [vmem:[%s2] sm:$0x1]
  %v42 = vlaneseq
  %v43 = vshrl.u32 %v42, 7
  %v44 = vsub.s32 0, %v43
  %v45 = vrot.slane %v40, %v44
  %v68 = vunpack.c.l.b16 %v15
  %v69 = vunpack.c.l.b16 %v16
  %v70 = vunpack.c.l.b16 %v17
  %v71 = vunpack.c.l.b16 %v18
  %v72 = vunpack.c.l.b16 %v19
  %v73 = vunpack.c.l.b16 %v20
  %v74 = vunpack.c.l.b16 %v21
  %v75 = vunpack.c.l.b16 %v22
  %v76 = vunpack.c.l.b16 %v23
  %v77 = vunpack.c.l.b16 %v24
  %v78 = vunpack.c.l.b16 %v25
  %v79 = vunpack.c.l.b16 %v26
  %v80 = vunpack.c.l.b16 %v27
  %v81 = vunpack.c.l.b16 %v28
  %v82 = vunpack.c.l.b16 %v29
  %v83 = vunpack.c.l.b16 %v30
  %v84 = vunpack.c.l.b16 %v31
  %v85 = vunpack.c.l.b16 %v32
  %v86 = vunpack.c.l.b16 %v33
  %v87 = vunpack.c.l.b16 %v34
  %v88 = vunpack.c.l.b16 %v35
  %v89 = vpack.c.b16 %v69, %v68
  %v90 = vpack.c.b16 %v71, %v70
  %v91 = vpack.c.b16 %v73, %v72
  %v92 = vpack.c.b16 %v75, %v74
  %v93 = vpack.c.b16 %v77, %v76
  %v94 = vpack.c.b16 %v79, %v78
  %v95 = vpack.c.b16 %v81, %v80
  %v96 = vpack.c.b16 %v83, %v82
  %v97 = vpack.c.b16 %v85, %v84
  %v98 = vpack.c.b16 %v87, %v86
  %v99 = vpack.c.b16 %v88, %v88
  %v104 = vunpack.c.l.b16 %v36
  %v105 = vunpack.c.l.b16 %v37
  %v106 = vunpack.c.l.b16 %v38
  %v107 = vunpack.c.l.b16 %v39
  %v108 = vpack.c.b16 %v105, %v104
  %v109 = vpack.c.b16 %v107, %v106
  %vm112 = vcmask 261120
  %v114 = vsel %vm112, %v89, 0
  %v117 = vsel %vm112, %v90, 0
  %v120 = vsel %vm112, %v91, 0
  %v123 = vsel %vm112, %v92, 0
  %v126 = vsel %vm112, %v93, 0
  %v129 = vsel %vm112, %v94, 0
  %v132 = vsel %vm112, %v95, 0
  %v135 = vsel %vm112, %v96, 0
  %v138 = vsel %vm112, %v97, 0
  %v141 = vsel %vm112, %v98, 0
  %v144 = vsel %vm112, %v99, 0
  %146 = vmatprep.subr.bf16.mxu0 0
  %147 = vmatpush1.bf16.msra.mxu0 %v108
  %148 = vmatprep.subr.bf16.mxu0 0
  %149 = vmatpush1.bf16.msra.mxu0 %v109
  %150 = vmatprep.subr.bf16.mxu0 0
  %151 = vmatpush1.bf16.msra.mxu0 0
  %152 = vmatprep.subr.bf16.mxu0 0
  %153 = vmatpush1.bf16.msra.mxu0 0
  %154 = vmatprep.subr.bf16.mxu0 0
  %155 = vmatpush1.bf16.msra.mxu0 0
  %156 = vmatprep.subr.bf16.mxu0 0
  %157 = vmatpush1.bf16.msra.mxu0 0
  %158 = vmatprep.subr.bf16.mxu0 0
  %159 = vmatpush1.bf16.msra.mxu0 0
  %160 = vmatprep.subr.bf16.mxu0 0
  %161 = vmatpush1.bf16.msra.mxu0 0
  %162 = vmatprep.subr.bf16.mxu0 0
  %163 = vmatpush1.bf16.msra.mxu0 0
  %164 = vmatprep.subr.bf16.mxu0 0
  %165 = vmatpush1.bf16.msra.mxu0 0
  %166 = vmatprep.subr.bf16.mxu0 0
  %167 = vmatpush1.bf16.msra.mxu0 0
  %168 = vmatprep.subr.bf16.mxu0 0
  %169 = vmatpush1.bf16.msra.mxu0 0
  %170 = vmatprep.subr.bf16.mxu0 0
  %171 = vmatpush1.bf16.msra.mxu0 0
  %172 = vmatprep.subr.bf16.mxu0 0
  %173 = vmatpush1.bf16.msra.mxu0 0
  %174 = vmatprep.subr.bf16.mxu0 0
  %175 = vmatpush1.bf16.msra.mxu0 0
  %176 = vmatprep.subr.bf16.mxu0 0
  %177 = vmatpush1.bf16.msra.mxu0 0
  %178 = vmatprep.mubr.bf16.mxu0 0
  %179 = vmatmul.mubr.bf16.gmra.mrb[0].mxu0 %v114
  %v180 = vpop.f32.mrb[0].mxu0
  %v181 = vadd.f32 %v45, %v180
  %v182 = vpop.f32.mrb[0].mxu0
  %v183 = vpop.f32.mrb[0].mxu0
  %v184 = vadd.f32 %v45, %v183
  %v185 = vpop.f32.mrb[0].mxu0
  %186 = vmatprep.mubr.bf16.mxu0 0
  %187 = vmatmul.mubr.bf16.gmra.mrb[0].mxu0 %v117
  %v188 = vpop.f32.mrb[0].mxu0
  %v189 = vadd.f32 %v45, %v188
  %v190 = vpop.f32.mrb[0].mxu0
  %v191 = vpop.f32.mrb[0].mxu0
  %v192 = vadd.f32 %v45, %v191
  %v193 = vpop.f32.mrb[0].mxu0
  %194 = vmatprep.mubr.bf16.mxu0 0
  %195 = vmatmul.mubr.bf16.gmra.mrb[0].mxu0 %v120
  %v196 = vpop.f32.mrb[0].mxu0
  %v197 = vadd.f32 %v45, %v196
  %v198 = vpop.f32.mrb[0].mxu0
  %v199 = vpop.f32.mrb[0].mxu0
  %v200 = vadd.f32 %v45, %v199
  %v201 = vpop.f32.mrb[0].mxu0
  %202 = vmatprep.mubr.bf16.mxu0 0
  %203 = vmatmul.mubr.bf16.gmra.mrb[0].mxu0 %v123
  %v204 = vpop.f32.mrb[0].mxu0
  %v205 = vadd.f32 %v45, %v204
  %v206 = vpop.f32.mrb[0].mxu0
  %v207 = vpop.f32.mrb[0].mxu0
  %v208 = vadd.f32 %v45, %v207
  %v209 = vpop.f32.mrb[0].mxu0
  %210 = vmatprep.mubr.bf16.mxu0 0
  %211 = vmatmul.mubr.bf16.gmra.mrb[0].mxu0 %v126
  %v212 = vpop.f32.mrb[0].mxu0
  %v213 = vadd.f32 %v45, %v212
  %v214 = vpop.f32.mrb[0].mxu0
  %v215 = vpop.f32.mrb[0].mxu0
  %v216 = vadd.f32 %v45, %v215
  %v217 = vpop.f32.mrb[0].mxu0
  %218 = vmatprep.mubr.bf16.mxu0 0
  %219 = vmatmul.mubr.bf16.gmra.mrb[0].mxu0 %v129
  %v220 = vpop.f32.mrb[0].mxu0
  %v221 = vadd.f32 %v45, %v220
  %v222 = vpop.f32.mrb[0].mxu0
  %v223 = vpop.f32.mrb[0].mxu0
  %v224 = vadd.f32 %v45, %v223
  %v225 = vpop.f32.mrb[0].mxu0
  %226 = vmatprep.mubr.bf16.mxu0 0
  %227 = vmatmul.mubr.bf16.gmra.mrb[0].mxu0 %v132
  %v228 = vpop.f32.mrb[0].mxu0
  %v229 = vadd.f32 %v45, %v228
  %v230 = vpop.f32.mrb[0].mxu0
  %v231 = vpop.f32.mrb[0].mxu0
  %v232 = vadd.f32 %v45, %v231
  %v233 = vpop.f32.mrb[0].mxu0
  %234 = vmatprep.mubr.bf16.mxu0 0
  %235 = vmatmul.mubr.bf16.gmra.mrb[0].mxu0 %v135
  %v236 = vpop.f32.mrb[0].mxu0
  %v237 = vadd.f32 %v45, %v236
  %v238 = vpop.f32.mrb[0].mxu0
  %v239 = vpop.f32.mrb[0].mxu0
  %v240 = vadd.f32 %v45, %v239
  %v241 = vpop.f32.mrb[0].mxu0
  %242 = vmatprep.mubr.bf16.mxu0 0
  %243 = vmatmul.mubr.bf16.gmra.mrb[0].mxu0 %v138
  %v244 = vpop.f32.mrb[0].mxu0
  %v245 = vadd.f32 %v45, %v244
  %v246 = vpop.f32.mrb[0].mxu0
  %v247 = vpop.f32.mrb[0].mxu0
  %v248 = vadd.f32 %v45, %v247
  %v249 = vpop.f32.mrb[0].mxu0
  %250 = vmatprep.mubr.bf16.mxu0 0
  %251 = vmatmul.mubr.bf16.gmra.mrb[0].mxu0 %v141
  %v252 = vpop.f32.mrb[0].mxu0
  %v253 = vadd.f32 %v45, %v252
  %v254 = vpop.f32.mrb[0].mxu0
  %v255 = vpop.f32.mrb[0].mxu0
  %v256 = vadd.f32 %v45, %v255
  %v257 = vpop.f32.mrb[0].mxu0
  %258 = vmatprep.mubr.bf16.mxu0 0
  %259 = vmatmul.mubr.bf16.gmra.mrb[0].mxu0 %v144
  %v260 = vpop.f32.mrb[0].mxu0
  %v261 = vadd.f32 %v45, %v260
  %v262 = vpop.f32.mrb[0].mxu0
  %v263 = vpop.f32.mrb[0].mxu0
  %v264 = vpop.f32.mrb[0].mxu0
  %265 = vdwg.mxu0
  %v266 = vsub.f32 0.0, %v181
  %v267 = vsub.f32 0.0, %v184
  %v268 = vsub.f32 0.0, %v189
  %v269 = vsub.f32 0.0, %v192
  %v270 = vsub.f32 0.0, %v197
  %v271 = vsub.f32 0.0, %v200
  %v272 = vsub.f32 0.0, %v205
  %v273 = vsub.f32 0.0, %v208
  %v274 = vsub.f32 0.0, %v213
  %v275 = vsub.f32 0.0, %v216
  %v276 = vsub.f32 0.0, %v221
  %v277 = vsub.f32 0.0, %v224
  %v278 = vsub.f32 0.0, %v229
  %v279 = vsub.f32 0.0, %v232
  %v280 = vsub.f32 0.0, %v237
  %v281 = vsub.f32 0.0, %v240
  %v282 = vsub.f32 0.0, %v245
  %v283 = vsub.f32 0.0, %v248
  %v284 = vsub.f32 0.0, %v253
  %v285 = vsub.f32 0.0, %v256
  %v286 = vsub.f32 0.0, %v261
  %v287 = vmul.f32 %v266, 1.442695
  %v288 = vpow.pop %v287
  %v289 = vmul.f32 %v267, 1.442695
  %v290 = vpow.pop %v289
  %v291 = vmul.f32 %v268, 1.442695
  %v292 = vpow.pop %v291
  %v293 = vmul.f32 %v269, 1.442695
  %v294 = vpow.pop %v293
  %v295 = vmul.f32 %v270, 1.442695
  %v296 = vpow.pop %v295
  %v297 = vmul.f32 %v271, 1.442695
  %v298 = vpow.pop %v297
  %v299 = vmul.f32 %v272, 1.442695
  %v300 = vpow.pop %v299
  %v301 = vmul.f32 %v273, 1.442695
  %v302 = vpow.pop %v301
  %v303 = vmul.f32 %v274, 1.442695
  %v304 = vpow.pop %v303
  %v305 = vmul.f32 %v275, 1.442695
  %v306 = vpow.pop %v305
  %v307 = vmul.f32 %v276, 1.442695
  %v308 = vpow.pop %v307
  %v309 = vmul.f32 %v277, 1.442695
  %v310 = vpow.pop %v309
  %v311 = vmul.f32 %v278, 1.442695
  %v312 = vpow.pop %v311
  %v313 = vmul.f32 %v279, 1.442695
  %v314 = vpow.pop %v313
  %v315 = vmul.f32 %v280, 1.442695
  %v316 = vpow.pop %v315
  %v317 = vmul.f32 %v281, 1.442695
  %v318 = vpow.pop %v317
  %v319 = vmul.f32 %v282, 1.442695
  %v320 = vpow.pop %v319
  %v321 = vmul.f32 %v283, 1.442695
  %v322 = vpow.pop %v321
  %v323 = vmul.f32 %v284, 1.442695
  %v324 = vpow.pop %v323
  %v325 = vmul.f32 %v285, 1.442695
  %v326 = vpow.pop %v325
  %v327 = vmul.f32 %v286, 1.442695
  %v328 = vpow.pop %v327
  %v329 = vadd.f32 %v288, 1.0
  %v330 = vadd.f32 %v290, 1.0
  %v331 = vadd.f32 %v292, 1.0
  %v332 = vadd.f32 %v294, 1.0
  %v333 = vadd.f32 %v296, 1.0
  %v334 = vadd.f32 %v298, 1.0
  %v335 = vadd.f32 %v300, 1.0
  %v336 = vadd.f32 %v302, 1.0
  %v337 = vadd.f32 %v304, 1.0
  %v338 = vadd.f32 %v306, 1.0
  %v339 = vadd.f32 %v308, 1.0
  %v340 = vadd.f32 %v310, 1.0
  %v341 = vadd.f32 %v312, 1.0
  %v342 = vadd.f32 %v314, 1.0
  %v343 = vadd.f32 %v316, 1.0
  %v344 = vadd.f32 %v318, 1.0
  %v345 = vadd.f32 %v320, 1.0
  %v346 = vadd.f32 %v322, 1.0
  %v347 = vadd.f32 %v324, 1.0
  %v348 = vadd.f32 %v326, 1.0
  %v349 = vadd.f32 %v328, 1.0
  %v350 = vrcp.pop %v329
  %v351 = vmul.f32 1.0, %v350
  %v352 = vrcp.pop %v330
  %v353 = vmul.f32 1.0, %v352
  %v354 = vrcp.pop %v331
  %v355 = vmul.f32 1.0, %v354
  %v356 = vrcp.pop %v332
  %v357 = vmul.f32 1.0, %v356
  %v358 = vrcp.pop %v333
  %v359 = vmul.f32 1.0, %v358
  %v360 = vrcp.pop %v334
  %v361 = vmul.f32 1.0, %v360
  %v362 = vrcp.pop %v335
  %v363 = vmul.f32 1.0, %v362
  %v364 = vrcp.pop %v336
  %v365 = vmul.f32 1.0, %v364
  %v366 = vrcp.pop %v337
  %v367 = vmul.f32 1.0, %v366
  %v368 = vrcp.pop %v338
  %v369 = vmul.f32 1.0, %v368
  %v370 = vrcp.pop %v339
  %v371 = vmul.f32 1.0, %v370
  %v372 = vrcp.pop %v340
  %v373 = vmul.f32 1.0, %v372
  %v374 = vrcp.pop %v341
  %v375 = vmul.f32 1.0, %v374
  %v376 = vrcp.pop %v342
  %v377 = vmul.f32 1.0, %v376
  %v378 = vrcp.pop %v343
  %v379 = vmul.f32 1.0, %v378
  %v380 = vrcp.pop %v344
  %v381 = vmul.f32 1.0, %v380
  %v382 = vrcp.pop %v345
  %v383 = vmul.f32 1.0, %v382
  %v384 = vrcp.pop %v346
  %v385 = vmul.f32 1.0, %v384
  %v386 = vrcp.pop %v347
  %v387 = vmul.f32 1.0, %v386
  %v388 = vrcp.pop %v348
  %v389 = vmul.f32 1.0, %v388
  %v390 = vrcp.pop %v349
  %v391 = vmul.f32 1.0, %v390
  %392 = vst [vmem:[%s3] sm:$0xff] %v351
  %393 = vst [vmem:[%s3 + $0x8] sm:$0xff] %v353
  %394 = vst [vmem:[%s3 + $0x10] sm:$0xff] %v355
  %395 = vst [vmem:[%s3 + $0x18] sm:$0xff] %v357
  %396 = vst [vmem:[%s3 + $0x20] sm:$0xff] %v359
  %397 = vst [vmem:[%s3 + $0x28] sm:$0xff] %v361
  %398 = vst [vmem:[%s3 + $0x30] sm:$0xff] %v363
  %399 = vst [vmem:[%s3 + $0x38] sm:$0xff] %v365
  %400 = vst [vmem:[%s3 + $0x40] sm:$0xff] %v367
  %401 = vst [vmem:[%s3 + $0x48] sm:$0xff] %v369
  %402 = vst [vmem:[%s3 + $0x50] sm:$0xff] %v371
  %403 = vst [vmem:[%s3 + $0x58] sm:$0xff] %v373
  %404 = vst [vmem:[%s3 + $0x60] sm:$0xff] %v375
  %405 = vst [vmem:[%s3 + $0x68] sm:$0xff] %v377
  %406 = vst [vmem:[%s3 + $0x70] sm:$0xff] %v379
  %407 = vst [vmem:[%s3 + $0x78] sm:$0xff] %v381
  %408 = vst [vmem:[%s3 + $0x80] sm:$0xff] %v383
  %409 = vst [vmem:[%s3 + $0x88] sm:$0xff] %v385
  %410 = vst [vmem:[%s3 + $0x90] sm:$0xff] %v387
  %411 = vst [vmem:[%s3 + $0x98] sm:$0xff] %v389
  %412 = vst [vmem:[%s3 + $0xa0] sm:$0xff] %v391
  // Predicated region
  $region14: #{model_forward.9} parent=0 // pred_check
    _
  $region15: #{model_forward.9} parent=0 // pred_check_branch
    %414 = sbr.rel (0) target = $region17
  $region16: #{model_forward.9} parent=0 // pred_region
    _
  $region17: #{model_forward.9} parent=0 // pred_fallthru
    _
  // Predicated region
  $region18: #{model_forward.9} parent=0 // pred_check
    _
  $region19: #{model_forward.9} parent=0 // pred_check_branch
    %416 = sbr.rel (0) target = $region21
  $region20: #{model_forward.9} parent=0 // pred_region
    _
  $region21: #{model_forward.9} parent=0 // pred_fallthru
    _

</llo_original>
